<compile_context>
chip_gen: v7x
topology: tpu7x:2x2x1
jax: 0.10.0
libtpu: 0.0.40
codegen_flags: <defaults>
</compile_context>

<pallas_src>
import functools
import math

import jax
import jax.numpy as jnp
import numpy as np
from jax.experimental import pallas as pl
from jax.experimental.pallas import tpu as pltpu


def _round_up(x, m):
    return ((x + m - 1) // m) * m


# ---------------------------------------------------------------------------
# Kernel 1: embedding gather + GRU recurrence + scaled dot-product attention.
# Gridless (everything VMEM-resident at these shapes); emits bf16 activations
# for the vocab-tiled classifier kernel.
# ---------------------------------------------------------------------------
def rnn_attn_kernel(seq_ref, h0_ref, enc_ref, maskb_ref,
                    emb_ref, wih_ref, whh_ref, bihz_ref, bhn_ref,
                    rnn_out_ref, attn_out_ref,
                    x_ref, rnn_acc_ref, *, scale):
    TB = seq_ref.shape[0]              # T*B token ids, t-major (row = t*B + b)
    B, Hp = h0_ref.shape               # Hp = lane-padded hidden (multiple of 128)
    T = rnn_out_ref.shape[1]
    V = emb_ref.shape[0]

    # ---- Embedding lookup: SMEM ids -> dynamic-sublane gather from the VMEM table ----
    # (replaces the old O(TB*V) one-hot matmul).
    # TODO(synk): at large V keep the table in HBM (memory_space=pl.ANY) and gather rows
    # with pltpu.make_async_copy instead of holding it VMEM-resident.
    for row in range(TB):                                   # TB static & small -> unrolled
        tok = seq_ref[row]
        tok = jnp.minimum(jnp.maximum(tok, 0), V - 1)       # clamp: no silent OOB VMEM read
        x_ref[pl.ds(row, 1), :] = emb_ref[pl.ds(tok, 1), :]

    # ---- All input-side GRU gates in ONE bf16 MXU dot (gate-major, lane-aligned) ----
    # Columns are [r | z | n], each padded to Hp lanes; r/z hidden biases were folded
    # into bihz in the wrapper, so they cost nothing on the recurrence path.
    gx = jnp.dot(x_ref[...].astype(jnp.bfloat16), wih_ref[...],
                 preferred_element_type=jnp.float32) + bihz_ref[...]     # (TB, 3*Hp)

    whh = whh_ref[...]                                                   # (Hp, 3*Hp) bf16
    b_hn = jnp.broadcast_to(bhn_ref[...], (B, Hp))                       # hoisted once

    # ---- Fully unrolled GRU recurrence (T static & tiny); elementwise math in f32 ----
    # TODO(synk): at realistic H (>=128) pin `whh` in MXU weight registers with
    # pltpu.matmul_push_rhs / matmul_acc_lhs instead of T independent jnp.dot calls.
    h = h0_ref[...]                                                      # (B, Hp) f32
    for t in range(T):
        gxt = gx[t * B:(t + 1) * B, :]                                   # static (B, 3*Hp)
        gh = jnp.dot(h.astype(jnp.bfloat16), whh,
                     preferred_element_type=jnp.float32)                 # (B, 3*Hp)
        r_g = jax.nn.sigmoid(gxt[:, 0:Hp] + gh[:, 0:Hp])                 # full-vreg slices
        z_g = jax.nn.sigmoid(gxt[:, Hp:2 * Hp] + gh[:, Hp:2 * Hp])
        n_g = jnp.tanh(gxt[:, 2 * Hp:3 * Hp] + r_g * (gh[:, 2 * Hp:3 * Hp] + b_hn))
        h = (1.0 - z_g) * n_g + z_g * h
        rnn_acc_ref[:, t, :] = h                                         # static-t f32 store

    rnn_bf = rnn_acc_ref[...].astype(jnp.bfloat16)                       # (B, T, Hp)
    rnn_out_ref[...] = rnn_bf

    # ---- SDPA: q = rnn_out, k = v = encoded; additive mask bias (no compare/select) ----
    enc = enc_ref[...]                                                   # (B, S, Hp) bf16
    scores = jnp.einsum('bth,bsh->bts', rnn_bf, enc,
                        preferred_element_type=jnp.float32) * scale
    scores = scores + maskb_ref[...][:, None, :]
    scores = scores - jnp.max(scores, axis=-1, keepdims=True)
    p = jnp.exp(scores)
    inv_den = pl.reciprocal(jnp.sum(p, axis=-1, keepdims=True), approx=True)
    attn = (p * inv_den).astype(jnp.bfloat16)                            # bf16 PV fast path
    attn_out = jnp.einsum('bts,bsh->bth', attn, enc,
                          preferred_element_type=jnp.float32)            # (B, T, Hp)
    attn_out_ref[...] = attn_out.astype(jnp.bfloat16)


# ---------------------------------------------------------------------------
# Kernel 2: classifier, vocab-tiled grid ("parallel" -> both TCs on v7x).
# logits = rnn @ Wr + attn @ Wa + b   (split weights: no in-kernel concat).
# ---------------------------------------------------------------------------
def classifier_kernel(rnn_ref, attn_ref, wr_ref, wa_ref, b_ref, out_ref):
    out_ref[...] = (
        jnp.dot(rnn_ref[...], wr_ref[...], preferred_element_type=jnp.float32)
        + jnp.dot(attn_ref[...], wa_ref[...], preferred_element_type=jnp.float32)
        + b_ref[...])


# ---------------------------------------------------------------------------
# One-time weight repacking (hoisted out of the per-call forward path).
# ---------------------------------------------------------------------------
def prepare_decoder_params(params):
    V, E = params['emb'].shape
    H = params['w_hh'].shape[1]
    Hp = _round_up(H, 128)
    Ep = _round_up(E, 128)
    Vp = _round_up(V, 128)

    emb_p = jnp.zeros((V, Ep), jnp.float32).at[:, :E].set(params['emb'])

    # Gate-major, lane-padded GRU weights (PyTorch gate order [r, z, n]).
    w_ih_t = jnp.zeros((Ep, 3 * Hp), jnp.float32)
    w_hh_t = jnp.zeros((Hp, 3 * Hp), jnp.float32)
    for g in range(3):
        w_ih_t = w_ih_t.at[:E, g * Hp:g * Hp + H].set(params['w_ih'][g * H:(g + 1) * H, :].T)
        w_hh_t = w_hh_t.at[:H, g * Hp:g * Hp + H].set(params['w_hh'][g * H:(g + 1) * H, :].T)

    # Fold r/z hidden biases into the input-side bias; only the n-gate hidden bias
    # must stay separate (it is multiplied by r inside the GRU cell).
    b_ihz = jnp.zeros((1, 3 * Hp), jnp.float32)
    b_ihz = b_ihz.at[0, 0 * Hp:0 * Hp + H].set(params['b_ih'][0:H] + params['b_hh'][0:H])
    b_ihz = b_ihz.at[0, 1 * Hp:1 * Hp + H].set(params['b_ih'][H:2 * H] + params['b_hh'][H:2 * H])
    b_ihz = b_ihz.at[0, 2 * Hp:2 * Hp + H].set(params['b_ih'][2 * H:3 * H])
    b_hn = jnp.zeros((1, Hp), jnp.float32).at[0, :H].set(params['b_hh'][2 * H:3 * H])

    # Column-split, transposed, lane-padded classifier weights (no in-kernel concat).
    w_cls = params['w_cls']
    wc_rnn = jnp.zeros((Hp, Vp), jnp.float32).at[:H, :V].set(w_cls[:, :H].T)
    wc_attn = jnp.zeros((Hp, Vp), jnp.float32).at[:H, :V].set(w_cls[:, H:2 * H].T)
    b_cls = jnp.zeros((1, Vp), jnp.float32).at[0, :V].set(params['b_cls'])

    return {
        'emb': emb_p,                            # f32 (V, Ep): gathered row-wise in-kernel
        'w_ih_t': w_ih_t.astype(jnp.bfloat16),   # bf16 MXU inputs
        'w_hh_t': w_hh_t.astype(jnp.bfloat16),
        'b_ihz': b_ihz,
        'b_hn': b_hn,
        'wc_rnn': wc_rnn.astype(jnp.bfloat16),
        'wc_attn': wc_attn.astype(jnp.bfloat16),
        'b_cls': b_cls,
    }


def decoder_forward(sequence, hidden_state, encoded, mask, prep):
    B, T = sequence.shape
    S = encoded.shape[1]
    H = hidden_state.shape[-1]
    V, Ep = prep['emb'].shape
    Hp = prep['w_hh_t'].shape[0]
    Vp = prep['b_cls'].shape[1]
    BT = B * T

    # Per-call layout plumbing: t-major ids, zero-pad state/memory to Hp, additive mask.
    seq_flat = jnp.transpose(sequence, (1, 0)).reshape(T * B).astype(jnp.int32)
    h0 = jnp.zeros((B, Hp), jnp.float32).at[:, :H].set(hidden_state.reshape(B, H))
    enc = jnp.zeros((B, S, Hp), jnp.float32).at[:, :, :H].set(encoded).astype(jnp.bfloat16)
    mask_bias = (1.0 - mask.astype(jnp.float32)) * (-1e9)

    vmem = pl.BlockSpec(memory_space=pltpu.MemorySpace.VMEM)
    smem = pl.BlockSpec(memory_space=pltpu.MemorySpace.SMEM)

    # --- Kernel 1: embedding gather + GRU + attention (single invocation) ---------------
    # TODO(synk): for large B, grid over batch with dimension_semantics=("parallel",);
    # at B=2 the extra per-step overhead outweighs the second TensorCore.
    rnn_out, attn_out = pl.pallas_call(
        functools.partial(rnn_attn_kernel, scale=1.0 / math.sqrt(H)),
        out_shape=(jax.ShapeDtypeStruct((B, T, Hp), jnp.bfloat16),
                   jax.ShapeDtypeStruct((B, T, Hp), jnp.bfloat16)),
        in_specs=[smem, vmem, vmem, vmem, vmem, vmem, vmem, vmem, vmem],
        out_specs=(vmem, vmem),
        scratch_shapes=[
            pltpu.VMEM((T * B, Ep), jnp.float32),   # gathered embeddings
            pltpu.VMEM((B, T, Hp), jnp.float32),    # per-timestep hidden states (f32)
        ],
        compiler_params=pltpu.CompilerParams(vmem_limit_bytes=32 * 1024 * 1024),
    )(seq_flat, h0, enc, mask_bias,
      prep['emb'], prep['w_ih_t'], prep['w_hh_t'], prep['b_ihz'], prep['b_hn'])

    # --- Kernel 2: classifier, vocab-tiled parallel grid --------------------------------
    rnn_bt = rnn_out.reshape(BT, Hp)                # leading-dim merge, layout-free
    attn_bt = attn_out.reshape(BT, Hp)
    TILE_V = 128
    logits = pl.pallas_call(
        classifier_kernel,
        out_shape=jax.ShapeDtypeStruct((BT, Vp), jnp.float32),
        grid=(Vp // TILE_V,),
        in_specs=[
            pl.BlockSpec((BT, Hp), lambda j: (0, 0)),
            pl.BlockSpec((BT, Hp), lambda j: (0, 0)),
            pl.BlockSpec((Hp, TILE_V), lambda j: (0, j)),
            pl.BlockSpec((Hp, TILE_V), lambda j: (0, j)),
            pl.BlockSpec((1, TILE_V), lambda j: (0, j)),
        ],
        out_specs=pl.BlockSpec((BT, TILE_V), lambda j: (0, j)),
        compiler_params=pltpu.CompilerParams(
            dimension_semantics=("parallel",),
            vmem_limit_bytes=32 * 1024 * 1024),
    )(rnn_bt, attn_bt, prep['wc_rnn'], prep['wc_attn'], prep['b_cls'])

    return logits.reshape(B, T, Vp)[:, :, :V]


def decoder_reference(sequence, hidden_state, encoded, mask, params):
    """Pure-JAX f32 reference mirroring torch semantics (training path)."""
    H = hidden_state.shape[-1]
    h0 = hidden_state.reshape(hidden_state.shape[1], H)
    x = params['emb'][sequence]                                   # (B, T, E)

    def step(h, xt):
        gx = xt @ params['w_ih'].T + params['b_ih']
        gh = h @ params['w_hh'].T + params['b_hh']
        r = jax.nn.sigmoid(gx[:, :H] + gh[:, :H])
        z = jax.nn.sigmoid(gx[:, H:2 * H] + gh[:, H:2 * H])
        n = jnp.tanh(gx[:, 2 * H:] + r * gh[:, 2 * H:])
        hn = (1.0 - z) * n + z * h
        return hn, hn

    _, outs = jax.lax.scan(step, h0, jnp.swapaxes(x, 0, 1))
    rnn_out = jnp.swapaxes(outs, 0, 1)                            # (B, T, H)
    scores = jnp.einsum('bth,bsh->bts', rnn_out, encoded) / math.sqrt(H)
    scores = jnp.where(mask[:, None, :] > 0.0, scores, -1e9)
    attn = jax.nn.softmax(scores, axis=-1)
    attn_out = jnp.einsum('bts,bsh->bth', attn, encoded)
    cat = jnp.concatenate([rnn_out, attn_out], axis=-1)
    return cat @ params['w_cls'].T + params['b_cls']


# TODO(synk): the eval-mode greedy-decode branch (data-dependent `while char_id != eos_id`
# with host-side `.item()` sync) has no clean single-kernel Pallas equivalent; only the
# training-path forward is implemented.

if __name__ == "__main__":
    B, T, S = 2, 8, 16           # batch, decoder seq len, encoder seq len
    E, H, V = 32, 32, 16         # emb_size, hidden_size, vocab_len

    key = jax.random.PRNGKey(0)
    ks = jax.random.split(key, 12)

    params = {
        'emb':   jax.random.normal(ks[0], (V, E), jnp.float32) * 0.1,
        'w_ih':  jax.random.normal(ks[1], (3 * H, E), jnp.float32) * 0.1,
        'w_hh':  jax.random.normal(ks[2], (3 * H, H), jnp.float32) * 0.1,
        'b_ih':  jax.random.normal(ks[3], (3 * H,), jnp.float32) * 0.1,
        'b_hh':  jax.random.normal(ks[4], (3 * H,), jnp.float32) * 0.1,
        'w_cls': jax.random.normal(ks[5], (V, 2 * H), jnp.float32) * 0.1,
        'b_cls': jax.random.normal(ks[6], (V,), jnp.float32) * 0.1,
    }

    sequence = jax.random.randint(ks[7], (B, T), 0, V, dtype=jnp.int32)
    hidden_state = jax.random.normal(ks[8], (1, B, H), jnp.float32)
    encoded = jax.random.normal(ks[9], (B, S, H), jnp.float32)
    # valid-key mask: mask out the tail of the second batch element
    mask = jnp.ones((B, S), jnp.float32).at[1, S - 4:].set(0.0)

    prep = prepare_decoder_params(params)            # one-time weight repack (hoisted)
    fwd = jax.jit(decoder_forward)

    out = jax.block_until_ready(fwd(sequence, hidden_state, encoded, mask, prep))

    ref = decoder_reference(sequence, hidden_state, encoded, mask, params)
    # NOTE: bf16 MXU inputs + approx-reciprocal softmax => ~1e-3-level relative error.
    np.testing.assert_allclose(np.asarray(out), np.asarray(ref), rtol=2e-2, atol=2e-2)

    print("KERNEL_OK")
</pallas_src>

<mosaic_0001>
module attributes {stable_mosaic.version = 11 : i64} {
  func.func @rnn_attn_kernel(%arg0: memref<16xi32, #tpu.memory_space<smem>>, %arg1: memref<2x128xf32, #tpu.memory_space<vmem>>, %arg2: memref<2x16x128xbf16, #tpu.memory_space<vmem>>, %arg3: memref<2x16xf32, #tpu.memory_space<vmem>>, %arg4: memref<16x128xf32, #tpu.memory_space<vmem>>, %arg5: memref<128x384xbf16, #tpu.memory_space<vmem>>, %arg6: memref<128x384xbf16, #tpu.memory_space<vmem>>, %arg7: memref<1x384xf32, #tpu.memory_space<vmem>>, %arg8: memref<1x128xf32, #tpu.memory_space<vmem>>, %arg9: memref<2x8x128xbf16, #tpu.memory_space<vmem>>, %arg10: memref<2x8x128xbf16, #tpu.memory_space<vmem>>, %arg11: memref<16x128xf32, #tpu.memory_space<vmem>>, %arg12: memref<2x8x128xf32, #tpu.memory_space<vmem>>) attributes {dimension_semantics = [], scalar_prefetch = 0 : i64, scratch_operands = 2 : i64, tpu.core_type = #tpu.core_type<tc>} {
    %c0 = arith.constant 0 : index
    %0 = memref.load %arg0[%c0] : memref<16xi32, #tpu.memory_space<smem>>
    %c0_i32 = arith.constant 0 : i32
    %1 = arith.maxsi %0, %c0_i32 : i32
    %c15_i32 = arith.constant 15 : i32
    %2 = arith.minsi %1, %c15_i32 : i32
    %3 = arith.index_cast %2 : i32 to index
    %c0_0 = arith.constant 0 : index
    %4 = vector.load %arg4[%3, %c0_0] : memref<16x128xf32, #tpu.memory_space<vmem>>, vector<1x128xf32>
    %c0_1 = arith.constant 0 : index
    %c0_2 = arith.constant 0 : index
    %5 = vector.load %arg11[%c0_1, %c0_2] : memref<16x128xf32, #tpu.memory_space<vmem>>, vector<1x128xf32>
    tpu.vector_store %arg11[%c0_1, %c0_2], %4 {strides = array<i32>} : memref<16x128xf32, #tpu.memory_space<vmem>>, vector<1x128xf32>,
    %c1 = arith.constant 1 : index
    %6 = memref.load %arg0[%c1] : memref<16xi32, #tpu.memory_space<smem>>
    %c0_i32_3 = arith.constant 0 : i32
    %7 = arith.maxsi %6, %c0_i32_3 : i32
    %c15_i32_4 = arith.constant 15 : i32
    %8 = arith.minsi %7, %c15_i32_4 : i32
    %9 = arith.index_cast %8 : i32 to index
    %c0_5 = arith.constant 0 : index
    %10 = vector.load %arg4[%9, %c0_5] : memref<16x128xf32, #tpu.memory_space<vmem>>, vector<1x128xf32>
    %c1_6 = arith.constant 1 : index
    %c0_7 = arith.constant 0 : index
    %11 = vector.load %arg11[%c1_6, %c0_7] : memref<16x128xf32, #tpu.memory_space<vmem>>, vector<1x128xf32>
    tpu.vector_store %arg11[%c1_6, %c0_7], %10 {strides = array<i32>} : memref<16x128xf32, #tpu.memory_space<vmem>>, vector<1x128xf32>,
    %c2 = arith.constant 2 : index
    %12 = memref.load %arg0[%c2] : memref<16xi32, #tpu.memory_space<smem>>
    %c0_i32_8 = arith.constant 0 : i32
    %13 = arith.maxsi %12, %c0_i32_8 : i32
    %c15_i32_9 = arith.constant 15 : i32
    %14 = arith.minsi %13, %c15_i32_9 : i32
    %15 = arith.index_cast %14 : i32 to index
    %c0_10 = arith.constant 0 : index
    %16 = vector.load %arg4[%15, %c0_10] : memref<16x128xf32, #tpu.memory_space<vmem>>, vector<1x128xf32>
    %c2_11 = arith.constant 2 : index
    %c0_12 = arith.constant 0 : index
    %17 = vector.load %arg11[%c2_11, %c0_12] : memref<16x128xf32, #tpu.memory_space<vmem>>, vector<1x128xf32>
    tpu.vector_store %arg11[%c2_11, %c0_12], %16 {strides = array<i32>} : memref<16x128xf32, #tpu.memory_space<vmem>>, vector<1x128xf32>,
    %c3 = arith.constant 3 : index
    %18 = memref.load %arg0[%c3] : memref<16xi32, #tpu.memory_space<smem>>
    %c0_i32_13 = arith.constant 0 : i32
    %19 = arith.maxsi %18, %c0_i32_13 : i32
    %c15_i32_14 = arith.constant 15 : i32
    %20 = arith.minsi %19, %c15_i32_14 : i32
    %21 = arith.index_cast %20 : i32 to index
    %c0_15 = arith.constant 0 : index
    %22 = vector.load %arg4[%21, %c0_15] : memref<16x128xf32, #tpu.memory_space<vmem>>, vector<1x128xf32>
    %c3_16 = arith.constant 3 : index
    %c0_17 = arith.constant 0 : index
    %23 = vector.load %arg11[%c3_16, %c0_17] : memref<16x128xf32, #tpu.memory_space<vmem>>, vector<1x128xf32>
    tpu.vector_store %arg11[%c3_16, %c0_17], %22 {strides = array<i32>} : memref<16x128xf32, #tpu.memory_space<vmem>>, vector<1x128xf32>,
    %c4 = arith.constant 4 : index
    %24 = memref.load %arg0[%c4] : memref<16xi32, #tpu.memory_space<smem>>
    %c0_i32_18 = arith.constant 0 : i32
    %25 = arith.maxsi %24, %c0_i32_18 : i32
    %c15_i32_19 = arith.constant 15 : i32
    %26 = arith.minsi %25, %c15_i32_19 : i32
    %27 = arith.index_cast %26 : i32 to index
    %c0_20 = arith.constant 0 : index
    %28 = vector.load %arg4[%27, %c0_20] : memref<16x128xf32, #tpu.memory_space<vmem>>, vector<1x128xf32>
    %c4_21 = arith.constant 4 : index
    %c0_22 = arith.constant 0 : index
    %29 = vector.load %arg11[%c4_21, %c0_22] : memref<16x128xf32, #tpu.memory_space<vmem>>, vector<1x128xf32>
    tpu.vector_store %arg11[%c4_21, %c0_22], %28 {strides = array<i32>} : memref<16x128xf32, #tpu.memory_space<vmem>>, vector<1x128xf32>,
    %c5 = arith.constant 5 : index
    %30 = memref.load %arg0[%c5] : memref<16xi32, #tpu.memory_space<smem>>
    %c0_i32_23 = arith.constant 0 : i32
    %31 = arith.maxsi %30, %c0_i32_23 : i32
    %c15_i32_24 = arith.constant 15 : i32
    %32 = arith.minsi %31, %c15_i32_24 : i32
    %33 = arith.index_cast %32 : i32 to index
    %c0_25 = arith.constant 0 : index
    %34 = vector.load %arg4[%33, %c0_25] : memref<16x128xf32, #tpu.memory_space<vmem>>, vector<1x128xf32>
    %c5_26 = arith.constant 5 : index
    %c0_27 = arith.constant 0 : index
    %35 = vector.load %arg11[%c5_26, %c0_27] : memref<16x128xf32, #tpu.memory_space<vmem>>, vector<1x128xf32>
    tpu.vector_store %arg11[%c5_26, %c0_27], %34 {strides = array<i32>} : memref<16x128xf32, #tpu.memory_space<vmem>>, vector<1x128xf32>,
    %c6 = arith.constant 6 : index
    %36 = memref.load %arg0[%c6] : memref<16xi32, #tpu.memory_space<smem>>
    %c0_i32_28 = arith.constant 0 : i32
    %37 = arith.maxsi %36, %c0_i32_28 : i32
    %c15_i32_29 = arith.constant 15 : i32
    %38 = arith.minsi %37, %c15_i32_29 : i32
    %39 = arith.index_cast %38 : i32 to index
    %c0_30 = arith.constant 0 : index
    %40 = vector.load %arg4[%39, %c0_30] : memref<16x128xf32, #tpu.memory_space<vmem>>, vector<1x128xf32>
    %c6_31 = arith.constant 6 : index
    %c0_32 = arith.constant 0 : index
    %41 = vector.load %arg11[%c6_31, %c0_32] : memref<16x128xf32, #tpu.memory_space<vmem>>, vector<1x128xf32>
    tpu.vector_store %arg11[%c6_31, %c0_32], %40 {strides = array<i32>} : memref<16x128xf32, #tpu.memory_space<vmem>>, vector<1x128xf32>,
    %c7 = arith.constant 7 : index
    %42 = memref.load %arg0[%c7] : memref<16xi32, #tpu.memory_space<smem>>
    %c0_i32_33 = arith.constant 0 : i32
    %43 = arith.maxsi %42, %c0_i32_33 : i32
    %c15_i32_34 = arith.constant 15 : i32
    %44 = arith.minsi %43, %c15_i32_34 : i32
    %45 = arith.index_cast %44 : i32 to index
    %c0_35 = arith.constant 0 : index
    %46 = vector.load %arg4[%45, %c0_35] : memref<16x128xf32, #tpu.memory_space<vmem>>, vector<1x128xf32>
    %c7_36 = arith.constant 7 : index
    %c0_37 = arith.constant 0 : index
    %47 = vector.load %arg11[%c7_36, %c0_37] : memref<16x128xf32, #tpu.memory_space<vmem>>, vector<1x128xf32>
    tpu.vector_store %arg11[%c7_36, %c0_37], %46 {strides = array<i32>} : memref<16x128xf32, #tpu.memory_space<vmem>>, vector<1x128xf32>,
    %c8 = arith.constant 8 : index
    %48 = memref.load %arg0[%c8] : memref<16xi32, #tpu.memory_space<smem>>
    %c0_i32_38 = arith.constant 0 : i32
    %49 = arith.maxsi %48, %c0_i32_38 : i32
    %c15_i32_39 = arith.constant 15 : i32
    %50 = arith.minsi %49, %c15_i32_39 : i32
    %51 = arith.index_cast %50 : i32 to index
    %c0_40 = arith.constant 0 : index
    %52 = vector.load %arg4[%51, %c0_40] : memref<16x128xf32, #tpu.memory_space<vmem>>, vector<1x128xf32>
    %c8_41 = arith.constant 8 : index
    %c0_42 = arith.constant 0 : index
    %53 = vector.load %arg11[%c8_41, %c0_42] : memref<16x128xf32, #tpu.memory_space<vmem>>, vector<1x128xf32>
    tpu.vector_store %arg11[%c8_41, %c0_42], %52 {strides = array<i32>} : memref<16x128xf32, #tpu.memory_space<vmem>>, vector<1x128xf32>,
    %c9 = arith.constant 9 : index
    %54 = memref.load %arg0[%c9] : memref<16xi32, #tpu.memory_space<smem>>
    %c0_i32_43 = arith.constant 0 : i32
    %55 = arith.maxsi %54, %c0_i32_43 : i32
    %c15_i32_44 = arith.constant 15 : i32
    %56 = arith.minsi %55, %c15_i32_44 : i32
    %57 = arith.index_cast %56 : i32 to index
    %c0_45 = arith.constant 0 : index
    %58 = vector.load %arg4[%57, %c0_45] : memref<16x128xf32, #tpu.memory_space<vmem>>, vector<1x128xf32>
    %c9_46 = arith.constant 9 : index
    %c0_47 = arith.constant 0 : index
    %59 = vector.load %arg11[%c9_46, %c0_47] : memref<16x128xf32, #tpu.memory_space<vmem>>, vector<1x128xf32>
    tpu.vector_store %arg11[%c9_46, %c0_47], %58 {strides = array<i32>} : memref<16x128xf32, #tpu.memory_space<vmem>>, vector<1x128xf32>,
    %c10 = arith.constant 10 : index
    %60 = memref.load %arg0[%c10] : memref<16xi32, #tpu.memory_space<smem>>
    %c0_i32_48 = arith.constant 0 : i32
    %61 = arith.maxsi %60, %c0_i32_48 : i32
    %c15_i32_49 = arith.constant 15 : i32
    %62 = arith.minsi %61, %c15_i32_49 : i32
    %63 = arith.index_cast %62 : i32 to index
    %c0_50 = arith.constant 0 : index
    %64 = vector.load %arg4[%63, %c0_50] : memref<16x128xf32, #tpu.memory_space<vmem>>, vector<1x128xf32>
    %c10_51 = arith.constant 10 : index
    %c0_52 = arith.constant 0 : index
    %65 = vector.load %arg11[%c10_51, %c0_52] : memref<16x128xf32, #tpu.memory_space<vmem>>, vector<1x128xf32>
    tpu.vector_store %arg11[%c10_51, %c0_52], %64 {strides = array<i32>} : memref<16x128xf32, #tpu.memory_space<vmem>>, vector<1x128xf32>,
    %c11 = arith.constant 11 : index
    %66 = memref.load %arg0[%c11] : memref<16xi32, #tpu.memory_space<smem>>
    %c0_i32_53 = arith.constant 0 : i32
    %67 = arith.maxsi %66, %c0_i32_53 : i32
    %c15_i32_54 = arith.constant 15 : i32
    %68 = arith.minsi %67, %c15_i32_54 : i32
    %69 = arith.index_cast %68 : i32 to index
    %c0_55 = arith.constant 0 : index
    %70 = vector.load %arg4[%69, %c0_55] : memref<16x128xf32, #tpu.memory_space<vmem>>, vector<1x128xf32>
    %c11_56 = arith.constant 11 : index
    %c0_57 = arith.constant 0 : index
    %71 = vector.load %arg11[%c11_56, %c0_57] : memref<16x128xf32, #tpu.memory_space<vmem>>, vector<1x128xf32>
    tpu.vector_store %arg11[%c11_56, %c0_57], %70 {strides = array<i32>} : memref<16x128xf32, #tpu.memory_space<vmem>>, vector<1x128xf32>,
    %c12 = arith.constant 12 : index
    %72 = memref.load %arg0[%c12] : memref<16xi32, #tpu.memory_space<smem>>
    %c0_i32_58 = arith.constant 0 : i32
    %73 = arith.maxsi %72, %c0_i32_58 : i32
    %c15_i32_59 = arith.constant 15 : i32
    %74 = arith.minsi %73, %c15_i32_59 : i32
    %75 = arith.index_cast %74 : i32 to index
    %c0_60 = arith.constant 0 : index
    %76 = vector.load %arg4[%75, %c0_60] : memref<16x128xf32, #tpu.memory_space<vmem>>, vector<1x128xf32>
    %c12_61 = arith.constant 12 : index
    %c0_62 = arith.constant 0 : index
    %77 = vector.load %arg11[%c12_61, %c0_62] : memref<16x128xf32, #tpu.memory_space<vmem>>, vector<1x128xf32>
    tpu.vector_store %arg11[%c12_61, %c0_62], %76 {strides = array<i32>} : memref<16x128xf32, #tpu.memory_space<vmem>>, vector<1x128xf32>,
    %c13 = arith.constant 13 : index
    %78 = memref.load %arg0[%c13] : memref<16xi32, #tpu.memory_space<smem>>
    %c0_i32_63 = arith.constant 0 : i32
    %79 = arith.maxsi %78, %c0_i32_63 : i32
    %c15_i32_64 = arith.constant 15 : i32
    %80 = arith.minsi %79, %c15_i32_64 : i32
    %81 = arith.index_cast %80 : i32 to index
    %c0_65 = arith.constant 0 : index
    %82 = vector.load %arg4[%81, %c0_65] : memref<16x128xf32, #tpu.memory_space<vmem>>, vector<1x128xf32>
    %c13_66 = arith.constant 13 : index
    %c0_67 = arith.constant 0 : index
    %83 = vector.load %arg11[%c13_66, %c0_67] : memref<16x128xf32, #tpu.memory_space<vmem>>, vector<1x128xf32>
    tpu.vector_store %arg11[%c13_66, %c0_67], %82 {strides = array<i32>} : memref<16x128xf32, #tpu.memory_space<vmem>>, vector<1x128xf32>,
    %c14 = arith.constant 14 : index
    %84 = memref.load %arg0[%c14] : memref<16xi32, #tpu.memory_space<smem>>
    %c0_i32_68 = arith.constant 0 : i32
    %85 = arith.maxsi %84, %c0_i32_68 : i32
    %c15_i32_69 = arith.constant 15 : i32
    %86 = arith.minsi %85, %c15_i32_69 : i32
    %87 = arith.index_cast %86 : i32 to index
    %c0_70 = arith.constant 0 : index
    %88 = vector.load %arg4[%87, %c0_70] : memref<16x128xf32, #tpu.memory_space<vmem>>, vector<1x128xf32>
    %c14_71 = arith.constant 14 : index
    %c0_72 = arith.constant 0 : index
    %89 = vector.load %arg11[%c14_71, %c0_72] : memref<16x128xf32, #tpu.memory_space<vmem>>, vector<1x128xf32>
    tpu.vector_store %arg11[%c14_71, %c0_72], %88 {strides = array<i32>} : memref<16x128xf32, #tpu.memory_space<vmem>>, vector<1x128xf32>,
    %c15 = arith.constant 15 : index
    %90 = memref.load %arg0[%c15] : memref<16xi32, #tpu.memory_space<smem>>
    %c0_i32_73 = arith.constant 0 : i32
    %91 = arith.maxsi %90, %c0_i32_73 : i32
    %c15_i32_74 = arith.constant 15 : i32
    %92 = arith.minsi %91, %c15_i32_74 : i32
    %93 = arith.index_cast %92 : i32 to index
    %c0_75 = arith.constant 0 : index
    %94 = vector.load %arg4[%93, %c0_75] : memref<16x128xf32, #tpu.memory_space<vmem>>, vector<1x128xf32>
    %c15_76 = arith.constant 15 : index
    %c0_77 = arith.constant 0 : index
    %95 = vector.load %arg11[%c15_76, %c0_77] : memref<16x128xf32, #tpu.memory_space<vmem>>, vector<1x128xf32>
    tpu.vector_store %arg11[%c15_76, %c0_77], %94 {strides = array<i32>} : memref<16x128xf32, #tpu.memory_space<vmem>>, vector<1x128xf32>,
    %c0_78 = arith.constant 0 : index
    %c0_79 = arith.constant 0 : index
    %96 = vector.load %arg11[%c0_78, %c0_79] : memref<16x128xf32, #tpu.memory_space<vmem>>, vector<16x128xf32>
    %97 = arith.truncf %96 : vector<16x128xf32> to vector<16x128xbf16>
    %c0_80 = arith.constant 0 : index
    %c0_81 = arith.constant 0 : index
    %98 = vector.load %arg5[%c0_80, %c0_81] : memref<128x384xbf16, #tpu.memory_space<vmem>>, vector<128x384xbf16>
    %cst = arith.constant dense<0.000000e+00> : vector<16x384xf32>
    %99 = tpu.matmul %97, %98, %cst {dimension_numbers = #tpu.dot_dimension_numbers<[1], [0], [0], [1], [0, 0, 1, 1], [], []>} : vector<16x128xbf16>, vector<128x384xbf16>, vector<16x384xf32> -> vector<16x384xf32>
    %c0_82 = arith.constant 0 : index
    %c0_83 = arith.constant 0 : index
    %100 = vector.load %arg7[%c0_82, %c0_83] : memref<1x384xf32, #tpu.memory_space<vmem>>, vector<1x384xf32>
    %101 = vector.broadcast %100 : vector<1x384xf32> to vector<16x384xf32>
    %102 = arith.addf %99, %101 : vector<16x384xf32>
    %c0_84 = arith.constant 0 : index
    %c0_85 = arith.constant 0 : index
    %103 = vector.load %arg6[%c0_84, %c0_85] : memref<128x384xbf16, #tpu.memory_space<vmem>>, vector<128x384xbf16>
    %c0_86 = arith.constant 0 : index
    %c0_87 = arith.constant 0 : index
    %104 = vector.load %arg8[%c0_86, %c0_87] : memref<1x128xf32, #tpu.memory_space<vmem>>, vector<1x128xf32>
    %105 = vector.shape_cast %104 : vector<1x128xf32> to vector<1x128xf32>
    %106 = vector.broadcast %105 : vector<1x128xf32> to vector<2x128xf32>
    %c0_88 = arith.constant 0 : index
    %c0_89 = arith.constant 0 : index
    %107 = vector.load %arg1[%c0_88, %c0_89] : memref<2x128xf32, #tpu.memory_space<vmem>>, vector<2x128xf32>
    %108 = vector.extract_strided_slice %102 {offsets = [0, 0], sizes = [2, 384], strides = [1, 1]} : vector<16x384xf32> to vector<2x384xf32>
    %109 = arith.truncf %107 : vector<2x128xf32> to vector<2x128xbf16>
    %cst_90 = arith.constant dense<0.000000e+00> : vector<2x384xf32>
    %110 = tpu.matmul %109, %103, %cst_90 {dimension_numbers = #tpu.dot_dimension_numbers<[1], [0], [0], [1], [0, 0, 1, 1], [], []>} : vector<2x128xbf16>, vector<128x384xbf16>, vector<2x384xf32> -> vector<2x384xf32>
    %111 = vector.extract_strided_slice %108 {offsets = [0, 0], sizes = [2, 128], strides = [1, 1]} : vector<2x384xf32> to vector<2x128xf32>
    %112 = vector.extract_strided_slice %110 {offsets = [0, 0], sizes = [2, 128], strides = [1, 1]} : vector<2x384xf32> to vector<2x128xf32>
    %113 = arith.addf %111, %112 : vector<2x128xf32>
    %114 = arith.negf %113 : vector<2x128xf32>
    %115 = math.exp %114 : vector<2x128xf32>
    %cst_91 = arith.constant 1.000000e+00 : f32
    %116 = vector.broadcast %cst_91 : f32 to vector<2x128xf32>
    %117 = arith.addf %116, %115 : vector<2x128xf32>
    %118 = arith.divf %116, %117 : vector<2x128xf32>
    %119 = vector.extract_strided_slice %108 {offsets = [0, 128], sizes = [2, 128], strides = [1, 1]} : vector<2x384xf32> to vector<2x128xf32>
    %120 = vector.extract_strided_slice %110 {offsets = [0, 128], sizes = [2, 128], strides = [1, 1]} : vector<2x384xf32> to vector<2x128xf32>
    %121 = arith.addf %119, %120 : vector<2x128xf32>
    %122 = arith.negf %121 : vector<2x128xf32>
    %123 = math.exp %122 : vector<2x128xf32>
    %cst_92 = arith.constant 1.000000e+00 : f32
    %124 = vector.broadcast %cst_92 : f32 to vector<2x128xf32>
    %125 = arith.addf %124, %123 : vector<2x128xf32>
    %126 = arith.divf %124, %125 : vector<2x128xf32>
    %127 = vector.extract_strided_slice %108 {offsets = [0, 256], sizes = [2, 128], strides = [1, 1]} : vector<2x384xf32> to vector<2x128xf32>
    %128 = vector.extract_strided_slice %110 {offsets = [0, 256], sizes = [2, 128], strides = [1, 1]} : vector<2x384xf32> to vector<2x128xf32>
    %129 = arith.addf %128, %106 : vector<2x128xf32>
    %130 = arith.mulf %118, %129 : vector<2x128xf32>
    %131 = arith.addf %127, %130 : vector<2x128xf32>
    %132 = math.tanh %131 : vector<2x128xf32>
    %cst_93 = arith.constant 1.000000e+00 : f32
    %133 = vector.broadcast %cst_93 : f32 to vector<2x128xf32>
    %134 = arith.subf %133, %126 : vector<2x128xf32>
    %135 = arith.mulf %134, %132 : vector<2x128xf32>
    %136 = arith.mulf %126, %107 : vector<2x128xf32>
    %137 = arith.addf %135, %136 : vector<2x128xf32>
    %c0_94 = arith.constant 0 : index
    %c0_95 = arith.constant 0 : index
    %c0_96 = arith.constant 0 : index
    %138 = vector.load %arg12[%c0_94, %c0_95, %c0_96] : memref<2x8x128xf32, #tpu.memory_space<vmem>>, vector<2x1x128xf32>
    %139 = vector.shape_cast %138 : vector<2x1x128xf32> to vector<2x128xf32>
    %140 = vector.shape_cast %137 : vector<2x128xf32> to vector<2x1x128xf32>
    tpu.vector_store %arg12[%c0_94, %c0_95, %c0_96], %140 {strides = array<i32>} : memref<2x8x128xf32, #tpu.memory_space<vmem>>, vector<2x1x128xf32>,
    %141 = vector.extract_strided_slice %102 {offsets = [2, 0], sizes = [2, 384], strides = [1, 1]} : vector<16x384xf32> to vector<2x384xf32>
    %142 = arith.truncf %137 : vector<2x128xf32> to vector<2x128xbf16>
    %cst_97 = arith.constant dense<0.000000e+00> : vector<2x384xf32>
    %143 = tpu.matmul %142, %103, %cst_97 {dimension_numbers = #tpu.dot_dimension_numbers<[1], [0], [0], [1], [0, 0, 1, 1], [], []>} : vector<2x128xbf16>, vector<128x384xbf16>, vector<2x384xf32> -> vector<2x384xf32>
    %144 = vector.extract_strided_slice %141 {offsets = [0, 0], sizes = [2, 128], strides = [1, 1]} : vector<2x384xf32> to vector<2x128xf32>
    %145 = vector.extract_strided_slice %143 {offsets = [0, 0], sizes = [2, 128], strides = [1, 1]} : vector<2x384xf32> to vector<2x128xf32>
    %146 = arith.addf %144, %145 : vector<2x128xf32>
    %147 = arith.negf %146 : vector<2x128xf32>
    %148 = math.exp %147 : vector<2x128xf32>
    %cst_98 = arith.constant 1.000000e+00 : f32
    %149 = vector.broadcast %cst_98 : f32 to vector<2x128xf32>
    %150 = arith.addf %149, %148 : vector<2x128xf32>
    %151 = arith.divf %149, %150 : vector<2x128xf32>
    %152 = vector.extract_strided_slice %141 {offsets = [0, 128], sizes = [2, 128], strides = [1, 1]} : vector<2x384xf32> to vector<2x128xf32>
    %153 = vector.extract_strided_slice %143 {offsets = [0, 128], sizes = [2, 128], strides = [1, 1]} : vector<2x384xf32> to vector<2x128xf32>
    %154 = arith.addf %152, %153 : vector<2x128xf32>
    %155 = arith.negf %154 : vector<2x128xf32>
    %156 = math.exp %155 : vector<2x128xf32>
    %cst_99 = arith.constant 1.000000e+00 : f32
    %157 = vector.broadcast %cst_99 : f32 to vector<2x128xf32>
    %158 = arith.addf %157, %156 : vector<2x128xf32>
    %159 = arith.divf %157, %158 : vector<2x128xf32>
    %160 = vector.extract_strided_slice %141 {offsets = [0, 256], sizes = [2, 128], strides = [1, 1]} : vector<2x384xf32> to vector<2x128xf32>
    %161 = vector.extract_strided_slice %143 {offsets = [0, 256], sizes = [2, 128], strides = [1, 1]} : vector<2x384xf32> to vector<2x128xf32>
    %162 = arith.addf %161, %106 : vector<2x128xf32>
    %163 = arith.mulf %151, %162 : vector<2x128xf32>
    %164 = arith.addf %160, %163 : vector<2x128xf32>
    %165 = math.tanh %164 : vector<2x128xf32>
    %cst_100 = arith.constant 1.000000e+00 : f32
    %166 = vector.broadcast %cst_100 : f32 to vector<2x128xf32>
    %167 = arith.subf %166, %159 : vector<2x128xf32>
    %168 = arith.mulf %167, %165 : vector<2x128xf32>
    %169 = arith.mulf %159, %137 : vector<2x128xf32>
    %170 = arith.addf %168, %169 : vector<2x128xf32>
    %c0_101 = arith.constant 0 : index
    %c1_102 = arith.constant 1 : index
    %c0_103 = arith.constant 0 : index
    %171 = vector.load %arg12[%c0_101, %c1_102, %c0_103] : memref<2x8x128xf32, #tpu.memory_space<vmem>>, vector<2x1x128xf32>
    %172 = vector.shape_cast %171 : vector<2x1x128xf32> to vector<2x128xf32>
    %173 = vector.shape_cast %170 : vector<2x128xf32> to vector<2x1x128xf32>
    tpu.vector_store %arg12[%c0_101, %c1_102, %c0_103], %173 {strides = array<i32>} : memref<2x8x128xf32, #tpu.memory_space<vmem>>, vector<2x1x128xf32>,
    %174 = vector.extract_strided_slice %102 {offsets = [4, 0], sizes = [2, 384], strides = [1, 1]} : vector<16x384xf32> to vector<2x384xf32>
    %175 = arith.truncf %170 : vector<2x128xf32> to vector<2x128xbf16>
    %cst_104 = arith.constant dense<0.000000e+00> : vector<2x384xf32>
    %176 = tpu.matmul %175, %103, %cst_104 {dimension_numbers = #tpu.dot_dimension_numbers<[1], [0], [0], [1], [0, 0, 1, 1], [], []>} : vector<2x128xbf16>, vector<128x384xbf16>, vector<2x384xf32> -> vector<2x384xf32>
    %177 = vector.extract_strided_slice %174 {offsets = [0, 0], sizes = [2, 128], strides = [1, 1]} : vector<2x384xf32> to vector<2x128xf32>
    %178 = vector.extract_strided_slice %176 {offsets = [0, 0], sizes = [2, 128], strides = [1, 1]} : vector<2x384xf32> to vector<2x128xf32>
    %179 = arith.addf %177, %178 : vector<2x128xf32>
    %180 = arith.negf %179 : vector<2x128xf32>
    %181 = math.exp %180 : vector<2x128xf32>
    %cst_105 = arith.constant 1.000000e+00 : f32
    %182 = vector.broadcast %cst_105 : f32 to vector<2x128xf32>
    %183 = arith.addf %182, %181 : vector<2x128xf32>
    %184 = arith.divf %182, %183 : vector<2x128xf32>
    %185 = vector.extract_strided_slice %174 {offsets = [0, 128], sizes = [2, 128], strides = [1, 1]} : vector<2x384xf32> to vector<2x128xf32>
    %186 = vector.extract_strided_slice %176 {offsets = [0, 128], sizes = [2, 128], strides = [1, 1]} : vector<2x384xf32> to vector<2x128xf32>
    %187 = arith.addf %185, %186 : vector<2x128xf32>
    %188 = arith.negf %187 : vector<2x128xf32>
    %189 = math.exp %188 : vector<2x128xf32>
    %cst_106 = arith.constant 1.000000e+00 : f32
    %190 = vector.broadcast %cst_106 : f32 to vector<2x128xf32>
    %191 = arith.addf %190, %189 : vector<2x128xf32>
    %192 = arith.divf %190, %191 : vector<2x128xf32>
    %193 = vector.extract_strided_slice %174 {offsets = [0, 256], sizes = [2, 128], strides = [1, 1]} : vector<2x384xf32> to vector<2x128xf32>
    %194 = vector.extract_strided_slice %176 {offsets = [0, 256], sizes = [2, 128], strides = [1, 1]} : vector<2x384xf32> to vector<2x128xf32>
    %195 = arith.addf %194, %106 : vector<2x128xf32>
    %196 = arith.mulf %184, %195 : vector<2x128xf32>
    %197 = arith.addf %193, %196 : vector<2x128xf32>
    %198 = math.tanh %197 : vector<2x128xf32>
    %cst_107 = arith.constant 1.000000e+00 : f32
    %199 = vector.broadcast %cst_107 : f32 to vector<2x128xf32>
    %200 = arith.subf %199, %192 : vector<2x128xf32>
    %201 = arith.mulf %200, %198 : vector<2x128xf32>
    %202 = arith.mulf %192, %170 : vector<2x128xf32>
    %203 = arith.addf %201, %202 : vector<2x128xf32>
    %c0_108 = arith.constant 0 : index
    %c2_109 = arith.constant 2 : index
    %c0_110 = arith.constant 0 : index
    %204 = vector.load %arg12[%c0_108, %c2_109, %c0_110] : memref<2x8x128xf32, #tpu.memory_space<vmem>>, vector<2x1x128xf32>
    %205 = vector.shape_cast %204 : vector<2x1x128xf32> to vector<2x128xf32>
    %206 = vector.shape_cast %203 : vector<2x128xf32> to vector<2x1x128xf32>
    tpu.vector_store %arg12[%c0_108, %c2_109, %c0_110], %206 {strides = array<i32>} : memref<2x8x128xf32, #tpu.memory_space<vmem>>, vector<2x1x128xf32>,
    %207 = vector.extract_strided_slice %102 {offsets = [6, 0], sizes = [2, 384], strides = [1, 1]} : vector<16x384xf32> to vector<2x384xf32>
    %208 = arith.truncf %203 : vector<2x128xf32> to vector<2x128xbf16>
    %cst_111 = arith.constant dense<0.000000e+00> : vector<2x384xf32>
    %209 = tpu.matmul %208, %103, %cst_111 {dimension_numbers = #tpu.dot_dimension_numbers<[1], [0], [0], [1], [0, 0, 1, 1], [], []>} : vector<2x128xbf16>, vector<128x384xbf16>, vector<2x384xf32> -> vector<2x384xf32>
    %210 = vector.extract_strided_slice %207 {offsets = [0, 0], sizes = [2, 128], strides = [1, 1]} : vector<2x384xf32> to vector<2x128xf32>
    %211 = vector.extract_strided_slice %209 {offsets = [0, 0], sizes = [2, 128], strides = [1, 1]} : vector<2x384xf32> to vector<2x128xf32>
    %212 = arith.addf %210, %211 : vector<2x128xf32>
    %213 = arith.negf %212 : vector<2x128xf32>
    %214 = math.exp %213 : vector<2x128xf32>
    %cst_112 = arith.constant 1.000000e+00 : f32
    %215 = vector.broadcast %cst_112 : f32 to vector<2x128xf32>
    %216 = arith.addf %215, %214 : vector<2x128xf32>
    %217 = arith.divf %215, %216 : vector<2x128xf32>
    %218 = vector.extract_strided_slice %207 {offsets = [0, 128], sizes = [2, 128], strides = [1, 1]} : vector<2x384xf32> to vector<2x128xf32>
    %219 = vector.extract_strided_slice %209 {offsets = [0, 128], sizes = [2, 128], strides = [1, 1]} : vector<2x384xf32> to vector<2x128xf32>
    %220 = arith.addf %218, %219 : vector<2x128xf32>
    %221 = arith.negf %220 : vector<2x128xf32>
    %222 = math.exp %221 : vector<2x128xf32>
    %cst_113 = arith.constant 1.000000e+00 : f32
    %223 = vector.broadcast %cst_113 : f32 to vector<2x128xf32>
    %224 = arith.addf %223, %222 : vector<2x128xf32>
    %225 = arith.divf %223, %224 : vector<2x128xf32>
    %226 = vector.extract_strided_slice %207 {offsets = [0, 256], sizes = [2, 128], strides = [1, 1]} : vector<2x384xf32> to vector<2x128xf32>
    %227 = vector.extract_strided_slice %209 {offsets = [0, 256], sizes = [2, 128], strides = [1, 1]} : vector<2x384xf32> to vector<2x128xf32>
    %228 = arith.addf %227, %106 : vector<2x128xf32>
    %229 = arith.mulf %217, %228 : vector<2x128xf32>
    %230 = arith.addf %226, %229 : vector<2x128xf32>
    %231 = math.tanh %230 : vector<2x128xf32>
    %cst_114 = arith.constant 1.000000e+00 : f32
    %232 = vector.broadcast %cst_114 : f32 to vector<2x128xf32>
    %233 = arith.subf %232, %225 : vector<2x128xf32>
    %234 = arith.mulf %233, %231 : vector<2x128xf32>
    %235 = arith.mulf %225, %203 : vector<2x128xf32>
    %236 = arith.addf %234, %235 : vector<2x128xf32>
    %c0_115 = arith.constant 0 : index
    %c3_116 = arith.constant 3 : index
    %c0_117 = arith.constant 0 : index
    %237 = vector.load %arg12[%c0_115, %c3_116, %c0_117] : memref<2x8x128xf32, #tpu.memory_space<vmem>>, vector<2x1x128xf32>
    %238 = vector.shape_cast %237 : vector<2x1x128xf32> to vector<2x128xf32>
    %239 = vector.shape_cast %236 : vector<2x128xf32> to vector<2x1x128xf32>
    tpu.vector_store %arg12[%c0_115, %c3_116, %c0_117], %239 {strides = array<i32>} : memref<2x8x128xf32, #tpu.memory_space<vmem>>, vector<2x1x128xf32>,
    %240 = vector.extract_strided_slice %102 {offsets = [8, 0], sizes = [2, 384], strides = [1, 1]} : vector<16x384xf32> to vector<2x384xf32>
    %241 = arith.truncf %236 : vector<2x128xf32> to vector<2x128xbf16>
    %cst_118 = arith.constant dense<0.000000e+00> : vector<2x384xf32>
    %242 = tpu.matmul %241, %103, %cst_118 {dimension_numbers = #tpu.dot_dimension_numbers<[1], [0], [0], [1], [0, 0, 1, 1], [], []>} : vector<2x128xbf16>, vector<128x384xbf16>, vector<2x384xf32> -> vector<2x384xf32>
    %243 = vector.extract_strided_slice %240 {offsets = [0, 0], sizes = [2, 128], strides = [1, 1]} : vector<2x384xf32> to vector<2x128xf32>
    %244 = vector.extract_strided_slice %242 {offsets = [0, 0], sizes = [2, 128], strides = [1, 1]} : vector<2x384xf32> to vector<2x128xf32>
    %245 = arith.addf %243, %244 : vector<2x128xf32>
    %246 = arith.negf %245 : vector<2x128xf32>
    %247 = math.exp %246 : vector<2x128xf32>
    %cst_119 = arith.constant 1.000000e+00 : f32
    %248 = vector.broadcast %cst_119 : f32 to vector<2x128xf32>
    %249 = arith.addf %248, %247 : vector<2x128xf32>
    %250 = arith.divf %248, %249 : vector<2x128xf32>
    %251 = vector.extract_strided_slice %240 {offsets = [0, 128], sizes = [2, 128], strides = [1, 1]} : vector<2x384xf32> to vector<2x128xf32>
    %252 = vector.extract_strided_slice %242 {offsets = [0, 128], sizes = [2, 128], strides = [1, 1]} : vector<2x384xf32> to vector<2x128xf32>
    %253 = arith.addf %251, %252 : vector<2x128xf32>
    %254 = arith.negf %253 : vector<2x128xf32>
    %255 = math.exp %254 : vector<2x128xf32>
    %cst_120 = arith.constant 1.000000e+00 : f32
    %256 = vector.broadcast %cst_120 : f32 to vector<2x128xf32>
    %257 = arith.addf %256, %255 : vector<2x128xf32>
    %258 = arith.divf %256, %257 : vector<2x128xf32>
    %259 = vector.extract_strided_slice %240 {offsets = [0, 256], sizes = [2, 128], strides = [1, 1]} : vector<2x384xf32> to vector<2x128xf32>
    %260 = vector.extract_strided_slice %242 {offsets = [0, 256], sizes = [2, 128], strides = [1, 1]} : vector<2x384xf32> to vector<2x128xf32>
    %261 = arith.addf %260, %106 : vector<2x128xf32>
    %262 = arith.mulf %250, %261 : vector<2x128xf32>
    %263 = arith.addf %259, %262 : vector<2x128xf32>
    %264 = math.tanh %263 : vector<2x128xf32>
    %cst_121 = arith.constant 1.000000e+00 : f32
    %265 = vector.broadcast %cst_121 : f32 to vector<2x128xf32>
    %266 = arith.subf %265, %258 : vector<2x128xf32>
    %267 = arith.mulf %266, %264 : vector<2x128xf32>
    %268 = arith.mulf %258, %236 : vector<2x128xf32>
    %269 = arith.addf %267, %268 : vector<2x128xf32>
    %c0_122 = arith.constant 0 : index
    %c4_123 = arith.constant 4 : index
    %c0_124 = arith.constant 0 : index
    %270 = vector.load %arg12[%c0_122, %c4_123, %c0_124] : memref<2x8x128xf32, #tpu.memory_space<vmem>>, vector<2x1x128xf32>
    %271 = vector.shape_cast %270 : vector<2x1x128xf32> to vector<2x128xf32>
    %272 = vector.shape_cast %269 : vector<2x128xf32> to vector<2x1x128xf32>
    tpu.vector_store %arg12[%c0_122, %c4_123, %c0_124], %272 {strides = array<i32>} : memref<2x8x128xf32, #tpu.memory_space<vmem>>, vector<2x1x128xf32>,
    %273 = vector.extract_strided_slice %102 {offsets = [10, 0], sizes = [2, 384], strides = [1, 1]} : vector<16x384xf32> to vector<2x384xf32>
    %274 = arith.truncf %269 : vector<2x128xf32> to vector<2x128xbf16>
    %cst_125 = arith.constant dense<0.000000e+00> : vector<2x384xf32>
    %275 = tpu.matmul %274, %103, %cst_125 {dimension_numbers = #tpu.dot_dimension_numbers<[1], [0], [0], [1], [0, 0, 1, 1], [], []>} : vector<2x128xbf16>, vector<128x384xbf16>, vector<2x384xf32> -> vector<2x384xf32>
    %276 = vector.extract_strided_slice %273 {offsets = [0, 0], sizes = [2, 128], strides = [1, 1]} : vector<2x384xf32> to vector<2x128xf32>
    %277 = vector.extract_strided_slice %275 {offsets = [0, 0], sizes = [2, 128], strides = [1, 1]} : vector<2x384xf32> to vector<2x128xf32>
    %278 = arith.addf %276, %277 : vector<2x128xf32>
    %279 = arith.negf %278 : vector<2x128xf32>
    %280 = math.exp %279 : vector<2x128xf32>
    %cst_126 = arith.constant 1.000000e+00 : f32
    %281 = vector.broadcast %cst_126 : f32 to vector<2x128xf32>
    %282 = arith.addf %281, %280 : vector<2x128xf32>
    %283 = arith.divf %281, %282 : vector<2x128xf32>
    %284 = vector.extract_strided_slice %273 {offsets = [0, 128], sizes = [2, 128], strides = [1, 1]} : vector<2x384xf32> to vector<2x128xf32>
    %285 = vector.extract_strided_slice %275 {offsets = [0, 128], sizes = [2, 128], strides = [1, 1]} : vector<2x384xf32> to vector<2x128xf32>
    %286 = arith.addf %284, %285 : vector<2x128xf32>
    %287 = arith.negf %286 : vector<2x128xf32>
    %288 = math.exp %287 : vector<2x128xf32>
    %cst_127 = arith.constant 1.000000e+00 : f32
    %289 = vector.broadcast %cst_127 : f32 to vector<2x128xf32>
    %290 = arith.addf %289, %288 : vector<2x128xf32>
    %291 = arith.divf %289, %290 : vector<2x128xf32>
    %292 = vector.extract_strided_slice %273 {offsets = [0, 256], sizes = [2, 128], strides = [1, 1]} : vector<2x384xf32> to vector<2x128xf32>
    %293 = vector.extract_strided_slice %275 {offsets = [0, 256], sizes = [2, 128], strides = [1, 1]} : vector<2x384xf32> to vector<2x128xf32>
    %294 = arith.addf %293, %106 : vector<2x128xf32>
    %295 = arith.mulf %283, %294 : vector<2x128xf32>
    %296 = arith.addf %292, %295 : vector<2x128xf32>
    %297 = math.tanh %296 : vector<2x128xf32>
    %cst_128 = arith.constant 1.000000e+00 : f32
    %298 = vector.broadcast %cst_128 : f32 to vector<2x128xf32>
    %299 = arith.subf %298, %291 : vector<2x128xf32>
    %300 = arith.mulf %299, %297 : vector<2x128xf32>
    %301 = arith.mulf %291, %269 : vector<2x128xf32>
    %302 = arith.addf %300, %301 : vector<2x128xf32>
    %c0_129 = arith.constant 0 : index
    %c5_130 = arith.constant 5 : index
    %c0_131 = arith.constant 0 : index
    %303 = vector.load %arg12[%c0_129, %c5_130, %c0_131] : memref<2x8x128xf32, #tpu.memory_space<vmem>>, vector<2x1x128xf32>
    %304 = vector.shape_cast %303 : vector<2x1x128xf32> to vector<2x128xf32>
    %305 = vector.shape_cast %302 : vector<2x128xf32> to vector<2x1x128xf32>
    tpu.vector_store %arg12[%c0_129, %c5_130, %c0_131], %305 {strides = array<i32>} : memref<2x8x128xf32, #tpu.memory_space<vmem>>, vector<2x1x128xf32>,
    %306 = vector.extract_strided_slice %102 {offsets = [12, 0], sizes = [2, 384], strides = [1, 1]} : vector<16x384xf32> to vector<2x384xf32>
    %307 = arith.truncf %302 : vector<2x128xf32> to vector<2x128xbf16>
    %cst_132 = arith.constant dense<0.000000e+00> : vector<2x384xf32>
    %308 = tpu.matmul %307, %103, %cst_132 {dimension_numbers = #tpu.dot_dimension_numbers<[1], [0], [0], [1], [0, 0, 1, 1], [], []>} : vector<2x128xbf16>, vector<128x384xbf16>, vector<2x384xf32> -> vector<2x384xf32>
    %309 = vector.extract_strided_slice %306 {offsets = [0, 0], sizes = [2, 128], strides = [1, 1]} : vector<2x384xf32> to vector<2x128xf32>
    %310 = vector.extract_strided_slice %308 {offsets = [0, 0], sizes = [2, 128], strides = [1, 1]} : vector<2x384xf32> to vector<2x128xf32>
    %311 = arith.addf %309, %310 : vector<2x128xf32>
    %312 = arith.negf %311 : vector<2x128xf32>
    %313 = math.exp %312 : vector<2x128xf32>
    %cst_133 = arith.constant 1.000000e+00 : f32
    %314 = vector.broadcast %cst_133 : f32 to vector<2x128xf32>
    %315 = arith.addf %314, %313 : vector<2x128xf32>
    %316 = arith.divf %314, %315 : vector<2x128xf32>
    %317 = vector.extract_strided_slice %306 {offsets = [0, 128], sizes = [2, 128], strides = [1, 1]} : vector<2x384xf32> to vector<2x128xf32>
    %318 = vector.extract_strided_slice %308 {offsets = [0, 128], sizes = [2, 128], strides = [1, 1]} : vector<2x384xf32> to vector<2x128xf32>
    %319 = arith.addf %317, %318 : vector<2x128xf32>
    %320 = arith.negf %319 : vector<2x128xf32>
    %321 = math.exp %320 : vector<2x128xf32>
    %cst_134 = arith.constant 1.000000e+00 : f32
    %322 = vector.broadcast %cst_134 : f32 to vector<2x128xf32>
    %323 = arith.addf %322, %321 : vector<2x128xf32>
    %324 = arith.divf %322, %323 : vector<2x128xf32>
    %325 = vector.extract_strided_slice %306 {offsets = [0, 256], sizes = [2, 128], strides = [1, 1]} : vector<2x384xf32> to vector<2x128xf32>
    %326 = vector.extract_strided_slice %308 {offsets = [0, 256], sizes = [2, 128], strides = [1, 1]} : vector<2x384xf32> to vector<2x128xf32>
    %327 = arith.addf %326, %106 : vector<2x128xf32>
    %328 = arith.mulf %316, %327 : vector<2x128xf32>
    %329 = arith.addf %325, %328 : vector<2x128xf32>
    %330 = math.tanh %329 : vector<2x128xf32>
    %cst_135 = arith.constant 1.000000e+00 : f32
    %331 = vector.broadcast %cst_135 : f32 to vector<2x128xf32>
    %332 = arith.subf %331, %324 : vector<2x128xf32>
    %333 = arith.mulf %332, %330 : vector<2x128xf32>
    %334 = arith.mulf %324, %302 : vector<2x128xf32>
    %335 = arith.addf %333, %334 : vector<2x128xf32>
    %c0_136 = arith.constant 0 : index
    %c6_137 = arith.constant 6 : index
    %c0_138 = arith.constant 0 : index
    %336 = vector.load %arg12[%c0_136, %c6_137, %c0_138] : memref<2x8x128xf32, #tpu.memory_space<vmem>>, vector<2x1x128xf32>
    %337 = vector.shape_cast %336 : vector<2x1x128xf32> to vector<2x128xf32>
    %338 = vector.shape_cast %335 : vector<2x128xf32> to vector<2x1x128xf32>
    tpu.vector_store %arg12[%c0_136, %c6_137, %c0_138], %338 {strides = array<i32>} : memref<2x8x128xf32, #tpu.memory_space<vmem>>, vector<2x1x128xf32>,
    %339 = vector.extract_strided_slice %102 {offsets = [14, 0], sizes = [2, 384], strides = [1, 1]} : vector<16x384xf32> to vector<2x384xf32>
    %340 = arith.truncf %335 : vector<2x128xf32> to vector<2x128xbf16>
    %cst_139 = arith.constant dense<0.000000e+00> : vector<2x384xf32>
    %341 = tpu.matmul %340, %103, %cst_139 {dimension_numbers = #tpu.dot_dimension_numbers<[1], [0], [0], [1], [0, 0, 1, 1], [], []>} : vector<2x128xbf16>, vector<128x384xbf16>, vector<2x384xf32> -> vector<2x384xf32>
    %342 = vector.extract_strided_slice %339 {offsets = [0, 0], sizes = [2, 128], strides = [1, 1]} : vector<2x384xf32> to vector<2x128xf32>
    %343 = vector.extract_strided_slice %341 {offsets = [0, 0], sizes = [2, 128], strides = [1, 1]} : vector<2x384xf32> to vector<2x128xf32>
    %344 = arith.addf %342, %343 : vector<2x128xf32>
    %345 = arith.negf %344 : vector<2x128xf32>
    %346 = math.exp %345 : vector<2x128xf32>
    %cst_140 = arith.constant 1.000000e+00 : f32
    %347 = vector.broadcast %cst_140 : f32 to vector<2x128xf32>
    %348 = arith.addf %347, %346 : vector<2x128xf32>
    %349 = arith.divf %347, %348 : vector<2x128xf32>
    %350 = vector.extract_strided_slice %339 {offsets = [0, 128], sizes = [2, 128], strides = [1, 1]} : vector<2x384xf32> to vector<2x128xf32>
    %351 = vector.extract_strided_slice %341 {offsets = [0, 128], sizes = [2, 128], strides = [1, 1]} : vector<2x384xf32> to vector<2x128xf32>
    %352 = arith.addf %350, %351 : vector<2x128xf32>
    %353 = arith.negf %352 : vector<2x128xf32>
    %354 = math.exp %353 : vector<2x128xf32>
    %cst_141 = arith.constant 1.000000e+00 : f32
    %355 = vector.broadcast %cst_141 : f32 to vector<2x128xf32>
    %356 = arith.addf %355, %354 : vector<2x128xf32>
    %357 = arith.divf %355, %356 : vector<2x128xf32>
    %358 = vector.extract_strided_slice %339 {offsets = [0, 256], sizes = [2, 128], strides = [1, 1]} : vector<2x384xf32> to vector<2x128xf32>
    %359 = vector.extract_strided_slice %341 {offsets = [0, 256], sizes = [2, 128], strides = [1, 1]} : vector<2x384xf32> to vector<2x128xf32>
    %360 = arith.addf %359, %106 : vector<2x128xf32>
    %361 = arith.mulf %349, %360 : vector<2x128xf32>
    %362 = arith.addf %358, %361 : vector<2x128xf32>
    %363 = math.tanh %362 : vector<2x128xf32>
    %cst_142 = arith.constant 1.000000e+00 : f32
    %364 = vector.broadcast %cst_142 : f32 to vector<2x128xf32>
    %365 = arith.subf %364, %357 : vector<2x128xf32>
    %366 = arith.mulf %365, %363 : vector<2x128xf32>
    %367 = arith.mulf %357, %335 : vector<2x128xf32>
    %368 = arith.addf %366, %367 : vector<2x128xf32>
    %c0_143 = arith.constant 0 : index
    %c7_144 = arith.constant 7 : index
    %c0_145 = arith.constant 0 : index
    %369 = vector.load %arg12[%c0_143, %c7_144, %c0_145] : memref<2x8x128xf32, #tpu.memory_space<vmem>>, vector<2x1x128xf32>
    %370 = vector.shape_cast %369 : vector<2x1x128xf32> to vector<2x128xf32>
    %371 = vector.shape_cast %368 : vector<2x128xf32> to vector<2x1x128xf32>
    tpu.vector_store %arg12[%c0_143, %c7_144, %c0_145], %371 {strides = array<i32>} : memref<2x8x128xf32, #tpu.memory_space<vmem>>, vector<2x1x128xf32>,
    %c0_146 = arith.constant 0 : index
    %c0_147 = arith.constant 0 : index
    %c0_148 = arith.constant 0 : index
    %372 = vector.load %arg12[%c0_146, %c0_147, %c0_148] : memref<2x8x128xf32, #tpu.memory_space<vmem>>, vector<2x8x128xf32>
    %373 = arith.truncf %372 : vector<2x8x128xf32> to vector<2x8x128xbf16>
    %c0_149 = arith.constant 0 : index
    %c0_150 = arith.constant 0 : index
    %c0_151 = arith.constant 0 : index
    %374 = vector.load %arg9[%c0_149, %c0_150, %c0_151] : memref<2x8x128xbf16, #tpu.memory_space<vmem>>, vector<2x8x128xbf16>
    tpu.vector_store %arg9[%c0_149, %c0_150, %c0_151], %373 {strides = array<i32>} : memref<2x8x128xbf16, #tpu.memory_space<vmem>>, vector<2x8x128xbf16>,
    %c0_152 = arith.constant 0 : index
    %c0_153 = arith.constant 0 : index
    %c0_154 = arith.constant 0 : index
    %375 = vector.load %arg2[%c0_152, %c0_153, %c0_154] : memref<2x16x128xbf16, #tpu.memory_space<vmem>>, vector<2x16x128xbf16>
    "tpu.trace_start"() <{level = 10 : i32, message = "bth,bsh->bts"}> : () -> ()
    %cst_155 = arith.constant dense<0.000000e+00> : vector<2x8x16xf32>
    %376 = tpu.matmul %373, %375, %cst_155 {dimension_numbers = #tpu.dot_dimension_numbers<[2], [2], [1], [1], [0, 0, 0, 1, 1, 1], [0], [0]>} : vector<2x8x128xbf16>, vector<2x16x128xbf16>, vector<2x8x16xf32> -> vector<2x8x16xf32>
    "tpu.trace_stop"() : () -> ()
    %cst_156 = arith.constant 0.176776692 : f32
    %377 = vector.broadcast %cst_156 : f32 to vector<2x8x16xf32>
    %378 = arith.mulf %376, %377 : vector<2x8x16xf32>
    %c0_157 = arith.constant 0 : index
    %c0_158 = arith.constant 0 : index
    %379 = vector.load %arg3[%c0_157, %c0_158] : memref<2x16xf32, #tpu.memory_space<vmem>>, vector<2x16xf32>
    %380 = vector.shape_cast %379 : vector<2x16xf32> to vector<2x1x16xf32>
    %381 = vector.broadcast %380 : vector<2x1x16xf32> to vector<2x8x16xf32>
    %382 = arith.addf %378, %381 : vector<2x8x16xf32>
    %cst_159 = arith.constant dense<0xFF800000> : vector<2x8xf32>
    %383 = vector.multi_reduction <maximumf>, %382, %cst_159 [2] : vector<2x8x16xf32> to vector<2x8xf32>
    %384 = vector.shape_cast %383 : vector<2x8xf32> to vector<2x8x1xf32>
    %385 = vector.broadcast %384 : vector<2x8x1xf32> to vector<2x8x16xf32>
    %386 = arith.subf %382, %385 : vector<2x8x16xf32>
    %387 = math.exp %386 : vector<2x8x16xf32>
    %cst_160 = arith.constant dense<0.000000e+00> : vector<2x8xf32>
    %388 = vector.multi_reduction <add>, %387, %cst_160 [2] : vector<2x8x16xf32> to vector<2x8xf32>
    %389 = vector.shape_cast %388 : vector<2x8xf32> to vector<2x8x1xf32>
    %390 = tpu.reciprocal %389 {approx = true} : vector<2x8x1xf32> -> vector<2x8x1xf32>
    %391 = vector.broadcast %390 : vector<2x8x1xf32> to vector<2x8x16xf32>
    %392 = arith.mulf %387, %391 : vector<2x8x16xf32>
    %393 = arith.truncf %392 : vector<2x8x16xf32> to vector<2x8x16xbf16>
    "tpu.trace_start"() <{level = 10 : i32, message = "bts,bsh->bth"}> : () -> ()
    %cst_161 = arith.constant dense<0.000000e+00> : vector<2x8x128xf32>
    %394 = tpu.matmul %393, %375, %cst_161 {dimension_numbers = #tpu.dot_dimension_numbers<[2], [1], [1], [2], [0, 0, 0, 1, 1, 2], [0], [0]>} : vector<2x8x16xbf16>, vector<2x16x128xbf16>, vector<2x8x128xf32> -> vector<2x8x128xf32>
    "tpu.trace_stop"() : () -> ()
    %395 = arith.truncf %394 : vector<2x8x128xf32> to vector<2x8x128xbf16>
    %c0_162 = arith.constant 0 : index
    %c0_163 = arith.constant 0 : index
    %c0_164 = arith.constant 0 : index
    %396 = vector.load %arg10[%c0_162, %c0_163, %c0_164] : memref<2x8x128xbf16, #tpu.memory_space<vmem>>, vector<2x8x128xbf16>
    tpu.vector_store %arg10[%c0_162, %c0_163, %c0_164], %395 {strides = array<i32>} : memref<2x8x128xbf16, #tpu.memory_space<vmem>>, vector<2x8x128xbf16>,
    return
  }
}

module attributes {stable_mosaic.version = 11 : i64} {
  func.func @classifier_kernel(%arg0: i32, %arg1: memref<16x128xbf16, #tpu.memory_space<vmem>>, %arg2: memref<16x128xbf16, #tpu.memory_space<vmem>>, %arg3: memref<128x128xbf16, #tpu.memory_space<vmem>>, %arg4: memref<128x128xbf16, #tpu.memory_space<vmem>>, %arg5: memref<1x128xf32, #tpu.memory_space<vmem>>, %arg6: memref<16x128xf32, #tpu.memory_space<vmem>>) attributes {dimension_semantics = [#tpu.dimension_semantics<parallel>], iteration_bounds = array<i64: 1>, scalar_prefetch = 0 : i64, scratch_operands = 0 : i64, tpu.core_type = #tpu.core_type<tc>, window_params = [{pipeline_mode = #tpu.pipeline_mode<synchronous>, transform_indices = @transform_0, window_bounds = array<i64: 16, 128>}, {pipeline_mode = #tpu.pipeline_mode<synchronous>, transform_indices = @transform_1, window_bounds = array<i64: 16, 128>}, {transform_indices = @transform_2, window_bounds = array<i64: 128, 128>}, {transform_indices = @transform_3, window_bounds = array<i64: 128, 128>}, {transform_indices = @transform_4, window_bounds = array<i64: 1, 128>}, {transform_indices = @transform_5, window_bounds = array<i64: 16, 128>}]} {
    %c0 = arith.constant 0 : index
    %c0_0 = arith.constant 0 : index
    %0 = vector.load %arg1[%c0, %c0_0] : memref<16x128xbf16, #tpu.memory_space<vmem>>, vector<16x128xbf16>
    %c0_1 = arith.constant 0 : index
    %c0_2 = arith.constant 0 : index
    %1 = vector.load %arg3[%c0_1, %c0_2] : memref<128x128xbf16, #tpu.memory_space<vmem>>, vector<128x128xbf16>
    %cst = arith.constant dense<0.000000e+00> : vector<16x128xf32>
    %2 = tpu.matmul %0, %1, %cst {dimension_numbers = #tpu.dot_dimension_numbers<[1], [0], [0], [1], [0, 0, 1, 1], [], []>} : vector<16x128xbf16>, vector<128x128xbf16>, vector<16x128xf32> -> vector<16x128xf32>
    %c0_3 = arith.constant 0 : index
    %c0_4 = arith.constant 0 : index
    %3 = vector.load %arg2[%c0_3, %c0_4] : memref<16x128xbf16, #tpu.memory_space<vmem>>, vector<16x128xbf16>
    %c0_5 = arith.constant 0 : index
    %c0_6 = arith.constant 0 : index
    %4 = vector.load %arg4[%c0_5, %c0_6] : memref<128x128xbf16, #tpu.memory_space<vmem>>, vector<128x128xbf16>
    %cst_7 = arith.constant dense<0.000000e+00> : vector<16x128xf32>
    %5 = tpu.matmul %3, %4, %cst_7 {dimension_numbers = #tpu.dot_dimension_numbers<[1], [0], [0], [1], [0, 0, 1, 1], [], []>} : vector<16x128xbf16>, vector<128x128xbf16>, vector<16x128xf32> -> vector<16x128xf32>
    %6 = arith.addf %2, %5 : vector<16x128xf32>
    %c0_8 = arith.constant 0 : index
    %c0_9 = arith.constant 0 : index
    %7 = vector.load %arg5[%c0_8, %c0_9] : memref<1x128xf32, #tpu.memory_space<vmem>>, vector<1x128xf32>
    %8 = vector.broadcast %7 : vector<1x128xf32> to vector<16x128xf32>
    %9 = arith.addf %6, %8 : vector<16x128xf32>
    %c0_10 = arith.constant 0 : index
    %c0_11 = arith.constant 0 : index
    %10 = vector.load %arg6[%c0_10, %c0_11] : memref<16x128xf32, #tpu.memory_space<vmem>>, vector<16x128xf32>
    tpu.vector_store %arg6[%c0_10, %c0_11], %9 {strides = array<i32>} : memref<16x128xf32, #tpu.memory_space<vmem>>, vector<16x128xf32>,
    return
  }
  func.func @transform_0(%arg0: i32) -> (i32, i32) {
    %c0_i32 = arith.constant 0 : i32
    %c0_i32_0 = arith.constant 0 : i32
    %c0_i32_1 = arith.constant 0 : i32
    return %c0_i32, %c0_i32_0 : i32, i32
  }
  func.func @transform_1(%arg0: i32) -> (i32, i32) {
    %c0_i32 = arith.constant 0 : i32
    %c0_i32_0 = arith.constant 0 : i32
    %c0_i32_1 = arith.constant 0 : i32
    return %c0_i32, %c0_i32_0 : i32, i32
  }
  func.func @transform_2(%arg0: i32) -> (i32, i32) {
    %c0_i32 = arith.constant 0 : i32
    %c0_i32_0 = arith.constant 0 : i32
    return %c0_i32, %arg0 : i32, i32
  }
  func.func @transform_3(%arg0: i32) -> (i32, i32) {
    %c0_i32 = arith.constant 0 : i32
    %c0_i32_0 = arith.constant 0 : i32
    return %c0_i32, %arg0 : i32, i32
  }
  func.func @transform_4(%arg0: i32) -> (i32, i32) {
    %c0_i32 = arith.constant 0 : i32
    %c0_i32_0 = arith.constant 0 : i32
    return %c0_i32, %arg0 : i32, i32
  }
  func.func @transform_5(%arg0: i32) -> (i32, i32) {
    %c0_i32 = arith.constant 0 : i32
    %c0_i32_0 = arith.constant 0 : i32
    return %c0_i32, %arg0 : i32, i32
  }
}

</mosaic_0001>

<llo_original>
// kernel: decoder_forward.3
$region0: #{decoder_forward.3}
  #allocation0 [shape = 'u32[]', space=smem, size = 0x4, offset = 0x4, fixed_abs, tag = 'smem constant byte address 0x4 - core index']
  #allocation1 [shape = 'u32[144,128]{1,0:T(1,128)}', space=vmem, size = 0x12000, scoped, tag = 'internal scratch']
  %s0 = inlined_call_operand.vmem [shape: bf16[16,128], index: 0, kind: input, shape index: {}]
  %s1 = inlined_call_operand.vmem [shape: bf16[16,128], index: 1, kind: input, shape index: {}]
  %s2 = inlined_call_operand.vmem [shape: bf16[128,128], index: 2, kind: input, shape index: {}]
  %s3 = inlined_call_operand.vmem [shape: bf16[128,128], index: 3, kind: input, shape index: {}]
  %s4 = inlined_call_operand.vmem [shape: f32[1,128], index: 4, kind: input, shape index: {}]
  %s5 = inlined_call_operand.hbm [shape: f32[16,128], index: 5, kind: output, shape index: {}]
  %s6 = sld [smem:[#allocation0]]
  $region30: #{decoder_forward.3} parent=0
    _
  %s8 = ssub.s32 1, %s6
  %s9 = scalar_select 0, %s8, %s6
  $region1: #{decoder_forward.3} parent=0
    #allocation2 [shape = 'u8[8192]{0}', space=vmem, size = 0x2000, scoped, tag = 'output window, operand 0, single buffered']
    #allocation3 [shape = 's32[1]{0}', space=sflag, size = 0x4, scoped, tag = 'scoped memory for decoder_forward.3']
    %10 = vsyncpa [#allocation3], 0
    // Predicated region
    $region2: #{decoder_forward.3} parent=1 // pred_check
      _
    $region3: #{decoder_forward.3} parent=1 // pred_check_branch
      %12 = sbr.rel (0) target = $region5
    $region4: #{decoder_forward.3} parent=1 // pred_region
      _
    $region5: #{decoder_forward.3} parent=1 // pred_fallthru
      _
    // Predicated region
    $region6: #{decoder_forward.3} parent=1 // pred_check
      _
    $region7: #{decoder_forward.3} parent=1 // pred_check_branch
      %14 = sbr.rel (0) target = $region9
    $region8: #{decoder_forward.3} parent=1 // pred_region
      _
    $region9: #{decoder_forward.3} parent=1 // pred_fallthru
      _
    // Predicated region
    $region10: #{decoder_forward.3} parent=1 // pred_check
      _
    $region11: #{decoder_forward.3} parent=1 // pred_check_branch
      %16 = sbr.rel (0) target = $region13
    $region12: #{decoder_forward.3} parent=1 // pred_region
      _
    $region13: #{decoder_forward.3} parent=1 // pred_fallthru
      _
    // Predicated region
    $region14: #{decoder_forward.3} parent=1 // pred_check
      _
    $region15: #{decoder_forward.3} parent=1 // pred_check_branch
      %18 = sbr.rel (0) target = $region17
    $region16: #{decoder_forward.3} parent=1 // pred_region
      _
    $region17: #{decoder_forward.3} parent=1 // pred_fallthru
      _
    // Predicated region
    $region18: #{decoder_forward.3} parent=1 // pred_check
      _
    $region19: #{decoder_forward.3} parent=1 // pred_check_branch
      %20 = sbr.rel (0) target = $region21
    $region20: #{decoder_forward.3} parent=1 // pred_region
      _
    $region21: #{decoder_forward.3} parent=1 // pred_fallthru
      _
    %v22 = vld [vmem:[%s0] sm:$0xf]
    %v23 = vld [vmem:[%s0 + $0x4] sm:$0xf]
    %v24 = vld [vmem:[%s2] sm:$0xf]
    %v25 = vld [vmem:[%s2 + $0x4] sm:$0xf]
    %v26 = vld [vmem:[%s2 + $0x8] sm:$0xf]
    %v27 = vld [vmem:[%s2 + $0xc] sm:$0xf]
    %v28 = vld [vmem:[%s2 + $0x10] sm:$0xf]
    %v29 = vld [vmem:[%s2 + $0x14] sm:$0xf]
    %v30 = vld [vmem:[%s2 + $0x18] sm:$0xf]
    %v31 = vld [vmem:[%s2 + $0x1c] sm:$0xf]
    %v32 = vld [vmem:[%s2 + $0x20] sm:$0xf]
    %v33 = vld [vmem:[%s2 + $0x24] sm:$0xf]
    %v34 = vld [vmem:[%s2 + $0x28] sm:$0xf]
    %v35 = vld [vmem:[%s2 + $0x2c] sm:$0xf]
    %v36 = vld [vmem:[%s2 + $0x30] sm:$0xf]
    %v37 = vld [vmem:[%s2 + $0x34] sm:$0xf]
    %v38 = vld [vmem:[%s2 + $0x38] sm:$0xf]
    %v39 = vld [vmem:[%s2 + $0x3c] sm:$0xf]
    %v40 = vld [vmem:[%s1] sm:$0xf]
    %v41 = vld [vmem:[%s1 + $0x4] sm:$0xf]
    %v42 = vld [vmem:[%s3] sm:$0xf]
    %v43 = vld [vmem:[%s3 + $0x4] sm:$0xf]
    %v44 = vld [vmem:[%s3 + $0x8] sm:$0xf]
    %v45 = vld [vmem:[%s3 + $0xc] sm:$0xf]
    %v46 = vld [vmem:[%s3 + $0x10] sm:$0xf]
    %v47 = vld [vmem:[%s3 + $0x14] sm:$0xf]
    %v48 = vld [vmem:[%s3 + $0x18] sm:$0xf]
    %v49 = vld [vmem:[%s3 + $0x1c] sm:$0xf]
    %v50 = vld [vmem:[%s3 + $0x20] sm:$0xf]
    %v51 = vld [vmem:[%s3 + $0x24] sm:$0xf]
    %v52 = vld [vmem:[%s3 + $0x28] sm:$0xf]
    %v53 = vld [vmem:[%s3 + $0x2c] sm:$0xf]
    %v54 = vld [vmem:[%s3 + $0x30] sm:$0xf]
    %v55 = vld [vmem:[%s3 + $0x34] sm:$0xf]
    %v56 = vld [vmem:[%s3 + $0x38] sm:$0xf]
    %v57 = vld [vmem:[%s3 + $0x3c] sm:$0xf]
    %v60 = vunpack.c.l.b16 %v40
    %v61 = vunpack.c.l.b16 %v41
    %v62 = vpack.c.b16 %v61, %v60
    %v80 = vunpack.c.l.b16 %v42
    %v81 = vunpack.c.l.b16 %v43
    %v82 = vunpack.c.l.b16 %v44
    %v83 = vunpack.c.l.b16 %v45
    %v84 = vunpack.c.l.b16 %v46
    %v85 = vunpack.c.l.b16 %v47
    %v86 = vunpack.c.l.b16 %v48
    %v87 = vunpack.c.l.b16 %v49
    %v88 = vunpack.c.l.b16 %v50
    %v89 = vunpack.c.l.b16 %v51
    %v90 = vunpack.c.l.b16 %v52
    %v91 = vunpack.c.l.b16 %v53
    %v92 = vunpack.c.l.b16 %v54
    %v93 = vunpack.c.l.b16 %v55
    %v94 = vunpack.c.l.b16 %v56
    %v95 = vunpack.c.l.b16 %v57
    %v96 = vpack.c.b16 %v81, %v80
    %v97 = vpack.c.b16 %v83, %v82
    %v98 = vpack.c.b16 %v85, %v84
    %v99 = vpack.c.b16 %v87, %v86
    %v100 = vpack.c.b16 %v89, %v88
    %v101 = vpack.c.b16 %v91, %v90
    %v102 = vpack.c.b16 %v93, %v92
    %v103 = vpack.c.b16 %v95, %v94
    %112 = vmatprep.subr.bf16.mxu0 0
    %113 = vmatpush1.bf16.msra.mxu0 %v96
    %114 = vmatprep.subr.bf16.mxu0 0
    %115 = vmatpush1.bf16.msra.mxu0 %v97
    %116 = vmatprep.subr.bf16.mxu0 0
    %117 = vmatpush1.bf16.msra.mxu0 %v98
    %118 = vmatprep.subr.bf16.mxu0 0
    %119 = vmatpush1.bf16.msra.mxu0 %v99
    %120 = vmatprep.subr.bf16.mxu0 0
    %121 = vmatpush1.bf16.msra.mxu0 %v100
    %122 = vmatprep.subr.bf16.mxu0 0
    %123 = vmatpush1.bf16.msra.mxu0 %v101
    %124 = vmatprep.subr.bf16.mxu0 0
    %125 = vmatpush1.bf16.msra.mxu0 %v102
    %126 = vmatprep.subr.bf16.mxu0 0
    %127 = vmatpush1.bf16.msra.mxu0 %v103
    %128 = vmatprep.subr.bf16.mxu0 0
    %129 = vmatpush1.bf16.msra.mxu0 0
    %130 = vmatprep.subr.bf16.mxu0 0
    %131 = vmatpush1.bf16.msra.mxu0 0
    %132 = vmatprep.subr.bf16.mxu0 0
    %133 = vmatpush1.bf16.msra.mxu0 0
    %134 = vmatprep.subr.bf16.mxu0 0
    %135 = vmatpush1.bf16.msra.mxu0 0
    %136 = vmatprep.subr.bf16.mxu0 0
    %137 = vmatpush1.bf16.msra.mxu0 0
    %138 = vmatprep.subr.bf16.mxu0 0
    %139 = vmatpush1.bf16.msra.mxu0 0
    %140 = vmatprep.subr.bf16.mxu0 0
    %141 = vmatpush1.bf16.msra.mxu0 0
    %142 = vmatprep.subr.bf16.mxu0 0
    %143 = vmatpush1.bf16.msra.mxu0 0
    %144 = vmatprep.mubr.bf16.mxu0 0
    %145 = vmatmul.mubr.bf16.gmra.mrb[0].mxu0 %v62
    %v146 = vpop.f32.mrb[0].mxu0
    %v147 = vadd.f32 0.0, %v146
    %v148 = vpop.f32.mrb[0].mxu0
    %v149 = vpop.f32.mrb[0].mxu0
    %v150 = vadd.f32 0.0, %v149
    %v151 = vpop.f32.mrb[0].mxu0
    %152 = vdwg.mxu0
    %v155 = vunpack.c.l.b16 %v22
    %v156 = vunpack.c.l.b16 %v23
    %v157 = vpack.c.b16 %v156, %v155
    %v175 = vunpack.c.l.b16 %v24
    %v176 = vunpack.c.l.b16 %v25
    %v177 = vunpack.c.l.b16 %v26
    %v178 = vunpack.c.l.b16 %v27
    %v179 = vunpack.c.l.b16 %v28
    %v180 = vunpack.c.l.b16 %v29
    %v181 = vunpack.c.l.b16 %v30
    %v182 = vunpack.c.l.b16 %v31
    %v183 = vunpack.c.l.b16 %v32
    %v184 = vunpack.c.l.b16 %v33
    %v185 = vunpack.c.l.b16 %v34
    %v186 = vunpack.c.l.b16 %v35
    %v187 = vunpack.c.l.b16 %v36
    %v188 = vunpack.c.l.b16 %v37
    %v189 = vunpack.c.l.b16 %v38
    %v190 = vunpack.c.l.b16 %v39
    %v191 = vpack.c.b16 %v176, %v175
    %v192 = vpack.c.b16 %v178, %v177
    %v193 = vpack.c.b16 %v180, %v179
    %v194 = vpack.c.b16 %v182, %v181
    %v195 = vpack.c.b16 %v184, %v183
    %v196 = vpack.c.b16 %v186, %v185
    %v197 = vpack.c.b16 %v188, %v187
    %v198 = vpack.c.b16 %v190, %v189
    %207 = vmatprep.subr.bf16.mxu0 0
    %208 = vmatpush1.bf16.msra.mxu0 %v191
    %209 = vmatprep.subr.bf16.mxu0 0
    %210 = vmatpush1.bf16.msra.mxu0 %v192
    %211 = vmatprep.subr.bf16.mxu0 0
    %212 = vmatpush1.bf16.msra.mxu0 %v193
    %213 = vmatprep.subr.bf16.mxu0 0
    %214 = vmatpush1.bf16.msra.mxu0 %v194
    %215 = vmatprep.subr.bf16.mxu0 0
    %216 = vmatpush1.bf16.msra.mxu0 %v195
    %217 = vmatprep.subr.bf16.mxu0 0
    %218 = vmatpush1.bf16.msra.mxu0 %v196
    %219 = vmatprep.subr.bf16.mxu0 0
    %220 = vmatpush1.bf16.msra.mxu0 %v197
    %221 = vmatprep.subr.bf16.mxu0 0
    %222 = vmatpush1.bf16.msra.mxu0 %v198
    %223 = vmatprep.subr.bf16.mxu0 0
    %224 = vmatpush1.bf16.msra.mxu0 0
    %225 = vmatprep.subr.bf16.mxu0 0
    %226 = vmatpush1.bf16.msra.mxu0 0
    %227 = vmatprep.subr.bf16.mxu0 0
    %228 = vmatpush1.bf16.msra.mxu0 0
    %229 = vmatprep.subr.bf16.mxu0 0
    %230 = vmatpush1.bf16.msra.mxu0 0
    %231 = vmatprep.subr.bf16.mxu0 0
    %232 = vmatpush1.bf16.msra.mxu0 0
    %233 = vmatprep.subr.bf16.mxu0 0
    %234 = vmatpush1.bf16.msra.mxu0 0
    %235 = vmatprep.subr.bf16.mxu0 0
    %236 = vmatpush1.bf16.msra.mxu0 0
    %237 = vmatprep.subr.bf16.mxu0 0
    %238 = vmatpush1.bf16.msra.mxu0 0
    %239 = vmatprep.mubr.bf16.mxu0 0
    %240 = vmatmul.mubr.bf16.gmra.mrb[0].mxu0 %v157
    %v241 = vpop.f32.mrb[0].mxu0
    %v242 = vadd.f32 %v147, %v241
    %v243 = vpop.f32.mrb[0].mxu0
    %v244 = vpop.f32.mrb[0].mxu0
    %v245 = vadd.f32 %v150, %v244
    %v246 = vpop.f32.mrb[0].mxu0
    %247 = vdwg.mxu0
    %v248 = vld [vmem:[%s4] sm:$0x1]
    %v250 = vlaneseq
    %v251 = vshrl.u32 %v250, 7
    %v252 = vsub.s32 0, %v251
    %v253 = vrot.slane %v248, %v252
    %v255 = vadd.f32 %v242, %v253
    %v256 = vadd.f32 %v245, %v253
    %257 = vst [vmem:[#allocation2] sm:$0xff] %v255
    %258 = vst [vmem:[#allocation2 + $0x8] sm:$0xff] %v256
    // Predicated region
    $region22: #{decoder_forward.3} parent=1 // pred_check
      _
    $region23: #{decoder_forward.3} parent=1 // pred_check_branch
      %260 = sbr.rel (0) target = $region25
    $region24: #{decoder_forward.3} parent=1 // pred_region
      %s262 = ssub.s32 256, 256
      %263 = vsyncadd [#allocation3], %s262
      %s264 = sshll.u32 [#allocation2], 4
      %s265 = int_to_ptr.vmem [resolvable:$true] %s264
      %270 = dma.vmem_to_hbm [thread:$0]  %s265, 256, %s5, [#allocation3], 128, 128, 8
    $region25: #{decoder_forward.3} parent=1 // pred_fallthru
      _
    // Predicated region
    $region26: #{decoder_forward.3} parent=1 // pred_check
      _
    $region27: #{decoder_forward.3} parent=1 // pred_check_branch
      %272 = sbr.rel (0) target = $region29
    $region28: #{decoder_forward.3} parent=1 // pred_region
      %273 = dma.done [#allocation3], 256
    $region29: #{decoder_forward.3} parent=1 // pred_fallthru
      _
    %274 = vsyncpa [#allocation3], 1

// kernel: decoder_forward.2
$region0: #{decoder_forward.2}
  #allocation0 [shape = 'u32[]', space=smem, size = 0x4, offset = 0x4, fixed_abs, tag = 'smem constant byte address 0x4 - core index']
  #allocation1 [shape = 'u32[144,128]{1,0:T(1,128)}', space=vmem, size = 0x12000, scoped, tag = 'internal scratch']
  #allocation2 [shape = 'f32[16,128]{1,0:T(8,128)}', space=vmem, size = 0x2000, scoped, tag = 'scratch operand']
  #allocation3 [shape = 'f32[2,8,128]{2,1,0:T(8,128)}', space=vmem, size = 0x2000, scoped, tag = 'scratch operand']
  %s0 = inlined_call_operand.vmem [shape: s32[16], index: 0, kind: input, shape index: {}]
  %s1 = inlined_call_operand.vmem [shape: f32[2,128], index: 1, kind: input, shape index: {}]
  %s2 = inlined_call_operand.vmem [shape: bf16[2,16,128], index: 2, kind: input, shape index: {}]
  %s3 = inlined_call_operand.vmem [shape: f32[2,16], index: 3, kind: input, shape index: {}]
  %s4 = inlined_call_operand.vmem [shape: f32[16,128], index: 4, kind: input, shape index: {}]
  %s5 = inlined_call_operand.hbm [shape: bf16[128,384], index: 5, kind: input, shape index: {}]
  %s6 = inlined_call_operand.hbm [shape: bf16[128,384], index: 6, kind: input, shape index: {}]
  %s7 = inlined_call_operand.vmem [shape: f32[1,384], index: 7, kind: input, shape index: {}]
  %s8 = inlined_call_operand.vmem [shape: f32[1,128], index: 8, kind: input, shape index: {}]
  %s9 = inlined_call_operand.vmem [shape: bf16[2,8,128], index: 9, kind: output, shape index: {0}]
  %s10 = inlined_call_operand.vmem [shape: bf16[2,8,128], index: 10, kind: output, shape index: {1}]
  %11 = xla_tuple %s9, %s10
  %s12 = sld [smem:[#allocation0]]
  $region66: #{decoder_forward.2} parent=0
    _
  %s14 = ssub.s32 1, %s12
  %s15 = scalar_select 0, %s14, %s12
  $region1: #{decoder_forward.2} parent=0
    #allocation4 [shape = 'u8[512]{0}', space=smem, size = 0x200, scoped, tag = 'input window, operand 0, single buffered']
    #allocation5 [shape = 's32[1]{0}', space=sflag, size = 0x4, scoped, tag = 'scoped memory for decoder_forward.2']
    #allocation6 [shape = 's32[1]{0}', space=sflag, size = 0x4, scoped, tag = 'scoped memory for decoder_forward.2']
    #allocation7 [shape = 'u8[98304]{0}', space=vmem, size = 0x18000, scoped, tag = 'input window, operand 5, single buffered']
    #allocation8 [shape = 'u8[98304]{0}', space=vmem, size = 0x18000, scoped, tag = 'input window, operand 6, single buffered']
    #allocation9 [shape = 's32[1]{0}', space=sflag, size = 0x4, scoped, tag = 'scoped memory for decoder_forward.2']
    %16 = vsyncpa [#allocation6], 0
    %17 = vsyncpa [#allocation5], 0
    %18 = vsyncpa [#allocation9], 0
    // Predicated region
    $region2: #{decoder_forward.2} parent=1 // pred_check
      _
    $region3: #{decoder_forward.2} parent=1 // pred_check_branch
      %20 = sbr.rel (0) target = $region5
    $region4: #{decoder_forward.2} parent=1 // pred_region
      %s22 = ssub.s32 16, 16
      %23 = vsyncadd [#allocation6], %s22
      %s25 = sshll.u32 %s0, 4
      %s26 = int_to_ptr.vmem [resolvable:$true] %s25
      %28 = dma.vmem_to_smem %s26, 16, [#allocation4], [#allocation6]
    $region5: #{decoder_forward.2} parent=1 // pred_fallthru
      _
    // Predicated region
    $region6: #{decoder_forward.2} parent=1 // pred_check
      _
    $region7: #{decoder_forward.2} parent=1 // pred_check_branch
      %30 = sbr.rel (0) target = $region9
    $region8: #{decoder_forward.2} parent=1 // pred_region
      _
    $region9: #{decoder_forward.2} parent=1 // pred_fallthru
      _
    // Predicated region
    $region10: #{decoder_forward.2} parent=1 // pred_check
      _
    $region11: #{decoder_forward.2} parent=1 // pred_check_branch
      %32 = sbr.rel (0) target = $region13
    $region12: #{decoder_forward.2} parent=1 // pred_region
      _
    $region13: #{decoder_forward.2} parent=1 // pred_fallthru
      _
    // Predicated region
    $region14: #{decoder_forward.2} parent=1 // pred_check
      _
    $region15: #{decoder_forward.2} parent=1 // pred_check_branch
      %34 = sbr.rel (0) target = $region17
    $region16: #{decoder_forward.2} parent=1 // pred_region
      _
    $region17: #{decoder_forward.2} parent=1 // pred_fallthru
      _
    // Predicated region
    $region18: #{decoder_forward.2} parent=1 // pred_check
      _
    $region19: #{decoder_forward.2} parent=1 // pred_check_branch
      %36 = sbr.rel (0) target = $region21
    $region20: #{decoder_forward.2} parent=1 // pred_region
      _
    $region21: #{decoder_forward.2} parent=1 // pred_fallthru
      _
    // Predicated region
    $region22: #{decoder_forward.2} parent=1 // pred_check
      _
    $region23: #{decoder_forward.2} parent=1 // pred_check_branch
      %38 = sbr.rel (0) target = $region25
    $region24: #{decoder_forward.2} parent=1 // pred_region
      %s40 = ssub.s32 3072, 3072
      %41 = vsyncadd [#allocation5], %s40
      %s42 = sshll.u32 [#allocation7], 4
      %s43 = int_to_ptr.vmem [resolvable:$true] %s42
      %48 = dma.hbm_to_vmem [thread:$0]  %s5, 3072, %s43, [#allocation5], 192, 192, 12
    $region25: #{decoder_forward.2} parent=1 // pred_fallthru
      _
    // Predicated region
    $region26: #{decoder_forward.2} parent=1 // pred_check
      _
    $region27: #{decoder_forward.2} parent=1 // pred_check_branch
      %50 = sbr.rel (0) target = $region29
    $region28: #{decoder_forward.2} parent=1 // pred_region
      %s52 = ssub.s32 3072, 3072
      %53 = vsyncadd [#allocation9], %s52
      %s54 = sshll.u32 [#allocation8], 4
      %s55 = int_to_ptr.vmem [resolvable:$true] %s54
      %60 = dma.hbm_to_vmem [thread:$0]  %s6, 3072, %s55, [#allocation9], 192, 192, 12
    $region29: #{decoder_forward.2} parent=1 // pred_fallthru
      _
    // Predicated region
    $region30: #{decoder_forward.2} parent=1 // pred_check
      _
    $region31: #{decoder_forward.2} parent=1 // pred_check_branch
      %62 = sbr.rel (0) target = $region33
    $region32: #{decoder_forward.2} parent=1 // pred_region
      _
    $region33: #{decoder_forward.2} parent=1 // pred_fallthru
      _
    // Predicated region
    $region34: #{decoder_forward.2} parent=1 // pred_check
      _
    $region35: #{decoder_forward.2} parent=1 // pred_check_branch
      %64 = sbr.rel (0) target = $region37
    $region36: #{decoder_forward.2} parent=1 // pred_region
      _
    $region37: #{decoder_forward.2} parent=1 // pred_fallthru
      _
    // Predicated region
    $region38: #{decoder_forward.2} parent=1 // pred_check
      _
    $region39: #{decoder_forward.2} parent=1 // pred_check_branch
      %66 = sbr.rel (0) target = $region41
    $region40: #{decoder_forward.2} parent=1 // pred_region
      %67 = dma.done [#allocation6], 16
    $region41: #{decoder_forward.2} parent=1 // pred_fallthru
      _
    // Predicated region
    $region42: #{decoder_forward.2} parent=1 // pred_check
      _
    $region43: #{decoder_forward.2} parent=1 // pred_check_branch
      %69 = sbr.rel (0) target = $region45
    $region44: #{decoder_forward.2} parent=1 // pred_region
      %70 = dma.done [#allocation5], 3072
    $region45: #{decoder_forward.2} parent=1 // pred_fallthru
      _
    // Predicated region
    $region46: #{decoder_forward.2} parent=1 // pred_check
      _
    $region47: #{decoder_forward.2} parent=1 // pred_check_branch
      %72 = sbr.rel (0) target = $region49
    $region48: #{decoder_forward.2} parent=1 // pred_region
      %73 = dma.done [#allocation9], 3072
    $region49: #{decoder_forward.2} parent=1 // pred_fallthru
      _
    %74 = sfence
    %s76 = sld [smem:[#allocation4]]
    %p77 = scmp.gt.s32.totalorder %s76, 0
    %s78 = scalar_select %p77, %s76, 0
    %p79 = scmp.lt.s32.totalorder %s78, 15
    %s80 = scalar_select %p79, %s78, 15
    %s81 = scalar_lea.vmem %s4, %s80
    %v82 = vld [vmem:[%s81] sm:$0x1]
    %83 = vst [vmem:[#allocation2] sm:$0x1] %v82
    %s84 = sld [smem:[#allocation4 + $0x1]]
    %p85 = scmp.gt.s32.totalorder %s84, 0
    %s86 = scalar_select %p85, %s84, 0
    %p87 = scmp.lt.s32.totalorder %s86, 15
    %s88 = scalar_select %p87, %s86, 15
    %s89 = scalar_lea.vmem %s4, %s88
    %v90 = vld [vmem:[%s89] sm:$0x1]
    %91 = vst [vmem:[#allocation2 + $0x1] sm:$0x1] %v90
    %s92 = sld [smem:[#allocation4 + $0x2]]
    %p93 = scmp.gt.s32.totalorder %s92, 0
    %s94 = scalar_select %p93, %s92, 0
    %p95 = scmp.lt.s32.totalorder %s94, 15
    %s96 = scalar_select %p95, %s94, 15
    %s97 = scalar_lea.vmem %s4, %s96
    %v98 = vld [vmem:[%s97] sm:$0x1]
    %99 = vst [vmem:[#allocation2 + $0x2] sm:$0x1] %v98
    %s100 = sld [smem:[#allocation4 + $0x3]]
    %p101 = scmp.gt.s32.totalorder %s100, 0
    %s102 = scalar_select %p101, %s100, 0
    %p103 = scmp.lt.s32.totalorder %s102, 15
    %s104 = scalar_select %p103, %s102, 15
    %s105 = scalar_lea.vmem %s4, %s104
    %v106 = vld [vmem:[%s105] sm:$0x1]
    %107 = vst [vmem:[#allocation2 + $0x3] sm:$0x1] %v106
    %s108 = sld [smem:[#allocation4 + $0x4]]
    %p109 = scmp.gt.s32.totalorder %s108, 0
    %s110 = scalar_select %p109, %s108, 0
    %p111 = scmp.lt.s32.totalorder %s110, 15
    %s112 = scalar_select %p111, %s110, 15
    %s113 = scalar_lea.vmem %s4, %s112
    %v114 = vld [vmem:[%s113] sm:$0x1]
    %115 = vst [vmem:[#allocation2 + $0x4] sm:$0x1] %v114
    %s116 = sld [smem:[#allocation4 + $0x5]]
    %p117 = scmp.gt.s32.totalorder %s116, 0
    %s118 = scalar_select %p117, %s116, 0
    %p119 = scmp.lt.s32.totalorder %s118, 15
    %s120 = scalar_select %p119, %s118, 15
    %s121 = scalar_lea.vmem %s4, %s120
    %v122 = vld [vmem:[%s121] sm:$0x1]
    %123 = vst [vmem:[#allocation2 + $0x5] sm:$0x1] %v122
    %s124 = sld [smem:[#allocation4 + $0x6]]
    %p125 = scmp.gt.s32.totalorder %s124, 0
    %s126 = scalar_select %p125, %s124, 0
    %p127 = scmp.lt.s32.totalorder %s126, 15
    %s128 = scalar_select %p127, %s126, 15
    %s129 = scalar_lea.vmem %s4, %s128
    %v130 = vld [vmem:[%s129] sm:$0x1]
    %131 = vst [vmem:[#allocation2 + $0x6] sm:$0x1] %v130
    %s132 = sld [smem:[#allocation4 + $0x7]]
    %p133 = scmp.gt.s32.totalorder %s132, 0
    %s134 = scalar_select %p133, %s132, 0
    %p135 = scmp.lt.s32.totalorder %s134, 15
    %s136 = scalar_select %p135, %s134, 15
    %s137 = scalar_lea.vmem %s4, %s136
    %v138 = vld [vmem:[%s137] sm:$0x1]
    %139 = vst [vmem:[#allocation2 + $0x7] sm:$0x1] %v138
    %s140 = sld [smem:[#allocation4 + $0x8]]
    %p141 = scmp.gt.s32.totalorder %s140, 0
    %s142 = scalar_select %p141, %s140, 0
    %p143 = scmp.lt.s32.totalorder %s142, 15
    %s144 = scalar_select %p143, %s142, 15
    %s145 = scalar_lea.vmem %s4, %s144
    %v146 = vld [vmem:[%s145] sm:$0x1]
    %147 = vst [vmem:[#allocation2 + $0x8] sm:$0x1] %v146
    %s148 = sld [smem:[#allocation4 + $0x9]]
    %p149 = scmp.gt.s32.totalorder %s148, 0
    %s150 = scalar_select %p149, %s148, 0
    %p151 = scmp.lt.s32.totalorder %s150, 15
    %s152 = scalar_select %p151, %s150, 15
    %s153 = scalar_lea.vmem %s4, %s152
    %v154 = vld [vmem:[%s153] sm:$0x1]
    %155 = vst [vmem:[#allocation2 + $0x9] sm:$0x1] %v154
    %s156 = sld [smem:[#allocation4 + $0xa]]
    %p157 = scmp.gt.s32.totalorder %s156, 0
    %s158 = scalar_select %p157, %s156, 0
    %p159 = scmp.lt.s32.totalorder %s158, 15
    %s160 = scalar_select %p159, %s158, 15
    %s161 = scalar_lea.vmem %s4, %s160
    %v162 = vld [vmem:[%s161] sm:$0x1]
    %163 = vst [vmem:[#allocation2 + $0xa] sm:$0x1] %v162
    %s164 = sld [smem:[#allocation4 + $0xb]]
    %p165 = scmp.gt.s32.totalorder %s164, 0
    %s166 = scalar_select %p165, %s164, 0
    %p167 = scmp.lt.s32.totalorder %s166, 15
    %s168 = scalar_select %p167, %s166, 15
    %s169 = scalar_lea.vmem %s4, %s168
    %v170 = vld [vmem:[%s169] sm:$0x1]
    %171 = vst [vmem:[#allocation2 + $0xb] sm:$0x1] %v170
    %s172 = sld [smem:[#allocation4 + $0xc]]
    %p173 = scmp.gt.s32.totalorder %s172, 0
    %s174 = scalar_select %p173, %s172, 0
    %p175 = scmp.lt.s32.totalorder %s174, 15
    %s176 = scalar_select %p175, %s174, 15
    %s177 = scalar_lea.vmem %s4, %s176
    %v178 = vld [vmem:[%s177] sm:$0x1]
    %179 = vst [vmem:[#allocation2 + $0xc] sm:$0x1] %v178
    %s180 = sld [smem:[#allocation4 + $0xd]]
    %p181 = scmp.gt.s32.totalorder %s180, 0
    %s182 = scalar_select %p181, %s180, 0
    %p183 = scmp.lt.s32.totalorder %s182, 15
    %s184 = scalar_select %p183, %s182, 15
    %s185 = scalar_lea.vmem %s4, %s184
    %v186 = vld [vmem:[%s185] sm:$0x1]
    %187 = vst [vmem:[#allocation2 + $0xd] sm:$0x1] %v186
    %s188 = sld [smem:[#allocation4 + $0xe]]
    %p189 = scmp.gt.s32.totalorder %s188, 0
    %s190 = scalar_select %p189, %s188, 0
    %p191 = scmp.lt.s32.totalorder %s190, 15
    %s192 = scalar_select %p191, %s190, 15
    %s193 = scalar_lea.vmem %s4, %s192
    %v194 = vld [vmem:[%s193] sm:$0x1]
    %195 = vst [vmem:[#allocation2 + $0xe] sm:$0x1] %v194
    %s196 = sld [smem:[#allocation4 + $0xf]]
    %p197 = scmp.gt.s32.totalorder %s196, 0
    %s198 = scalar_select %p197, %s196, 0
    %p199 = scmp.lt.s32.totalorder %s198, 15
    %s200 = scalar_select %p199, %s198, 15
    %s201 = scalar_lea.vmem %s4, %s200
    %v202 = vld [vmem:[%s201] sm:$0x1]
    %203 = vst [vmem:[#allocation2 + $0xf] sm:$0x1] %v202
    %v204 = vld [vmem:[#allocation2] sm:$0xff]
    %v205 = vld [vmem:[#allocation2 + $0x8] sm:$0xff]
    %v206 = vpack.c.bf16 %v205, %v204
    %v207 = vld [vmem:[#allocation7] sm:$0xff]
    %v208 = vld [vmem:[#allocation7 + $0x8] sm:$0xf]
    %v209 = vld [vmem:[#allocation7 + $0xc] sm:$0xff]
    %v210 = vld [vmem:[#allocation7 + $0x14] sm:$0xf]
    %v211 = vld [vmem:[#allocation7 + $0x18] sm:$0xff]
    %v212 = vld [vmem:[#allocation7 + $0x20] sm:$0xf]
    %v213 = vld [vmem:[#allocation7 + $0x24] sm:$0xff]
    %v214 = vld [vmem:[#allocation7 + $0x2c] sm:$0xf]
    %v215 = vld [vmem:[#allocation7 + $0x30] sm:$0xff]
    %v216 = vld [vmem:[#allocation7 + $0x38] sm:$0xf]
    %v217 = vld [vmem:[#allocation7 + $0x3c] sm:$0xff]
    %v218 = vld [vmem:[#allocation7 + $0x44] sm:$0xf]
    %v219 = vld [vmem:[#allocation7 + $0x48] sm:$0xff]
    %v220 = vld [vmem:[#allocation7 + $0x50] sm:$0xf]
    %v221 = vld [vmem:[#allocation7 + $0x54] sm:$0xff]
    %v222 = vld [vmem:[#allocation7 + $0x5c] sm:$0xf]
    %v223 = vld [vmem:[#allocation7 + $0x60] sm:$0xff]
    %v224 = vld [vmem:[#allocation7 + $0x68] sm:$0xf]
    %v225 = vld [vmem:[#allocation7 + $0x6c] sm:$0xff]
    %v226 = vld [vmem:[#allocation7 + $0x74] sm:$0xf]
    %v227 = vld [vmem:[#allocation7 + $0x78] sm:$0xff]
    %v228 = vld [vmem:[#allocation7 + $0x80] sm:$0xf]
    %v229 = vld [vmem:[#allocation7 + $0x84] sm:$0xff]
    %v230 = vld [vmem:[#allocation7 + $0x8c] sm:$0xf]
    %v231 = vld [vmem:[#allocation7 + $0x90] sm:$0xff]
    %v232 = vld [vmem:[#allocation7 + $0x98] sm:$0xf]
    %v233 = vld [vmem:[#allocation7 + $0x9c] sm:$0xff]
    %v234 = vld [vmem:[#allocation7 + $0xa4] sm:$0xf]
    %v235 = vld [vmem:[#allocation7 + $0xa8] sm:$0xff]
    %v236 = vld [vmem:[#allocation7 + $0xb0] sm:$0xf]
    %v237 = vld [vmem:[#allocation7 + $0xb4] sm:$0xff]
    %v238 = vld [vmem:[#allocation7 + $0xbc] sm:$0xf]
    %v239 = vld [vmem:[%s7] sm:$0x7]
    %v241 = vlaneseq
    %v242 = vshrl.u32 %v241, 7
    %v243 = vsub.s32 0, %v242
    %v244 = vrot.slane %v239, %v243
    %v245 = vlaneseq
    %v246 = vshrl.u32 %v245, 7
    %v247 = vsub.s32 1, %v246
    %v248 = vrot.slane %v239, %v247
    %v249 = vlaneseq
    %v250 = vshrl.u32 %v249, 7
    %v251 = vsub.s32 2, %v250
    %v252 = vrot.slane %v239, %v251
    %v288 = vunpack.c.l.b16 %v207
    %v289 = vunpack.c.h.b16 %v207
    %v290 = vunpack.c.l.b16 %v208
    %v291 = vunpack.c.l.b16 %v209
    %v292 = vunpack.c.h.b16 %v209
    %v293 = vunpack.c.l.b16 %v210
    %v294 = vunpack.c.l.b16 %v211
    %v295 = vunpack.c.h.b16 %v211
    %v296 = vunpack.c.l.b16 %v212
    %v297 = vunpack.c.l.b16 %v213
    %v298 = vunpack.c.h.b16 %v213
    %v299 = vunpack.c.l.b16 %v214
    %v300 = vunpack.c.l.b16 %v215
    %v301 = vunpack.c.h.b16 %v215
    %v302 = vunpack.c.l.b16 %v216
    %v303 = vunpack.c.l.b16 %v217
    %v304 = vunpack.c.h.b16 %v217
    %v305 = vunpack.c.l.b16 %v218
    %v306 = vunpack.c.l.b16 %v219
    %v307 = vunpack.c.h.b16 %v219
    %v308 = vunpack.c.l.b16 %v220
    %v309 = vunpack.c.l.b16 %v221
    %v310 = vunpack.c.h.b16 %v221
    %v311 = vunpack.c.l.b16 %v222
    %v312 = vunpack.c.l.b16 %v223
    %v313 = vunpack.c.h.b16 %v223
    %v314 = vunpack.c.l.b16 %v224
    %v315 = vunpack.c.l.b16 %v225
    %v316 = vunpack.c.h.b16 %v225
    %v317 = vunpack.c.l.b16 %v226
    %v318 = vunpack.c.l.b16 %v227
    %v319 = vunpack.c.h.b16 %v227
    %v320 = vunpack.c.l.b16 %v228
    %v321 = vunpack.c.l.b16 %v229
    %v322 = vunpack.c.h.b16 %v229
    %v323 = vunpack.c.l.b16 %v230
    %v324 = vunpack.c.l.b16 %v231
    %v325 = vunpack.c.h.b16 %v231
    %v326 = vunpack.c.l.b16 %v232
    %v327 = vunpack.c.l.b16 %v233
    %v328 = vunpack.c.h.b16 %v233
    %v329 = vunpack.c.l.b16 %v234
    %v330 = vunpack.c.l.b16 %v235
    %v331 = vunpack.c.h.b16 %v235
    %v332 = vunpack.c.l.b16 %v236
    %v333 = vunpack.c.l.b16 %v237
    %v334 = vunpack.c.h.b16 %v237
    %v335 = vunpack.c.l.b16 %v238
    %v336 = vpack.c.b16 %v291, %v288
    %v337 = vpack.c.b16 %v292, %v289
    %v338 = vpack.c.b16 %v293, %v290
    %v339 = vpack.c.b16 %v297, %v294
    %v340 = vpack.c.b16 %v298, %v295
    %v341 = vpack.c.b16 %v299, %v296
    %v342 = vpack.c.b16 %v303, %v300
    %v343 = vpack.c.b16 %v304, %v301
    %v344 = vpack.c.b16 %v305, %v302
    %v345 = vpack.c.b16 %v309, %v306
    %v346 = vpack.c.b16 %v310, %v307
    %v347 = vpack.c.b16 %v311, %v308
    %v348 = vpack.c.b16 %v315, %v312
    %v349 = vpack.c.b16 %v316, %v313
    %v350 = vpack.c.b16 %v317, %v314
    %v351 = vpack.c.b16 %v321, %v318
    %v352 = vpack.c.b16 %v322, %v319
    %v353 = vpack.c.b16 %v323, %v320
    %v354 = vpack.c.b16 %v327, %v324
    %v355 = vpack.c.b16 %v328, %v325
    %v356 = vpack.c.b16 %v329, %v326
    %v357 = vpack.c.b16 %v333, %v330
    %v358 = vpack.c.b16 %v334, %v331
    %v359 = vpack.c.b16 %v335, %v332
    %384 = vmatprep.subr.bf16.mxu0 %v337
    %385 = vmatpush1.bf16.msra.mxu0 %v336
    %386 = vmatprep.subr.bf16.mxu0 %v340
    %387 = vmatpush1.bf16.msra.mxu0 %v339
    %388 = vmatprep.subr.bf16.mxu0 %v343
    %389 = vmatpush1.bf16.msra.mxu0 %v342
    %390 = vmatprep.subr.bf16.mxu0 %v346
    %391 = vmatpush1.bf16.msra.mxu0 %v345
    %392 = vmatprep.subr.bf16.mxu0 %v349
    %393 = vmatpush1.bf16.msra.mxu0 %v348
    %394 = vmatprep.subr.bf16.mxu0 %v352
    %395 = vmatpush1.bf16.msra.mxu0 %v351
    %396 = vmatprep.subr.bf16.mxu0 %v355
    %397 = vmatpush1.bf16.msra.mxu0 %v354
    %398 = vmatprep.subr.bf16.mxu0 %v358
    %399 = vmatpush1.bf16.msra.mxu0 %v357
    %400 = vmatprep.subr.bf16.mxu0 0
    %401 = vmatpush1.bf16.msra.mxu0 0
    %402 = vmatprep.subr.bf16.mxu0 0
    %403 = vmatpush1.bf16.msra.mxu0 0
    %404 = vmatprep.subr.bf16.mxu0 0
    %405 = vmatpush1.bf16.msra.mxu0 0
    %406 = vmatprep.subr.bf16.mxu0 0
    %407 = vmatpush1.bf16.msra.mxu0 0
    %408 = vmatprep.subr.bf16.mxu0 0
    %409 = vmatpush1.bf16.msra.mxu0 0
    %410 = vmatprep.subr.bf16.mxu0 0
    %411 = vmatpush1.bf16.msra.mxu0 0
    %412 = vmatprep.subr.bf16.mxu0 0
    %413 = vmatpush1.bf16.msra.mxu0 0
    %414 = vmatprep.subr.bf16.mxu0 0
    %415 = vmatpush1.bf16.msra.mxu0 0
    %416 = vmatprep.mubr.bf16.mxu0 0
    %417 = vmatmul.mubr.bf16.gmra.mrb[0].mxu0 %v206
    %v418 = vpop.f32.mrb[0].mxu0
    %v419 = vadd.f32 %v244, %v418
    %v420 = vpop.f32.mrb[0].mxu0
    %v421 = vadd.f32 %v248, %v420
    %v422 = vpop.f32.mrb[0].mxu0
    %v423 = vadd.f32 %v244, %v422
    %v424 = vpop.f32.mrb[0].mxu0
    %v425 = vadd.f32 %v248, %v424
    %426 = vdwg.mxu0
    %427 = vmatprep.subr.bf16.mxu0 0
    %428 = vmatpush1.bf16.msra.mxu0 %v338
    %429 = vmatprep.subr.bf16.mxu0 0
    %430 = vmatpush1.bf16.msra.mxu0 %v341
    %431 = vmatprep.subr.bf16.mxu0 0
    %432 = vmatpush1.bf16.msra.mxu0 %v344
    %433 = vmatprep.subr.bf16.mxu0 0
    %434 = vmatpush1.bf16.msra.mxu0 %v347
    %435 = vmatprep.subr.bf16.mxu0 0
    %436 = vmatpush1.bf16.msra.mxu0 %v350
    %437 = vmatprep.subr.bf16.mxu0 0
    %438 = vmatpush1.bf16.msra.mxu0 %v353
    %439 = vmatprep.subr.bf16.mxu0 0
    %440 = vmatpush1.bf16.msra.mxu0 %v356
    %441 = vmatprep.subr.bf16.mxu0 0
    %442 = vmatpush1.bf16.msra.mxu0 %v359
    %443 = vmatprep.subr.bf16.mxu0 0
    %444 = vmatpush1.bf16.msra.mxu0 0
    %445 = vmatprep.subr.bf16.mxu0 0
    %446 = vmatpush1.bf16.msra.mxu0 0
    %447 = vmatprep.subr.bf16.mxu0 0
    %448 = vmatpush1.bf16.msra.mxu0 0
    %449 = vmatprep.subr.bf16.mxu0 0
    %450 = vmatpush1.bf16.msra.mxu0 0
    %451 = vmatprep.subr.bf16.mxu0 0
    %452 = vmatpush1.bf16.msra.mxu0 0
    %453 = vmatprep.subr.bf16.mxu0 0
    %454 = vmatpush1.bf16.msra.mxu0 0
    %455 = vmatprep.subr.bf16.mxu0 0
    %456 = vmatpush1.bf16.msra.mxu0 0
    %457 = vmatprep.subr.bf16.mxu0 0
    %458 = vmatpush1.bf16.msra.mxu0 0
    %459 = vmatprep.mubr.bf16.mxu0 0
    %460 = vmatmul.mubr.bf16.gmra.mrb[0].mxu0 %v206
    %v461 = vpop.f32.mrb[0].mxu0
    %v462 = vadd.f32 %v252, %v461
    %v463 = vpop.f32.mrb[0].mxu0
    %v464 = vpop.f32.mrb[0].mxu0
    %v465 = vadd.f32 %v252, %v464
    %v466 = vpop.f32.mrb[0].mxu0
    %467 = vdwg.mxu0
    %v468 = vld [vmem:[#allocation8] sm:$0xff]
    %v469 = vld [vmem:[#allocation8 + $0x8] sm:$0xf]
    %v470 = vld [vmem:[#allocation8 + $0xc] sm:$0xff]
    %v471 = vld [vmem:[#allocation8 + $0x14] sm:$0xf]
    %v472 = vld [vmem:[#allocation8 + $0x18] sm:$0xff]
    %v473 = vld [vmem:[#allocation8 + $0x20] sm:$0xf]
    %v474 = vld [vmem:[#allocation8 + $0x24] sm:$0xff]
    %v475 = vld [vmem:[#allocation8 + $0x2c] sm:$0xf]
    %v476 = vld [vmem:[#allocation8 + $0x30] sm:$0xff]
    %v477 = vld [vmem:[#allocation8 + $0x38] sm:$0xf]
    %v478 = vld [vmem:[#allocation8 + $0x3c] sm:$0xff]
    %v479 = vld [vmem:[#allocation8 + $0x44] sm:$0xf]
    %v480 = vld [vmem:[#allocation8 + $0x48] sm:$0xff]
    %v481 = vld [vmem:[#allocation8 + $0x50] sm:$0xf]
    %v482 = vld [vmem:[#allocation8 + $0x54] sm:$0xff]
    %v483 = vld [vmem:[#allocation8 + $0x5c] sm:$0xf]
    %v484 = vld [vmem:[#allocation8 + $0x60] sm:$0xff]
    %v485 = vld [vmem:[#allocation8 + $0x68] sm:$0xf]
    %v486 = vld [vmem:[#allocation8 + $0x6c] sm:$0xff]
    %v487 = vld [vmem:[#allocation8 + $0x74] sm:$0xf]
    %v488 = vld [vmem:[#allocation8 + $0x78] sm:$0xff]
    %v489 = vld [vmem:[#allocation8 + $0x80] sm:$0xf]
    %v490 = vld [vmem:[#allocation8 + $0x84] sm:$0xff]
    %v491 = vld [vmem:[#allocation8 + $0x8c] sm:$0xf]
    %v492 = vld [vmem:[#allocation8 + $0x90] sm:$0xff]
    %v493 = vld [vmem:[#allocation8 + $0x98] sm:$0xf]
    %v494 = vld [vmem:[#allocation8 + $0x9c] sm:$0xff]
    %v495 = vld [vmem:[#allocation8 + $0xa4] sm:$0xf]
    %v496 = vld [vmem:[#allocation8 + $0xa8] sm:$0xff]
    %v497 = vld [vmem:[#allocation8 + $0xb0] sm:$0xf]
    %v498 = vld [vmem:[#allocation8 + $0xb4] sm:$0xff]
    %v499 = vld [vmem:[#allocation8 + $0xbc] sm:$0xf]
    %v500 = vld [vmem:[%s8] sm:$0x1]
    %v502 = vlaneseq
    %v503 = vshrl.u32 %v502, 7
    %v504 = vsub.s32 0, %v503
    %v505 = vrot.slane %v500, %v504
    %v507 = vld [vmem:[%s1] sm:$0x3]
    %v508 = vpack.c.bf16 %v507, %v507
    %v541 = vunpack.c.l.b16 %v468
    %v542 = vunpack.c.h.b16 %v468
    %v543 = vunpack.c.l.b16 %v469
    %v544 = vunpack.c.l.b16 %v470
    %v545 = vunpack.c.h.b16 %v470
    %v546 = vunpack.c.l.b16 %v471
    %v547 = vunpack.c.l.b16 %v472
    %v548 = vunpack.c.h.b16 %v472
    %v549 = vunpack.c.l.b16 %v473
    %v550 = vunpack.c.l.b16 %v474
    %v551 = vunpack.c.h.b16 %v474
    %v552 = vunpack.c.l.b16 %v475
    %v553 = vunpack.c.l.b16 %v476
    %v554 = vunpack.c.h.b16 %v476
    %v555 = vunpack.c.l.b16 %v477
    %v556 = vunpack.c.l.b16 %v478
    %v557 = vunpack.c.h.b16 %v478
    %v558 = vunpack.c.l.b16 %v479
    %v559 = vunpack.c.l.b16 %v480
    %v560 = vunpack.c.h.b16 %v480
    %v561 = vunpack.c.l.b16 %v481
    %v562 = vunpack.c.l.b16 %v482
    %v563 = vunpack.c.h.b16 %v482
    %v564 = vunpack.c.l.b16 %v483
    %v565 = vunpack.c.l.b16 %v484
    %v566 = vunpack.c.h.b16 %v484
    %v567 = vunpack.c.l.b16 %v485
    %v568 = vunpack.c.l.b16 %v486
    %v569 = vunpack.c.h.b16 %v486
    %v570 = vunpack.c.l.b16 %v487
    %v571 = vunpack.c.l.b16 %v488
    %v572 = vunpack.c.h.b16 %v488
    %v573 = vunpack.c.l.b16 %v489
    %v574 = vunpack.c.l.b16 %v490
    %v575 = vunpack.c.h.b16 %v490
    %v576 = vunpack.c.l.b16 %v491
    %v577 = vunpack.c.l.b16 %v492
    %v578 = vunpack.c.h.b16 %v492
    %v579 = vunpack.c.l.b16 %v493
    %v580 = vunpack.c.l.b16 %v494
    %v581 = vunpack.c.h.b16 %v494
    %v582 = vunpack.c.l.b16 %v495
    %v583 = vunpack.c.l.b16 %v496
    %v584 = vunpack.c.h.b16 %v496
    %v585 = vunpack.c.l.b16 %v497
    %v586 = vunpack.c.l.b16 %v498
    %v587 = vunpack.c.h.b16 %v498
    %v588 = vunpack.c.l.b16 %v499
    %v589 = vpack.c.b16 %v544, %v541
    %v590 = vpack.c.b16 %v545, %v542
    %v591 = vpack.c.b16 %v546, %v543
    %v592 = vpack.c.b16 %v550, %v547
    %v593 = vpack.c.b16 %v551, %v548
    %v594 = vpack.c.b16 %v552, %v549
    %v595 = vpack.c.b16 %v556, %v553
    %v596 = vpack.c.b16 %v557, %v554
    %v597 = vpack.c.b16 %v558, %v555
    %v598 = vpack.c.b16 %v562, %v559
    %v599 = vpack.c.b16 %v563, %v560
    %v600 = vpack.c.b16 %v564, %v561
    %v601 = vpack.c.b16 %v568, %v565
    %v602 = vpack.c.b16 %v569, %v566
    %v603 = vpack.c.b16 %v570, %v567
    %v604 = vpack.c.b16 %v574, %v571
    %v605 = vpack.c.b16 %v575, %v572
    %v606 = vpack.c.b16 %v576, %v573
    %v607 = vpack.c.b16 %v580, %v577
    %v608 = vpack.c.b16 %v581, %v578
    %v609 = vpack.c.b16 %v582, %v579
    %v610 = vpack.c.b16 %v586, %v583
    %v611 = vpack.c.b16 %v587, %v584
    %v612 = vpack.c.b16 %v588, %v585
    %637 = vmatprep.subr.bf16.mxu0 %v590
    %638 = vmatpush1.bf16.msra.mxu0 %v589
    %639 = vmatprep.subr.bf16.mxu0 %v593
    %640 = vmatpush1.bf16.msra.mxu0 %v592
    %641 = vmatprep.subr.bf16.mxu0 %v596
    %642 = vmatpush1.bf16.msra.mxu0 %v595
    %643 = vmatprep.subr.bf16.mxu0 %v599
    %644 = vmatpush1.bf16.msra.mxu0 %v598
    %645 = vmatprep.subr.bf16.mxu0 %v602
    %646 = vmatpush1.bf16.msra.mxu0 %v601
    %647 = vmatprep.subr.bf16.mxu0 %v605
    %648 = vmatpush1.bf16.msra.mxu0 %v604
    %649 = vmatprep.subr.bf16.mxu0 %v608
    %650 = vmatpush1.bf16.msra.mxu0 %v607
    %651 = vmatprep.subr.bf16.mxu0 %v611
    %652 = vmatpush1.bf16.msra.mxu0 %v610
    %653 = vmatprep.subr.bf16.mxu0 0
    %654 = vmatpush1.bf16.msra.mxu0 0
    %655 = vmatprep.subr.bf16.mxu0 0
    %656 = vmatpush1.bf16.msra.mxu0 0
    %657 = vmatprep.subr.bf16.mxu0 0
    %658 = vmatpush1.bf16.msra.mxu0 0
    %659 = vmatprep.subr.bf16.mxu0 0
    %660 = vmatpush1.bf16.msra.mxu0 0
    %661 = vmatprep.subr.bf16.mxu0 0
    %662 = vmatpush1.bf16.msra.mxu0 0
    %663 = vmatprep.subr.bf16.mxu0 0
    %664 = vmatpush1.bf16.msra.mxu0 0
    %665 = vmatprep.subr.bf16.mxu0 0
    %666 = vmatpush1.bf16.msra.mxu0 0
    %667 = vmatprep.subr.bf16.mxu0 0
    %668 = vmatpush1.bf16.msra.mxu0 0
    %669 = vmatprep.mubr.bf16.mxu0 0
    %670 = vmatmul.mubr.bf16.gmra.mrb[0].mxu0 %v508
    %v671 = vpop.f32.mrb[0].mxu0
    %v672 = vadd.f32 0.0, %v671
    %v673 = vpop.f32.mrb[0].mxu0
    %v674 = vadd.f32 0.0, %v673
    %v675 = vpop.f32.mrb[0].mxu0
    %v676 = vpop.f32.mrb[0].mxu0
    %677 = vdwg.mxu0
    %678 = vmatprep.subr.bf16.mxu0 0
    %679 = vmatpush1.bf16.msra.mxu0 %v591
    %680 = vmatprep.subr.bf16.mxu0 0
    %681 = vmatpush1.bf16.msra.mxu0 %v594
    %682 = vmatprep.subr.bf16.mxu0 0
    %683 = vmatpush1.bf16.msra.mxu0 %v597
    %684 = vmatprep.subr.bf16.mxu0 0
    %685 = vmatpush1.bf16.msra.mxu0 %v600
    %686 = vmatprep.subr.bf16.mxu0 0
    %687 = vmatpush1.bf16.msra.mxu0 %v603
    %688 = vmatprep.subr.bf16.mxu0 0
    %689 = vmatpush1.bf16.msra.mxu0 %v606
    %690 = vmatprep.subr.bf16.mxu0 0
    %691 = vmatpush1.bf16.msra.mxu0 %v609
    %692 = vmatprep.subr.bf16.mxu0 0
    %693 = vmatpush1.bf16.msra.mxu0 %v612
    %694 = vmatprep.subr.bf16.mxu0 0
    %695 = vmatpush1.bf16.msra.mxu0 0
    %696 = vmatprep.subr.bf16.mxu0 0
    %697 = vmatpush1.bf16.msra.mxu0 0
    %698 = vmatprep.subr.bf16.mxu0 0
    %699 = vmatpush1.bf16.msra.mxu0 0
    %700 = vmatprep.subr.bf16.mxu0 0
    %701 = vmatpush1.bf16.msra.mxu0 0
    %702 = vmatprep.subr.bf16.mxu0 0
    %703 = vmatpush1.bf16.msra.mxu0 0
    %704 = vmatprep.subr.bf16.mxu0 0
    %705 = vmatpush1.bf16.msra.mxu0 0
    %706 = vmatprep.subr.bf16.mxu0 0
    %707 = vmatpush1.bf16.msra.mxu0 0
    %708 = vmatprep.subr.bf16.mxu0 0
    %709 = vmatpush1.bf16.msra.mxu0 0
    %710 = vmatprep.mubr.bf16.mxu0 0
    %711 = vmatmul.mubr.bf16.gmra.mrb[0].mxu0 %v508
    %v712 = vpop.f32.mrb[0].mxu0
    %v713 = vadd.f32 0.0, %v712
    %v714 = vpop.f32.mrb[0].mxu0
    %v715 = vpop.f32.mrb[0].mxu0
    %v716 = vpop.f32.mrb[0].mxu0
    %717 = vdwg.mxu0
    %v718 = vadd.f32 %v419, %v672
    %v719 = vxor.u32 %v718, 2147483648
    %v720 = vmul.f32 %v719, 1.442695
    %v721 = vpow.pop %v720
    %v722 = vadd.f32 %v721, 1.0
    %v723 = vrcp.pop %v722
    %v724 = vmul.f32 1.0, %v723
    %v725 = vadd.f32 %v421, %v674
    %v726 = vxor.u32 %v725, 2147483648
    %v727 = vmul.f32 %v726, 1.442695
    %v728 = vpow.pop %v727
    %v729 = vadd.f32 %v728, 1.0
    %v730 = vrcp.pop %v729
    %v731 = vmul.f32 1.0, %v730
    %v732 = vadd.f32 %v713, %v505
    %v733 = vmul.f32 %v724, %v732
    %v734 = vadd.f32 %v462, %v733
    %v735 = vtanh.pop %v734
    %v736 = vsub.f32 1.0, %v731
    %v737 = vmul.f32 %v736, %v735
    %v738 = vmul.f32 %v731, %v507
    %v739 = vadd.f32 %v737, %v738
    %v742 = vunpack.c.l.s4 1966171168
    %v743 = vunpack.c.0.s8 %v742
    %v744 = vlaneseq
    %v745 = vshrl.u32 %v744, 7
    %v746 = vsub.s32 %v743, %v745
    %v747 = vrot.slane %v739, %v746
    %v748 = vcombine.high %v747, %v747
    %v750 = vunpack.c.l.s4 1966171168
    %v751 = vunpack.c.0.s8 %v750
    %v752 = vlaneseq
    %v753 = vshrl.u32 %v752, 7
    %v754 = vsub.s32 %v751, %v753
    %v755 = vrot.slane %v747, %v754
    %v757 = vunpack.c.l.s4 1966171168
    %v758 = vunpack.c.0.s8 %v757
    %v759 = vlaneseq
    %v760 = vshrl.u32 %v759, 7
    %v761 = vsub.s32 %v758, %v760
    %v762 = vrot.slane %v748, %v761
    %765 = vst [vmem:[#allocation3] sm:$0x1] %v755
    %766 = vst [vmem:[#allocation3 + $0x8] sm:$0x1] %v762
    %v767 = vpack.c.bf16 %v739, %v739
    %768 = vmatprep.subr.bf16.mxu0 %v590
    %769 = vmatpush1.bf16.msra.mxu0 %v589
    %770 = vmatprep.subr.bf16.mxu0 %v593
    %771 = vmatpush1.bf16.msra.mxu0 %v592
    %772 = vmatprep.subr.bf16.mxu0 %v596
    %773 = vmatpush1.bf16.msra.mxu0 %v595
    %774 = vmatprep.subr.bf16.mxu0 %v599
    %775 = vmatpush1.bf16.msra.mxu0 %v598
    %776 = vmatprep.subr.bf16.mxu0 %v602
    %777 = vmatpush1.bf16.msra.mxu0 %v601
    %778 = vmatprep.subr.bf16.mxu0 %v605
    %779 = vmatpush1.bf16.msra.mxu0 %v604
    %780 = vmatprep.subr.bf16.mxu0 %v608
    %781 = vmatpush1.bf16.msra.mxu0 %v607
    %782 = vmatprep.subr.bf16.mxu0 %v611
    %783 = vmatpush1.bf16.msra.mxu0 %v610
    %784 = vmatprep.subr.bf16.mxu0 0
    %785 = vmatpush1.bf16.msra.mxu0 0
    %786 = vmatprep.subr.bf16.mxu0 0
    %787 = vmatpush1.bf16.msra.mxu0 0
    %788 = vmatprep.subr.bf16.mxu0 0
    %789 = vmatpush1.bf16.msra.mxu0 0
    %790 = vmatprep.subr.bf16.mxu0 0
    %791 = vmatpush1.bf16.msra.mxu0 0
    %792 = vmatprep.subr.bf16.mxu0 0
    %793 = vmatpush1.bf16.msra.mxu0 0
    %794 = vmatprep.subr.bf16.mxu0 0
    %795 = vmatpush1.bf16.msra.mxu0 0
    %796 = vmatprep.subr.bf16.mxu0 0
    %797 = vmatpush1.bf16.msra.mxu0 0
    %798 = vmatprep.subr.bf16.mxu0 0
    %799 = vmatpush1.bf16.msra.mxu0 0
    %800 = vmatprep.mubr.bf16.mxu0 0
    %801 = vmatmul.mubr.bf16.gmra.mrb[0].mxu0 %v767
    %v802 = vpop.f32.mrb[0].mxu0
    %v803 = vadd.f32 0.0, %v802
    %v804 = vpop.f32.mrb[0].mxu0
    %v805 = vadd.f32 0.0, %v804
    %v806 = vpop.f32.mrb[0].mxu0
    %v807 = vpop.f32.mrb[0].mxu0
    %808 = vdwg.mxu0
    %809 = vmatprep.subr.bf16.mxu0 0
    %810 = vmatpush1.bf16.msra.mxu0 %v591
    %811 = vmatprep.subr.bf16.mxu0 0
    %812 = vmatpush1.bf16.msra.mxu0 %v594
    %813 = vmatprep.subr.bf16.mxu0 0
    %814 = vmatpush1.bf16.msra.mxu0 %v597
    %815 = vmatprep.subr.bf16.mxu0 0
    %816 = vmatpush1.bf16.msra.mxu0 %v600
    %817 = vmatprep.subr.bf16.mxu0 0
    %818 = vmatpush1.bf16.msra.mxu0 %v603
    %819 = vmatprep.subr.bf16.mxu0 0
    %820 = vmatpush1.bf16.msra.mxu0 %v606
    %821 = vmatprep.subr.bf16.mxu0 0
    %822 = vmatpush1.bf16.msra.mxu0 %v609
    %823 = vmatprep.subr.bf16.mxu0 0
    %824 = vmatpush1.bf16.msra.mxu0 %v612
    %825 = vmatprep.subr.bf16.mxu0 0
    %826 = vmatpush1.bf16.msra.mxu0 0
    %827 = vmatprep.subr.bf16.mxu0 0
    %828 = vmatpush1.bf16.msra.mxu0 0
    %829 = vmatprep.subr.bf16.mxu0 0
    %830 = vmatpush1.bf16.msra.mxu0 0
    %831 = vmatprep.subr.bf16.mxu0 0
    %832 = vmatpush1.bf16.msra.mxu0 0
    %833 = vmatprep.subr.bf16.mxu0 0
    %834 = vmatpush1.bf16.msra.mxu0 0
    %835 = vmatprep.subr.bf16.mxu0 0
    %836 = vmatpush1.bf16.msra.mxu0 0
    %837 = vmatprep.subr.bf16.mxu0 0
    %838 = vmatpush1.bf16.msra.mxu0 0
    %839 = vmatprep.subr.bf16.mxu0 0
    %840 = vmatpush1.bf16.msra.mxu0 0
    %841 = vmatprep.mubr.bf16.mxu0 0
    %842 = vmatmul.mubr.bf16.gmra.mrb[0].mxu0 %v767
    %v843 = vpop.f32.mrb[0].mxu0
    %v844 = vadd.f32 0.0, %v843
    %v845 = vpop.f32.mrb[0].mxu0
    %v846 = vpop.f32.mrb[0].mxu0
    %v847 = vpop.f32.mrb[0].mxu0
    %848 = vdwg.mxu0
    %v850 = vrot.slane %v803, 6
    %v852 = vadd.f32 %v419, %v850
    %v853 = vxor.u32 %v852, 2147483648
    %v854 = vmul.f32 %v853, 1.442695
    %v855 = vpow.pop %v854
    %v856 = vadd.f32 %v855, 1.0
    %v857 = vrcp.pop %v856
    %v858 = vmul.f32 1.0, %v857
    %v860 = vrot.slane %v805, 6
    %v862 = vadd.f32 %v421, %v860
    %v863 = vxor.u32 %v862, 2147483648
    %v864 = vmul.f32 %v863, 1.442695
    %v865 = vpow.pop %v864
    %v866 = vadd.f32 %v865, 1.0
    %v867 = vrcp.pop %v866
    %v868 = vmul.f32 1.0, %v867
    %v869 = vadd.f32 %v844, %v505
    %v871 = vrot.slane %v869, 6
    %v873 = vmul.f32 %v858, %v871
    %v874 = vadd.f32 %v462, %v873
    %v875 = vtanh.pop %v874
    %v876 = vsub.f32 1.0, %v868
    %v877 = vmul.f32 %v876, %v875
    %v878 = vrot.slane %v739, 6
    %v880 = vmul.f32 %v868, %v878
    %v881 = vadd.f32 %v877, %v880
    %v884 = vunpack.c.l.s4 1966171168
    %v885 = vunpack.c.0.s8 %v884
    %v886 = vlaneseq
    %v887 = vshrl.u32 %v886, 7
    %v888 = vsub.s32 %v885, %v887
    %v889 = vrot.slane %v881, %v888
    %v890 = vcombine.high %v889, %v889
    %v892 = vunpack.c.l.s4 1966171168
    %v893 = vunpack.c.0.s8 %v892
    %v894 = vlaneseq
    %v895 = vshrl.u32 %v894, 7
    %v896 = vsub.s32 %v893, %v895
    %v897 = vrot.slane %v889, %v896
    %v899 = vunpack.c.l.s4 1966171168
    %v900 = vunpack.c.0.s8 %v899
    %v901 = vlaneseq
    %v902 = vshrl.u32 %v901, 7
    %v903 = vsub.s32 %v900, %v902
    %v904 = vrot.slane %v890, %v903
    %v905 = vcombine.high %v897, %v897
    %v906 = vcombine.high %v904, %v904
    %909 = vst [vmem:[#allocation3 + $0x1] sm:$0x1] %v905
    %910 = vst [vmem:[#allocation3 + $0x9] sm:$0x1] %v906
    %v911 = vpack.c.bf16 %v881, %v881
    %v913 = vrot.slane %v911, 1
    %915 = vmatprep.subr.bf16.mxu0 %v590
    %916 = vmatpush1.bf16.msra.mxu0 %v589
    %917 = vmatprep.subr.bf16.mxu0 %v593
    %918 = vmatpush1.bf16.msra.mxu0 %v592
    %919 = vmatprep.subr.bf16.mxu0 %v596
    %920 = vmatpush1.bf16.msra.mxu0 %v595
    %921 = vmatprep.subr.bf16.mxu0 %v599
    %922 = vmatpush1.bf16.msra.mxu0 %v598
    %923 = vmatprep.subr.bf16.mxu0 %v602
    %924 = vmatpush1.bf16.msra.mxu0 %v601
    %925 = vmatprep.subr.bf16.mxu0 %v605
    %926 = vmatpush1.bf16.msra.mxu0 %v604
    %927 = vmatprep.subr.bf16.mxu0 %v608
    %928 = vmatpush1.bf16.msra.mxu0 %v607
    %929 = vmatprep.subr.bf16.mxu0 %v611
    %930 = vmatpush1.bf16.msra.mxu0 %v610
    %931 = vmatprep.subr.bf16.mxu0 0
    %932 = vmatpush1.bf16.msra.mxu0 0
    %933 = vmatprep.subr.bf16.mxu0 0
    %934 = vmatpush1.bf16.msra.mxu0 0
    %935 = vmatprep.subr.bf16.mxu0 0
    %936 = vmatpush1.bf16.msra.mxu0 0
    %937 = vmatprep.subr.bf16.mxu0 0
    %938 = vmatpush1.bf16.msra.mxu0 0
    %939 = vmatprep.subr.bf16.mxu0 0
    %940 = vmatpush1.bf16.msra.mxu0 0
    %941 = vmatprep.subr.bf16.mxu0 0
    %942 = vmatpush1.bf16.msra.mxu0 0
    %943 = vmatprep.subr.bf16.mxu0 0
    %944 = vmatpush1.bf16.msra.mxu0 0
    %945 = vmatprep.subr.bf16.mxu0 0
    %946 = vmatpush1.bf16.msra.mxu0 0
    %947 = vmatprep.mubr.bf16.mxu0 0
    %948 = vmatmul.mubr.bf16.gmra.mrb[0].mxu0 %v913
    %v949 = vpop.f32.mrb[0].mxu0
    %v950 = vadd.f32 0.0, %v949
    %v951 = vpop.f32.mrb[0].mxu0
    %v952 = vadd.f32 0.0, %v951
    %v953 = vpop.f32.mrb[0].mxu0
    %v954 = vpop.f32.mrb[0].mxu0
    %955 = vdwg.mxu0
    %956 = vmatprep.subr.bf16.mxu0 0
    %957 = vmatpush1.bf16.msra.mxu0 %v591
    %958 = vmatprep.subr.bf16.mxu0 0
    %959 = vmatpush1.bf16.msra.mxu0 %v594
    %960 = vmatprep.subr.bf16.mxu0 0
    %961 = vmatpush1.bf16.msra.mxu0 %v597
    %962 = vmatprep.subr.bf16.mxu0 0
    %963 = vmatpush1.bf16.msra.mxu0 %v600
    %964 = vmatprep.subr.bf16.mxu0 0
    %965 = vmatpush1.bf16.msra.mxu0 %v603
    %966 = vmatprep.subr.bf16.mxu0 0
    %967 = vmatpush1.bf16.msra.mxu0 %v606
    %968 = vmatprep.subr.bf16.mxu0 0
    %969 = vmatpush1.bf16.msra.mxu0 %v609
    %970 = vmatprep.subr.bf16.mxu0 0
    %971 = vmatpush1.bf16.msra.mxu0 %v612
    %972 = vmatprep.subr.bf16.mxu0 0
    %973 = vmatpush1.bf16.msra.mxu0 0
    %974 = vmatprep.subr.bf16.mxu0 0
    %975 = vmatpush1.bf16.msra.mxu0 0
    %976 = vmatprep.subr.bf16.mxu0 0
    %977 = vmatpush1.bf16.msra.mxu0 0
    %978 = vmatprep.subr.bf16.mxu0 0
    %979 = vmatpush1.bf16.msra.mxu0 0
    %980 = vmatprep.subr.bf16.mxu0 0
    %981 = vmatpush1.bf16.msra.mxu0 0
    %982 = vmatprep.subr.bf16.mxu0 0
    %983 = vmatpush1.bf16.msra.mxu0 0
    %984 = vmatprep.subr.bf16.mxu0 0
    %985 = vmatpush1.bf16.msra.mxu0 0
    %986 = vmatprep.subr.bf16.mxu0 0
    %987 = vmatpush1.bf16.msra.mxu0 0
    %988 = vmatprep.mubr.bf16.mxu0 0
    %989 = vmatmul.mubr.bf16.gmra.mrb[0].mxu0 %v913
    %v990 = vpop.f32.mrb[0].mxu0
    %v991 = vadd.f32 0.0, %v990
    %v992 = vpop.f32.mrb[0].mxu0
    %v993 = vpop.f32.mrb[0].mxu0
    %v994 = vpop.f32.mrb[0].mxu0
    %995 = vdwg.mxu0
    %v997 = vrot.slane %v950, 4
    %v999 = vadd.f32 %v419, %v997
    %v1000 = vxor.u32 %v999, 2147483648
    %v1001 = vmul.f32 %v1000, 1.442695
    %v1002 = vpow.pop %v1001
    %v1003 = vadd.f32 %v1002, 1.0
    %v1004 = vrcp.pop %v1003
    %v1005 = vmul.f32 1.0, %v1004
    %v1007 = vrot.slane %v952, 4
    %v1009 = vadd.f32 %v421, %v1007
    %v1010 = vxor.u32 %v1009, 2147483648
    %v1011 = vmul.f32 %v1010, 1.442695
    %v1012 = vpow.pop %v1011
    %v1013 = vadd.f32 %v1012, 1.0
    %v1014 = vrcp.pop %v1013
    %v1015 = vmul.f32 1.0, %v1014
    %v1016 = vadd.f32 %v991, %v505
    %v1018 = vrot.slane %v1016, 4
    %v1020 = vmul.f32 %v1005, %v1018
    %v1021 = vadd.f32 %v462, %v1020
    %v1022 = vtanh.pop %v1021
    %v1023 = vsub.f32 1.0, %v1015
    %v1024 = vmul.f32 %v1023, %v1022
    %v1025 = vrot.slane %v881, 6
    %v1027 = vmul.f32 %v1015, %v1025
    %v1028 = vadd.f32 %v1024, %v1027
    %v1030 = vcombine.high %v1028, %v1028
    %v1032 = vunpack.c.l.s4 1966171168
    %v1033 = vunpack.c.0.s8 %v1032
    %v1034 = vlaneseq
    %v1035 = vshrl.u32 %v1034, 7
    %v1036 = vsub.s32 %v1033, %v1035
    %v1037 = vrot.slane %v1030, %v1036
    %v1038 = vcombine.high %v1037, %v1037
    %v1040 = vunpack.c.l.s4 1966171168
    %v1041 = vunpack.c.0.s8 %v1040
    %v1042 = vlaneseq
    %v1043 = vshrl.u32 %v1042, 7
    %v1044 = vsub.s32 %v1041, %v1043
    %v1045 = vrot.slane %v1037, %v1044
    %v1047 = vunpack.c.l.s4 1966171168
    %v1048 = vunpack.c.0.s8 %v1047
    %v1049 = vlaneseq
    %v1050 = vshrl.u32 %v1049, 7
    %v1051 = vsub.s32 %v1048, %v1050
    %v1052 = vrot.slane %v1038, %v1051
    %1055 = vst [vmem:[#allocation3 + $0x2] sm:$0x1] %v1045
    %1056 = vst [vmem:[#allocation3 + $0xa] sm:$0x1] %v1052
    %v1057 = vpack.c.bf16 %v1028, %v1028
    %v1059 = vrot.slane %v1057, 2
    %1061 = vmatprep.subr.bf16.mxu0 %v590
    %1062 = vmatpush1.bf16.msra.mxu0 %v589
    %1063 = vmatprep.subr.bf16.mxu0 %v593
    %1064 = vmatpush1.bf16.msra.mxu0 %v592
    %1065 = vmatprep.subr.bf16.mxu0 %v596
    %1066 = vmatpush1.bf16.msra.mxu0 %v595
    %1067 = vmatprep.subr.bf16.mxu0 %v599
    %1068 = vmatpush1.bf16.msra.mxu0 %v598
    %1069 = vmatprep.subr.bf16.mxu0 %v602
    %1070 = vmatpush1.bf16.msra.mxu0 %v601
    %1071 = vmatprep.subr.bf16.mxu0 %v605
    %1072 = vmatpush1.bf16.msra.mxu0 %v604
    %1073 = vmatprep.subr.bf16.mxu0 %v608
    %1074 = vmatpush1.bf16.msra.mxu0 %v607
    %1075 = vmatprep.subr.bf16.mxu0 %v611
    %1076 = vmatpush1.bf16.msra.mxu0 %v610
    %1077 = vmatprep.subr.bf16.mxu0 0
    %1078 = vmatpush1.bf16.msra.mxu0 0
    %1079 = vmatprep.subr.bf16.mxu0 0
    %1080 = vmatpush1.bf16.msra.mxu0 0
    %1081 = vmatprep.subr.bf16.mxu0 0
    %1082 = vmatpush1.bf16.msra.mxu0 0
    %1083 = vmatprep.subr.bf16.mxu0 0
    %1084 = vmatpush1.bf16.msra.mxu0 0
    %1085 = vmatprep.subr.bf16.mxu0 0
    %1086 = vmatpush1.bf16.msra.mxu0 0
    %1087 = vmatprep.subr.bf16.mxu0 0
    %1088 = vmatpush1.bf16.msra.mxu0 0
    %1089 = vmatprep.subr.bf16.mxu0 0
    %1090 = vmatpush1.bf16.msra.mxu0 0
    %1091 = vmatprep.subr.bf16.mxu0 0
    %1092 = vmatpush1.bf16.msra.mxu0 0
    %1093 = vmatprep.mubr.bf16.mxu0 0
    %1094 = vmatmul.mubr.bf16.gmra.mrb[0].mxu0 %v1059
    %v1095 = vpop.f32.mrb[0].mxu0
    %v1096 = vadd.f32 0.0, %v1095
    %v1097 = vpop.f32.mrb[0].mxu0
    %v1098 = vadd.f32 0.0, %v1097
    %v1099 = vpop.f32.mrb[0].mxu0
    %v1100 = vpop.f32.mrb[0].mxu0
    %1101 = vdwg.mxu0
    %1102 = vmatprep.subr.bf16.mxu0 0
    %1103 = vmatpush1.bf16.msra.mxu0 %v591
    %1104 = vmatprep.subr.bf16.mxu0 0
    %1105 = vmatpush1.bf16.msra.mxu0 %v594
    %1106 = vmatprep.subr.bf16.mxu0 0
    %1107 = vmatpush1.bf16.msra.mxu0 %v597
    %1108 = vmatprep.subr.bf16.mxu0 0
    %1109 = vmatpush1.bf16.msra.mxu0 %v600
    %1110 = vmatprep.subr.bf16.mxu0 0
    %1111 = vmatpush1.bf16.msra.mxu0 %v603
    %1112 = vmatprep.subr.bf16.mxu0 0
    %1113 = vmatpush1.bf16.msra.mxu0 %v606
    %1114 = vmatprep.subr.bf16.mxu0 0
    %1115 = vmatpush1.bf16.msra.mxu0 %v609
    %1116 = vmatprep.subr.bf16.mxu0 0
    %1117 = vmatpush1.bf16.msra.mxu0 %v612
    %1118 = vmatprep.subr.bf16.mxu0 0
    %1119 = vmatpush1.bf16.msra.mxu0 0
    %1120 = vmatprep.subr.bf16.mxu0 0
    %1121 = vmatpush1.bf16.msra.mxu0 0
    %1122 = vmatprep.subr.bf16.mxu0 0
    %1123 = vmatpush1.bf16.msra.mxu0 0
    %1124 = vmatprep.subr.bf16.mxu0 0
    %1125 = vmatpush1.bf16.msra.mxu0 0
    %1126 = vmatprep.subr.bf16.mxu0 0
    %1127 = vmatpush1.bf16.msra.mxu0 0
    %1128 = vmatprep.subr.bf16.mxu0 0
    %1129 = vmatpush1.bf16.msra.mxu0 0
    %1130 = vmatprep.subr.bf16.mxu0 0
    %1131 = vmatpush1.bf16.msra.mxu0 0
    %1132 = vmatprep.subr.bf16.mxu0 0
    %1133 = vmatpush1.bf16.msra.mxu0 0
    %1134 = vmatprep.mubr.bf16.mxu0 0
    %1135 = vmatmul.mubr.bf16.gmra.mrb[0].mxu0 %v1059
    %v1136 = vpop.f32.mrb[0].mxu0
    %v1137 = vadd.f32 0.0, %v1136
    %v1138 = vpop.f32.mrb[0].mxu0
    %v1139 = vpop.f32.mrb[0].mxu0
    %v1140 = vpop.f32.mrb[0].mxu0
    %1141 = vdwg.mxu0
    %v1143 = vrot.slane %v1096, 2
    %v1145 = vadd.f32 %v419, %v1143
    %v1146 = vxor.u32 %v1145, 2147483648
    %v1147 = vmul.f32 %v1146, 1.442695
    %v1148 = vpow.pop %v1147
    %v1149 = vadd.f32 %v1148, 1.0
    %v1150 = vrcp.pop %v1149
    %v1151 = vmul.f32 1.0, %v1150
    %v1153 = vrot.slane %v1098, 2
    %v1155 = vadd.f32 %v421, %v1153
    %v1156 = vxor.u32 %v1155, 2147483648
    %v1157 = vmul.f32 %v1156, 1.442695
    %v1158 = vpow.pop %v1157
    %v1159 = vadd.f32 %v1158, 1.0
    %v1160 = vrcp.pop %v1159
    %v1161 = vmul.f32 1.0, %v1160
    %v1162 = vadd.f32 %v1137, %v505
    %v1164 = vrot.slane %v1162, 2
    %v1166 = vmul.f32 %v1151, %v1164
    %v1167 = vadd.f32 %v462, %v1166
    %v1168 = vtanh.pop %v1167
    %v1169 = vsub.f32 1.0, %v1161
    %v1170 = vmul.f32 %v1169, %v1168
    %v1171 = vrot.slane %v1028, 6
    %v1173 = vmul.f32 %v1161, %v1171
    %v1174 = vadd.f32 %v1170, %v1173
    %v1176 = vcombine.high %v1174, %v1174
    %v1178 = vunpack.c.l.s4 1966171168
    %v1179 = vunpack.c.0.s8 %v1178
    %v1180 = vlaneseq
    %v1181 = vshrl.u32 %v1180, 7
    %v1182 = vsub.s32 %v1179, %v1181
    %v1183 = vrot.slane %v1176, %v1182
    %v1184 = vcombine.high %v1183, %v1183
    %v1186 = vunpack.c.l.s4 1966171168
    %v1187 = vunpack.c.0.s8 %v1186
    %v1188 = vlaneseq
    %v1189 = vshrl.u32 %v1188, 7
    %v1190 = vsub.s32 %v1187, %v1189
    %v1191 = vrot.slane %v1183, %v1190
    %v1193 = vunpack.c.l.s4 1966171168
    %v1194 = vunpack.c.0.s8 %v1193
    %v1195 = vlaneseq
    %v1196 = vshrl.u32 %v1195, 7
    %v1197 = vsub.s32 %v1194, %v1196
    %v1198 = vrot.slane %v1184, %v1197
    %v1199 = vcombine.high %v1191, %v1191
    %v1200 = vcombine.high %v1198, %v1198
    %1203 = vst [vmem:[#allocation3 + $0x3] sm:$0x1] %v1199
    %1204 = vst [vmem:[#allocation3 + $0xb] sm:$0x1] %v1200
    %v1205 = vpack.c.bf16 %v1174, %v1174
    %v1207 = vrot.slane %v1205, 3
    %1209 = vmatprep.subr.bf16.mxu0 %v590
    %1210 = vmatpush1.bf16.msra.mxu0 %v589
    %1211 = vmatprep.subr.bf16.mxu0 %v593
    %1212 = vmatpush1.bf16.msra.mxu0 %v592
    %1213 = vmatprep.subr.bf16.mxu0 %v596
    %1214 = vmatpush1.bf16.msra.mxu0 %v595
    %1215 = vmatprep.subr.bf16.mxu0 %v599
    %1216 = vmatpush1.bf16.msra.mxu0 %v598
    %1217 = vmatprep.subr.bf16.mxu0 %v602
    %1218 = vmatpush1.bf16.msra.mxu0 %v601
    %1219 = vmatprep.subr.bf16.mxu0 %v605
    %1220 = vmatpush1.bf16.msra.mxu0 %v604
    %1221 = vmatprep.subr.bf16.mxu0 %v608
    %1222 = vmatpush1.bf16.msra.mxu0 %v607
    %1223 = vmatprep.subr.bf16.mxu0 %v611
    %1224 = vmatpush1.bf16.msra.mxu0 %v610
    %1225 = vmatprep.subr.bf16.mxu0 0
    %1226 = vmatpush1.bf16.msra.mxu0 0
    %1227 = vmatprep.subr.bf16.mxu0 0
    %1228 = vmatpush1.bf16.msra.mxu0 0
    %1229 = vmatprep.subr.bf16.mxu0 0
    %1230 = vmatpush1.bf16.msra.mxu0 0
    %1231 = vmatprep.subr.bf16.mxu0 0
    %1232 = vmatpush1.bf16.msra.mxu0 0
    %1233 = vmatprep.subr.bf16.mxu0 0
    %1234 = vmatpush1.bf16.msra.mxu0 0
    %1235 = vmatprep.subr.bf16.mxu0 0
    %1236 = vmatpush1.bf16.msra.mxu0 0
    %1237 = vmatprep.subr.bf16.mxu0 0
    %1238 = vmatpush1.bf16.msra.mxu0 0
    %1239 = vmatprep.subr.bf16.mxu0 0
    %1240 = vmatpush1.bf16.msra.mxu0 0
    %1241 = vmatprep.mubr.bf16.mxu0 0
    %1242 = vmatmul.mubr.bf16.gmra.mrb[0].mxu0 %v1207
    %v1243 = vpop.f32.mrb[0].mxu0
    %v1244 = vadd.f32 0.0, %v1243
    %v1245 = vpop.f32.mrb[0].mxu0
    %v1246 = vadd.f32 0.0, %v1245
    %v1247 = vpop.f32.mrb[0].mxu0
    %v1248 = vpop.f32.mrb[0].mxu0
    %1249 = vdwg.mxu0
    %1250 = vmatprep.subr.bf16.mxu0 0
    %1251 = vmatpush1.bf16.msra.mxu0 %v591
    %1252 = vmatprep.subr.bf16.mxu0 0
    %1253 = vmatpush1.bf16.msra.mxu0 %v594
    %1254 = vmatprep.subr.bf16.mxu0 0
    %1255 = vmatpush1.bf16.msra.mxu0 %v597
    %1256 = vmatprep.subr.bf16.mxu0 0
    %1257 = vmatpush1.bf16.msra.mxu0 %v600
    %1258 = vmatprep.subr.bf16.mxu0 0
    %1259 = vmatpush1.bf16.msra.mxu0 %v603
    %1260 = vmatprep.subr.bf16.mxu0 0
    %1261 = vmatpush1.bf16.msra.mxu0 %v606
    %1262 = vmatprep.subr.bf16.mxu0 0
    %1263 = vmatpush1.bf16.msra.mxu0 %v609
    %1264 = vmatprep.subr.bf16.mxu0 0
    %1265 = vmatpush1.bf16.msra.mxu0 %v612
    %1266 = vmatprep.subr.bf16.mxu0 0
    %1267 = vmatpush1.bf16.msra.mxu0 0
    %1268 = vmatprep.subr.bf16.mxu0 0
    %1269 = vmatpush1.bf16.msra.mxu0 0
    %1270 = vmatprep.subr.bf16.mxu0 0
    %1271 = vmatpush1.bf16.msra.mxu0 0
    %1272 = vmatprep.subr.bf16.mxu0 0
    %1273 = vmatpush1.bf16.msra.mxu0 0
    %1274 = vmatprep.subr.bf16.mxu0 0
    %1275 = vmatpush1.bf16.msra.mxu0 0
    %1276 = vmatprep.subr.bf16.mxu0 0
    %1277 = vmatpush1.bf16.msra.mxu0 0
    %1278 = vmatprep.subr.bf16.mxu0 0
    %1279 = vmatpush1.bf16.msra.mxu0 0
    %1280 = vmatprep.subr.bf16.mxu0 0
    %1281 = vmatpush1.bf16.msra.mxu0 0
    %1282 = vmatprep.mubr.bf16.mxu0 0
    %1283 = vmatmul.mubr.bf16.gmra.mrb[0].mxu0 %v1207
    %v1284 = vpop.f32.mrb[0].mxu0
    %v1285 = vadd.f32 0.0, %v1284
    %v1286 = vpop.f32.mrb[0].mxu0
    %v1287 = vpop.f32.mrb[0].mxu0
    %v1288 = vpop.f32.mrb[0].mxu0
    %1289 = vdwg.mxu0
    %v1290 = vadd.f32 %v423, %v1244
    %v1291 = vxor.u32 %v1290, 2147483648
    %v1292 = vmul.f32 %v1291, 1.442695
    %v1293 = vpow.pop %v1292
    %v1294 = vadd.f32 %v1293, 1.0
    %v1295 = vrcp.pop %v1294
    %v1296 = vmul.f32 1.0, %v1295
    %v1297 = vadd.f32 %v425, %v1246
    %v1298 = vxor.u32 %v1297, 2147483648
    %v1299 = vmul.f32 %v1298, 1.442695
    %v1300 = vpow.pop %v1299
    %v1301 = vadd.f32 %v1300, 1.0
    %v1302 = vrcp.pop %v1301
    %v1303 = vmul.f32 1.0, %v1302
    %v1304 = vadd.f32 %v1285, %v505
    %v1305 = vmul.f32 %v1296, %v1304
    %v1306 = vadd.f32 %v465, %v1305
    %v1307 = vtanh.pop %v1306
    %v1308 = vsub.f32 1.0, %v1303
    %v1309 = vmul.f32 %v1308, %v1307
    %v1310 = vrot.slane %v1174, 6
    %v1312 = vmul.f32 %v1303, %v1310
    %v1313 = vadd.f32 %v1309, %v1312
    %v1316 = vunpack.c.l.s4 1966171168
    %v1317 = vunpack.c.0.s8 %v1316
    %v1318 = vlaneseq
    %v1319 = vshrl.u32 %v1318, 7
    %v1320 = vsub.s32 %v1317, %v1319
    %v1321 = vrot.slane %v1313, %v1320
    %v1322 = vcombine.high %v1321, %v1321
    %v1324 = vunpack.c.l.s4 1966171168
    %v1325 = vunpack.c.0.s8 %v1324
    %v1326 = vlaneseq
    %v1327 = vshrl.u32 %v1326, 7
    %v1328 = vsub.s32 %v1325, %v1327
    %v1329 = vrot.slane %v1321, %v1328
    %v1331 = vunpack.c.l.s4 1966171168
    %v1332 = vunpack.c.0.s8 %v1331
    %v1333 = vlaneseq
    %v1334 = vshrl.u32 %v1333, 7
    %v1335 = vsub.s32 %v1332, %v1334
    %v1336 = vrot.slane %v1322, %v1335
    %1339 = vst [vmem:[#allocation3 + $0x4] sm:$0x1] %v1329
    %1340 = vst [vmem:[#allocation3 + $0xc] sm:$0x1] %v1336
    %v1341 = vpack.c.bf16 %v1313, %v1313
    %1342 = vmatprep.subr.bf16.mxu0 %v590
    %1343 = vmatpush1.bf16.msra.mxu0 %v589
    %1344 = vmatprep.subr.bf16.mxu0 %v593
    %1345 = vmatpush1.bf16.msra.mxu0 %v592
    %1346 = vmatprep.subr.bf16.mxu0 %v596
    %1347 = vmatpush1.bf16.msra.mxu0 %v595
    %1348 = vmatprep.subr.bf16.mxu0 %v599
    %1349 = vmatpush1.bf16.msra.mxu0 %v598
    %1350 = vmatprep.subr.bf16.mxu0 %v602
    %1351 = vmatpush1.bf16.msra.mxu0 %v601
    %1352 = vmatprep.subr.bf16.mxu0 %v605
    %1353 = vmatpush1.bf16.msra.mxu0 %v604
    %1354 = vmatprep.subr.bf16.mxu0 %v608
    %1355 = vmatpush1.bf16.msra.mxu0 %v607
    %1356 = vmatprep.subr.bf16.mxu0 %v611
    %1357 = vmatpush1.bf16.msra.mxu0 %v610
    %1358 = vmatprep.subr.bf16.mxu0 0
    %1359 = vmatpush1.bf16.msra.mxu0 0
    %1360 = vmatprep.subr.bf16.mxu0 0
    %1361 = vmatpush1.bf16.msra.mxu0 0
    %1362 = vmatprep.subr.bf16.mxu0 0
    %1363 = vmatpush1.bf16.msra.mxu0 0
    %1364 = vmatprep.subr.bf16.mxu0 0
    %1365 = vmatpush1.bf16.msra.mxu0 0
    %1366 = vmatprep.subr.bf16.mxu0 0
    %1367 = vmatpush1.bf16.msra.mxu0 0
    %1368 = vmatprep.subr.bf16.mxu0 0
    %1369 = vmatpush1.bf16.msra.mxu0 0
    %1370 = vmatprep.subr.bf16.mxu0 0
    %1371 = vmatpush1.bf16.msra.mxu0 0
    %1372 = vmatprep.subr.bf16.mxu0 0
    %1373 = vmatpush1.bf16.msra.mxu0 0
    %1374 = vmatprep.mubr.bf16.mxu0 0
    %1375 = vmatmul.mubr.bf16.gmra.mrb[0].mxu0 %v1341
    %v1376 = vpop.f32.mrb[0].mxu0
    %v1377 = vadd.f32 0.0, %v1376
    %v1378 = vpop.f32.mrb[0].mxu0
    %v1379 = vadd.f32 0.0, %v1378
    %v1380 = vpop.f32.mrb[0].mxu0
    %v1381 = vpop.f32.mrb[0].mxu0
    %1382 = vdwg.mxu0
    %1383 = vmatprep.subr.bf16.mxu0 0
    %1384 = vmatpush1.bf16.msra.mxu0 %v591
    %1385 = vmatprep.subr.bf16.mxu0 0
    %1386 = vmatpush1.bf16.msra.mxu0 %v594
    %1387 = vmatprep.subr.bf16.mxu0 0
    %1388 = vmatpush1.bf16.msra.mxu0 %v597
    %1389 = vmatprep.subr.bf16.mxu0 0
    %1390 = vmatpush1.bf16.msra.mxu0 %v600
    %1391 = vmatprep.subr.bf16.mxu0 0
    %1392 = vmatpush1.bf16.msra.mxu0 %v603
    %1393 = vmatprep.subr.bf16.mxu0 0
    %1394 = vmatpush1.bf16.msra.mxu0 %v606
    %1395 = vmatprep.subr.bf16.mxu0 0
    %1396 = vmatpush1.bf16.msra.mxu0 %v609
    %1397 = vmatprep.subr.bf16.mxu0 0
    %1398 = vmatpush1.bf16.msra.mxu0 %v612
    %1399 = vmatprep.subr.bf16.mxu0 0
    %1400 = vmatpush1.bf16.msra.mxu0 0
    %1401 = vmatprep.subr.bf16.mxu0 0
    %1402 = vmatpush1.bf16.msra.mxu0 0
    %1403 = vmatprep.subr.bf16.mxu0 0
    %1404 = vmatpush1.bf16.msra.mxu0 0
    %1405 = vmatprep.subr.bf16.mxu0 0
    %1406 = vmatpush1.bf16.msra.mxu0 0
    %1407 = vmatprep.subr.bf16.mxu0 0
    %1408 = vmatpush1.bf16.msra.mxu0 0
    %1409 = vmatprep.subr.bf16.mxu0 0
    %1410 = vmatpush1.bf16.msra.mxu0 0
    %1411 = vmatprep.subr.bf16.mxu0 0
    %1412 = vmatpush1.bf16.msra.mxu0 0
    %1413 = vmatprep.subr.bf16.mxu0 0
    %1414 = vmatpush1.bf16.msra.mxu0 0
    %1415 = vmatprep.mubr.bf16.mxu0 0
    %1416 = vmatmul.mubr.bf16.gmra.mrb[0].mxu0 %v1341
    %v1417 = vpop.f32.mrb[0].mxu0
    %v1418 = vadd.f32 0.0, %v1417
    %v1419 = vpop.f32.mrb[0].mxu0
    %v1420 = vpop.f32.mrb[0].mxu0
    %v1421 = vpop.f32.mrb[0].mxu0
    %1422 = vdwg.mxu0
    %v1424 = vrot.slane %v1377, 6
    %v1426 = vadd.f32 %v423, %v1424
    %v1427 = vxor.u32 %v1426, 2147483648
    %v1428 = vmul.f32 %v1427, 1.442695
    %v1429 = vpow.pop %v1428
    %v1430 = vadd.f32 %v1429, 1.0
    %v1431 = vrcp.pop %v1430
    %v1432 = vmul.f32 1.0, %v1431
    %v1434 = vrot.slane %v1379, 6
    %v1436 = vadd.f32 %v425, %v1434
    %v1437 = vxor.u32 %v1436, 2147483648
    %v1438 = vmul.f32 %v1437, 1.442695
    %v1439 = vpow.pop %v1438
    %v1440 = vadd.f32 %v1439, 1.0
    %v1441 = vrcp.pop %v1440
    %v1442 = vmul.f32 1.0, %v1441
    %v1443 = vadd.f32 %v1418, %v505
    %v1445 = vrot.slane %v1443, 6
    %v1447 = vmul.f32 %v1432, %v1445
    %v1448 = vadd.f32 %v465, %v1447
    %v1449 = vtanh.pop %v1448
    %v1450 = vsub.f32 1.0, %v1442
    %v1451 = vmul.f32 %v1450, %v1449
    %v1452 = vrot.slane %v1313, 6
    %v1454 = vmul.f32 %v1442, %v1452
    %v1455 = vadd.f32 %v1451, %v1454
    %v1458 = vunpack.c.l.s4 1966171168
    %v1459 = vunpack.c.0.s8 %v1458
    %v1460 = vlaneseq
    %v1461 = vshrl.u32 %v1460, 7
    %v1462 = vsub.s32 %v1459, %v1461
    %v1463 = vrot.slane %v1455, %v1462
    %v1464 = vcombine.high %v1463, %v1463
    %v1466 = vunpack.c.l.s4 1966171168
    %v1467 = vunpack.c.0.s8 %v1466
    %v1468 = vlaneseq
    %v1469 = vshrl.u32 %v1468, 7
    %v1470 = vsub.s32 %v1467, %v1469
    %v1471 = vrot.slane %v1463, %v1470
    %v1473 = vunpack.c.l.s4 1966171168
    %v1474 = vunpack.c.0.s8 %v1473
    %v1475 = vlaneseq
    %v1476 = vshrl.u32 %v1475, 7
    %v1477 = vsub.s32 %v1474, %v1476
    %v1478 = vrot.slane %v1464, %v1477
    %v1479 = vcombine.high %v1471, %v1471
    %v1480 = vcombine.high %v1478, %v1478
    %1483 = vst [vmem:[#allocation3 + $0x5] sm:$0x1] %v1479
    %1484 = vst [vmem:[#allocation3 + $0xd] sm:$0x1] %v1480
    %v1485 = vpack.c.bf16 %v1455, %v1455
    %v1487 = vrot.slane %v1485, 1
    %1489 = vmatprep.subr.bf16.mxu0 %v590
    %1490 = vmatpush1.bf16.msra.mxu0 %v589
    %1491 = vmatprep.subr.bf16.mxu0 %v593
    %1492 = vmatpush1.bf16.msra.mxu0 %v592
    %1493 = vmatprep.subr.bf16.mxu0 %v596
    %1494 = vmatpush1.bf16.msra.mxu0 %v595
    %1495 = vmatprep.subr.bf16.mxu0 %v599
    %1496 = vmatpush1.bf16.msra.mxu0 %v598
    %1497 = vmatprep.subr.bf16.mxu0 %v602
    %1498 = vmatpush1.bf16.msra.mxu0 %v601
    %1499 = vmatprep.subr.bf16.mxu0 %v605
    %1500 = vmatpush1.bf16.msra.mxu0 %v604
    %1501 = vmatprep.subr.bf16.mxu0 %v608
    %1502 = vmatpush1.bf16.msra.mxu0 %v607
    %1503 = vmatprep.subr.bf16.mxu0 %v611
    %1504 = vmatpush1.bf16.msra.mxu0 %v610
    %1505 = vmatprep.subr.bf16.mxu0 0
    %1506 = vmatpush1.bf16.msra.mxu0 0
    %1507 = vmatprep.subr.bf16.mxu0 0
    %1508 = vmatpush1.bf16.msra.mxu0 0
    %1509 = vmatprep.subr.bf16.mxu0 0
    %1510 = vmatpush1.bf16.msra.mxu0 0
    %1511 = vmatprep.subr.bf16.mxu0 0
    %1512 = vmatpush1.bf16.msra.mxu0 0
    %1513 = vmatprep.subr.bf16.mxu0 0
    %1514 = vmatpush1.bf16.msra.mxu0 0
    %1515 = vmatprep.subr.bf16.mxu0 0
    %1516 = vmatpush1.bf16.msra.mxu0 0
    %1517 = vmatprep.subr.bf16.mxu0 0
    %1518 = vmatpush1.bf16.msra.mxu0 0
    %1519 = vmatprep.subr.bf16.mxu0 0
    %1520 = vmatpush1.bf16.msra.mxu0 0
    %1521 = vmatprep.mubr.bf16.mxu0 0
    %1522 = vmatmul.mubr.bf16.gmra.mrb[0].mxu0 %v1487
    %v1523 = vpop.f32.mrb[0].mxu0
    %v1524 = vadd.f32 0.0, %v1523
    %v1525 = vpop.f32.mrb[0].mxu0
    %v1526 = vadd.f32 0.0, %v1525
    %v1527 = vpop.f32.mrb[0].mxu0
    %v1528 = vpop.f32.mrb[0].mxu0
    %1529 = vdwg.mxu0
    %1530 = vmatprep.subr.bf16.mxu0 0
    %1531 = vmatpush1.bf16.msra.mxu0 %v591
    %1532 = vmatprep.subr.bf16.mxu0 0
    %1533 = vmatpush1.bf16.msra.mxu0 %v594
    %1534 = vmatprep.subr.bf16.mxu0 0
    %1535 = vmatpush1.bf16.msra.mxu0 %v597
    %1536 = vmatprep.subr.bf16.mxu0 0
    %1537 = vmatpush1.bf16.msra.mxu0 %v600
    %1538 = vmatprep.subr.bf16.mxu0 0
    %1539 = vmatpush1.bf16.msra.mxu0 %v603
    %1540 = vmatprep.subr.bf16.mxu0 0
    %1541 = vmatpush1.bf16.msra.mxu0 %v606
    %1542 = vmatprep.subr.bf16.mxu0 0
    %1543 = vmatpush1.bf16.msra.mxu0 %v609
    %1544 = vmatprep.subr.bf16.mxu0 0
    %1545 = vmatpush1.bf16.msra.mxu0 %v612
    %1546 = vmatprep.subr.bf16.mxu0 0
    %1547 = vmatpush1.bf16.msra.mxu0 0
    %1548 = vmatprep.subr.bf16.mxu0 0
    %1549 = vmatpush1.bf16.msra.mxu0 0
    %1550 = vmatprep.subr.bf16.mxu0 0
    %1551 = vmatpush1.bf16.msra.mxu0 0
    %1552 = vmatprep.subr.bf16.mxu0 0
    %1553 = vmatpush1.bf16.msra.mxu0 0
    %1554 = vmatprep.subr.bf16.mxu0 0
    %1555 = vmatpush1.bf16.msra.mxu0 0
    %1556 = vmatprep.subr.bf16.mxu0 0
    %1557 = vmatpush1.bf16.msra.mxu0 0
    %1558 = vmatprep.subr.bf16.mxu0 0
    %1559 = vmatpush1.bf16.msra.mxu0 0
    %1560 = vmatprep.subr.bf16.mxu0 0
    %1561 = vmatpush1.bf16.msra.mxu0 0
    %1562 = vmatprep.mubr.bf16.mxu0 0
    %1563 = vmatmul.mubr.bf16.gmra.mrb[0].mxu0 %v1487
    %v1564 = vpop.f32.mrb[0].mxu0
    %v1565 = vadd.f32 0.0, %v1564
    %v1566 = vpop.f32.mrb[0].mxu0
    %v1567 = vpop.f32.mrb[0].mxu0
    %v1568 = vpop.f32.mrb[0].mxu0
    %1569 = vdwg.mxu0
    %v1571 = vrot.slane %v1524, 4
    %v1573 = vadd.f32 %v423, %v1571
    %v1574 = vxor.u32 %v1573, 2147483648
    %v1575 = vmul.f32 %v1574, 1.442695
    %v1576 = vpow.pop %v1575
    %v1577 = vadd.f32 %v1576, 1.0
    %v1578 = vrcp.pop %v1577
    %v1579 = vmul.f32 1.0, %v1578
    %v1581 = vrot.slane %v1526, 4
    %v1583 = vadd.f32 %v425, %v1581
    %v1584 = vxor.u32 %v1583, 2147483648
    %v1585 = vmul.f32 %v1584, 1.442695
    %v1586 = vpow.pop %v1585
    %v1587 = vadd.f32 %v1586, 1.0
    %v1588 = vrcp.pop %v1587
    %v1589 = vmul.f32 1.0, %v1588
    %v1590 = vadd.f32 %v1565, %v505
    %v1592 = vrot.slane %v1590, 4
    %v1594 = vmul.f32 %v1579, %v1592
    %v1595 = vadd.f32 %v465, %v1594
    %v1596 = vtanh.pop %v1595
    %v1597 = vsub.f32 1.0, %v1589
    %v1598 = vmul.f32 %v1597, %v1596
    %v1599 = vrot.slane %v1455, 6
    %v1601 = vmul.f32 %v1589, %v1599
    %v1602 = vadd.f32 %v1598, %v1601
    %v1604 = vcombine.high %v1602, %v1602
    %v1606 = vunpack.c.l.s4 1966171168
    %v1607 = vunpack.c.0.s8 %v1606
    %v1608 = vlaneseq
    %v1609 = vshrl.u32 %v1608, 7
    %v1610 = vsub.s32 %v1607, %v1609
    %v1611 = vrot.slane %v1604, %v1610
    %v1612 = vcombine.high %v1611, %v1611
    %v1614 = vunpack.c.l.s4 1966171168
    %v1615 = vunpack.c.0.s8 %v1614
    %v1616 = vlaneseq
    %v1617 = vshrl.u32 %v1616, 7
    %v1618 = vsub.s32 %v1615, %v1617
    %v1619 = vrot.slane %v1611, %v1618
    %v1621 = vunpack.c.l.s4 1966171168
    %v1622 = vunpack.c.0.s8 %v1621
    %v1623 = vlaneseq
    %v1624 = vshrl.u32 %v1623, 7
    %v1625 = vsub.s32 %v1622, %v1624
    %v1626 = vrot.slane %v1612, %v1625
    %1629 = vst [vmem:[#allocation3 + $0x6] sm:$0x1] %v1619
    %1630 = vst [vmem:[#allocation3 + $0xe] sm:$0x1] %v1626
    %v1631 = vpack.c.bf16 %v1602, %v1602
    %v1633 = vrot.slane %v1631, 2
    %1635 = vmatprep.subr.bf16.mxu0 %v590
    %1636 = vmatpush1.bf16.msra.mxu0 %v589
    %1637 = vmatprep.subr.bf16.mxu0 %v593
    %1638 = vmatpush1.bf16.msra.mxu0 %v592
    %1639 = vmatprep.subr.bf16.mxu0 %v596
    %1640 = vmatpush1.bf16.msra.mxu0 %v595
    %1641 = vmatprep.subr.bf16.mxu0 %v599
    %1642 = vmatpush1.bf16.msra.mxu0 %v598
    %1643 = vmatprep.subr.bf16.mxu0 %v602
    %1644 = vmatpush1.bf16.msra.mxu0 %v601
    %1645 = vmatprep.subr.bf16.mxu0 %v605
    %1646 = vmatpush1.bf16.msra.mxu0 %v604
    %1647 = vmatprep.subr.bf16.mxu0 %v608
    %1648 = vmatpush1.bf16.msra.mxu0 %v607
    %1649 = vmatprep.subr.bf16.mxu0 %v611
    %1650 = vmatpush1.bf16.msra.mxu0 %v610
    %1651 = vmatprep.subr.bf16.mxu0 0
    %1652 = vmatpush1.bf16.msra.mxu0 0
    %1653 = vmatprep.subr.bf16.mxu0 0
    %1654 = vmatpush1.bf16.msra.mxu0 0
    %1655 = vmatprep.subr.bf16.mxu0 0
    %1656 = vmatpush1.bf16.msra.mxu0 0
    %1657 = vmatprep.subr.bf16.mxu0 0
    %1658 = vmatpush1.bf16.msra.mxu0 0
    %1659 = vmatprep.subr.bf16.mxu0 0
    %1660 = vmatpush1.bf16.msra.mxu0 0
    %1661 = vmatprep.subr.bf16.mxu0 0
    %1662 = vmatpush1.bf16.msra.mxu0 0
    %1663 = vmatprep.subr.bf16.mxu0 0
    %1664 = vmatpush1.bf16.msra.mxu0 0
    %1665 = vmatprep.subr.bf16.mxu0 0
    %1666 = vmatpush1.bf16.msra.mxu0 0
    %1667 = vmatprep.mubr.bf16.mxu0 0
    %1668 = vmatmul.mubr.bf16.gmra.mrb[0].mxu0 %v1633
    %v1669 = vpop.f32.mrb[0].mxu0
    %v1670 = vadd.f32 0.0, %v1669
    %v1671 = vpop.f32.mrb[0].mxu0
    %v1672 = vadd.f32 0.0, %v1671
    %v1673 = vpop.f32.mrb[0].mxu0
    %v1674 = vpop.f32.mrb[0].mxu0
    %1675 = vdwg.mxu0
    %1676 = vmatprep.subr.bf16.mxu0 0
    %1677 = vmatpush1.bf16.msra.mxu0 %v591
    %1678 = vmatprep.subr.bf16.mxu0 0
    %1679 = vmatpush1.bf16.msra.mxu0 %v594
    %1680 = vmatprep.subr.bf16.mxu0 0
    %1681 = vmatpush1.bf16.msra.mxu0 %v597
    %1682 = vmatprep.subr.bf16.mxu0 0
    %1683 = vmatpush1.bf16.msra.mxu0 %v600
    %1684 = vmatprep.subr.bf16.mxu0 0
    %1685 = vmatpush1.bf16.msra.mxu0 %v603
    %1686 = vmatprep.subr.bf16.mxu0 0
    %1687 = vmatpush1.bf16.msra.mxu0 %v606
    %1688 = vmatprep.subr.bf16.mxu0 0
    %1689 = vmatpush1.bf16.msra.mxu0 %v609
    %1690 = vmatprep.subr.bf16.mxu0 0
    %1691 = vmatpush1.bf16.msra.mxu0 %v612
    %1692 = vmatprep.subr.bf16.mxu0 0
    %1693 = vmatpush1.bf16.msra.mxu0 0
    %1694 = vmatprep.subr.bf16.mxu0 0
    %1695 = vmatpush1.bf16.msra.mxu0 0
    %1696 = vmatprep.subr.bf16.mxu0 0
    %1697 = vmatpush1.bf16.msra.mxu0 0
    %1698 = vmatprep.subr.bf16.mxu0 0
    %1699 = vmatpush1.bf16.msra.mxu0 0
    %1700 = vmatprep.subr.bf16.mxu0 0
    %1701 = vmatpush1.bf16.msra.mxu0 0
    %1702 = vmatprep.subr.bf16.mxu0 0
    %1703 = vmatpush1.bf16.msra.mxu0 0
    %1704 = vmatprep.subr.bf16.mxu0 0
    %1705 = vmatpush1.bf16.msra.mxu0 0
    %1706 = vmatprep.subr.bf16.mxu0 0
    %1707 = vmatpush1.bf16.msra.mxu0 0
    %1708 = vmatprep.mubr.bf16.mxu0 0
    %1709 = vmatmul.mubr.bf16.gmra.mrb[0].mxu0 %v1633
    %v1710 = vpop.f32.mrb[0].mxu0
    %v1711 = vadd.f32 0.0, %v1710
    %v1712 = vpop.f32.mrb[0].mxu0
    %v1713 = vpop.f32.mrb[0].mxu0
    %v1714 = vpop.f32.mrb[0].mxu0
    %1715 = vdwg.mxu0
    %v1717 = vrot.slane %v1670, 2
    %v1719 = vadd.f32 %v423, %v1717
    %v1720 = vxor.u32 %v1719, 2147483648
    %v1721 = vmul.f32 %v1720, 1.442695
    %v1722 = vpow.pop %v1721
    %v1723 = vadd.f32 %v1722, 1.0
    %v1724 = vrcp.pop %v1723
    %v1725 = vmul.f32 1.0, %v1724
    %v1727 = vrot.slane %v1672, 2
    %v1729 = vadd.f32 %v425, %v1727
    %v1730 = vxor.u32 %v1729, 2147483648
    %v1731 = vmul.f32 %v1730, 1.442695
    %v1732 = vpow.pop %v1731
    %v1733 = vadd.f32 %v1732, 1.0
    %v1734 = vrcp.pop %v1733
    %v1735 = vmul.f32 1.0, %v1734
    %v1736 = vadd.f32 %v1711, %v505
    %v1738 = vrot.slane %v1736, 2
    %v1740 = vmul.f32 %v1725, %v1738
    %v1741 = vadd.f32 %v465, %v1740
    %v1742 = vtanh.pop %v1741
    %v1743 = vsub.f32 1.0, %v1735
    %v1744 = vmul.f32 %v1743, %v1742
    %v1745 = vrot.slane %v1602, 6
    %v1747 = vmul.f32 %v1735, %v1745
    %v1748 = vadd.f32 %v1744, %v1747
    %v1750 = vcombine.high %v1748, %v1748
    %v1752 = vunpack.c.l.s4 1966171168
    %v1753 = vunpack.c.0.s8 %v1752
    %v1754 = vlaneseq
    %v1755 = vshrl.u32 %v1754, 7
    %v1756 = vsub.s32 %v1753, %v1755
    %v1757 = vrot.slane %v1750, %v1756
    %v1758 = vcombine.high %v1757, %v1757
    %v1760 = vunpack.c.l.s4 1966171168
    %v1761 = vunpack.c.0.s8 %v1760
    %v1762 = vlaneseq
    %v1763 = vshrl.u32 %v1762, 7
    %v1764 = vsub.s32 %v1761, %v1763
    %v1765 = vrot.slane %v1757, %v1764
    %v1767 = vunpack.c.l.s4 1966171168
    %v1768 = vunpack.c.0.s8 %v1767
    %v1769 = vlaneseq
    %v1770 = vshrl.u32 %v1769, 7
    %v1771 = vsub.s32 %v1768, %v1770
    %v1772 = vrot.slane %v1758, %v1771
    %v1773 = vcombine.high %v1765, %v1765
    %v1774 = vcombine.high %v1772, %v1772
    %1777 = vst [vmem:[#allocation3 + $0x7] sm:$0x1] %v1773
    %1778 = vst [vmem:[#allocation3 + $0xf] sm:$0x1] %v1774
    %v1779 = vld [vmem:[#allocation3] sm:$0xff]
    %v1780 = vld [vmem:[#allocation3 + $0x8] sm:$0xff]
    %v1781 = vpack.c.bf16 %v1779, %v1779
    %v1782 = vpack.c.bf16 %v1780, %v1780
    %1783 = vst [vmem:[%s9] sm:$0xf] %v1781
    %1784 = vst [vmem:[%s9 + $0x4] sm:$0xf] %v1782
    %v1785 = vld [vmem:[%s2] sm:$0xf]
    %v1786 = vld [vmem:[%s2 + $0x4] sm:$0xf]
    %v1787 = vld [vmem:[%s2 + $0x8] sm:$0xf]
    %v1788 = vld [vmem:[%s2 + $0xc] sm:$0xf]
    %v1791 = vunpack.c.l.b16 %v1785
    %v1792 = vunpack.c.l.b16 %v1786
    %v1793 = vpack.c.b16 %v1792, %v1791
    %1795 = vmatprep.subr.bf16.mxu0 0
    %1796 = vmatpush1.bf16.xpose.msra.mxu0 %v1793
    %1797 = vmatprep.subr.bf16.mxu0 0
    %1798 = vmatpush1.bf16.xpose.msra.mxu0 0
    %1799 = vmatprep.subr.bf16.mxu0 0
    %1800 = vmatpush1.bf16.xpose.msra.mxu0 0
    %1801 = vmatprep.subr.bf16.mxu0 0
    %1802 = vmatpush1.bf16.xpose.msra.mxu0 0
    %1803 = vmatprep.subr.bf16.mxu0 0
    %1804 = vmatpush1.bf16.xpose.msra.mxu0 0
    %1805 = vmatprep.subr.bf16.mxu0 0
    %1806 = vmatpush1.bf16.xpose.msra.mxu0 0
    %1807 = vmatprep.subr.bf16.mxu0 0
    %1808 = vmatpush1.bf16.xpose.msra.mxu0 0
    %1809 = vmatprep.subr.bf16.mxu0 0
    %1810 = vmatpush1.bf16.xpose.msra.mxu0 0
    %1811 = vmatprep.subr.bf16.mxu0 0
    %1812 = vmatpush1.bf16.xpose.msra.mxu0 0
    %1813 = vmatprep.subr.bf16.mxu0 0
    %1814 = vmatpush1.bf16.xpose.msra.mxu0 0
    %1815 = vmatprep.subr.bf16.mxu0 0
    %1816 = vmatpush1.bf16.xpose.msra.mxu0 0
    %1817 = vmatprep.subr.bf16.mxu0 0
    %1818 = vmatpush1.bf16.xpose.msra.mxu0 0
    %1819 = vmatprep.subr.bf16.mxu0 0
    %1820 = vmatpush1.bf16.xpose.msra.mxu0 0
    %1821 = vmatprep.subr.bf16.mxu0 0
    %1822 = vmatpush1.bf16.xpose.msra.mxu0 0
    %1823 = vmatprep.subr.bf16.mxu0 0
    %1824 = vmatpush1.bf16.xpose.msra.mxu0 0
    %1825 = vmatprep.subr.bf16.mxu0 0
    %1826 = vmatpush1.bf16.xpose.msra.mxu0 0
    %1827 = vmatprep.mubr.bf16.mxu0 0
    %1828 = vmatmul.mubr.bf16.gmra.mrb[0].mxu0 %v1781
    %v1829 = vpop.f32.mrb[0].mxu0
    %v1830 = vadd.f32 0.0, %v1829
    %v1831 = vpop.f32.mrb[0].mxu0
    %v1832 = vpop.f32.mrb[0].mxu0
    %v1833 = vpop.f32.mrb[0].mxu0
    %1834 = vdwg.mxu0
    %v1837 = vunpack.c.l.b16 %v1787
    %v1838 = vunpack.c.l.b16 %v1788
    %v1839 = vpack.c.b16 %v1838, %v1837
    %1841 = vmatprep.subr.bf16.mxu0 0
    %1842 = vmatpush1.bf16.xpose.msra.mxu0 %v1839
    %1843 = vmatprep.subr.bf16.mxu0 0
    %1844 = vmatpush1.bf16.xpose.msra.mxu0 0
    %1845 = vmatprep.subr.bf16.mxu0 0
    %1846 = vmatpush1.bf16.xpose.msra.mxu0 0
    %1847 = vmatprep.subr.bf16.mxu0 0
    %1848 = vmatpush1.bf16.xpose.msra.mxu0 0
    %1849 = vmatprep.subr.bf16.mxu0 0
    %1850 = vmatpush1.bf16.xpose.msra.mxu0 0
    %1851 = vmatprep.subr.bf16.mxu0 0
    %1852 = vmatpush1.bf16.xpose.msra.mxu0 0
    %1853 = vmatprep.subr.bf16.mxu0 0
    %1854 = vmatpush1.bf16.xpose.msra.mxu0 0
    %1855 = vmatprep.subr.bf16.mxu0 0
    %1856 = vmatpush1.bf16.xpose.msra.mxu0 0
    %1857 = vmatprep.subr.bf16.mxu0 0
    %1858 = vmatpush1.bf16.xpose.msra.mxu0 0
    %1859 = vmatprep.subr.bf16.mxu0 0
    %1860 = vmatpush1.bf16.xpose.msra.mxu0 0
    %1861 = vmatprep.subr.bf16.mxu0 0
    %1862 = vmatpush1.bf16.xpose.msra.mxu0 0
    %1863 = vmatprep.subr.bf16.mxu0 0
    %1864 = vmatpush1.bf16.xpose.msra.mxu0 0
    %1865 = vmatprep.subr.bf16.mxu0 0
    %1866 = vmatpush1.bf16.xpose.msra.mxu0 0
    %1867 = vmatprep.subr.bf16.mxu0 0
    %1868 = vmatpush1.bf16.xpose.msra.mxu0 0
    %1869 = vmatprep.subr.bf16.mxu0 0
    %1870 = vmatpush1.bf16.xpose.msra.mxu0 0
    %1871 = vmatprep.subr.bf16.mxu0 0
    %1872 = vmatpush1.bf16.xpose.msra.mxu0 0
    %1873 = vmatprep.mubr.bf16.mxu0 0
    %1874 = vmatmul.mubr.bf16.gmra.mrb[0].mxu0 %v1782
    %v1875 = vpop.f32.mrb[0].mxu0
    %v1876 = vadd.f32 0.0, %v1875
    %v1877 = vpop.f32.mrb[0].mxu0
    %v1878 = vpop.f32.mrb[0].mxu0
    %v1879 = vpop.f32.mrb[0].mxu0
    %1880 = vdwg.mxu0
    %v1881 = vmul.f32 %v1830, 0.17677669
    %v1882 = vmul.f32 %v1876, 0.17677669
    %v1883 = vld [vmem:[%s3] sm:$0x3]
    %v1886 = vunpack.c.l.s4 1966171168
    %v1887 = vunpack.c.0.s8 %v1886
    %v1888 = vlaneseq
    %v1889 = vshrl.u32 %v1888, 7
    %v1890 = vsub.s32 %v1887, %v1889
    %v1891 = vrot.slane %v1883, %v1890
    %v1892 = vcombine.high %v1891, %v1891
    %v1894 = vunpack.c.l.s4 1966171168
    %v1895 = vunpack.c.0.s8 %v1894
    %v1896 = vlaneseq
    %v1897 = vshrl.u32 %v1896, 7
    %v1898 = vsub.s32 %v1895, %v1897
    %v1899 = vrot.slane %v1891, %v1898
    %v1901 = vunpack.c.l.s4 1966171168
    %v1902 = vunpack.c.0.s8 %v1901
    %v1903 = vlaneseq
    %v1904 = vshrl.u32 %v1903, 7
    %v1905 = vsub.s32 %v1902, %v1904
    %v1906 = vrot.slane %v1892, %v1905
    %v1907 = vlaneseq
    %v1908 = vshrl.u32 %v1907, 7
    %v1909 = vsub.s32 0, %v1908
    %v1910 = vrot.slane %v1899, %v1909
    %v1911 = vlaneseq
    %v1912 = vshrl.u32 %v1911, 7
    %v1913 = vsub.s32 0, %v1912
    %v1914 = vrot.slane %v1906, %v1913
    %v1917 = vadd.f32 %v1881, %v1910
    %v1918 = vadd.f32 %v1882, %v1914
    %vm1919 = vcmask 130048
    %v1920 = vsel %vm1919, %v1917, -inf
    %1921 = vmax.xlane.f32.xlu0 %v1920
    %v1922 = vpop.xlane.xlu0 %1921
    %v1923 = vsel %vm1919, %v1918, -inf
    %1924 = vmax.xlane.f32.xlu0 %v1923
    %v1925 = vpop.xlane.xlu0 %1924
    %v1926 = vsub.f32 %v1917, %v1922
    %v1927 = vsub.f32 %v1918, %v1925
    %v1928 = vmul.f32 %v1926, 1.442695
    %v1929 = vpow.pop %v1928
    %v1930 = vmul.f32 %v1927, 1.442695
    %v1931 = vpow.pop %v1930
    %v1932 = vsel %vm1919, %v1929, 0.0
    %1933 = vadd.xlane.f32.xlu0 %v1932
    %v1934 = vpop.xlane.xlu0 %1933
    %v1935 = vsel %vm1919, %v1931, 0.0
    %1936 = vadd.xlane.f32.xlu0 %v1935
    %v1937 = vpop.xlane.xlu0 %1936
    %v1938 = vrcp.pop %v1934
    %v1939 = vrcp.pop %v1937
    %v1940 = vmul.f32 %v1929, %v1938
    %v1941 = vmul.f32 %v1931, %v1939
    %v1942 = vpack.c.bf16 %v1940, %v1940
    %v1943 = vpack.c.bf16 %v1941, %v1941
    %v1945 = vsel %vm1919, %v1942, 0
    %1947 = vmatprep.subr.bf16.mxu0 0
    %1948 = vmatpush1.bf16.msra.mxu0 %v1793
    %1949 = vmatprep.subr.bf16.mxu0 0
    %1950 = vmatpush1.bf16.msra.mxu0 0
    %1951 = vmatprep.subr.bf16.mxu0 0
    %1952 = vmatpush1.bf16.msra.mxu0 0
    %1953 = vmatprep.subr.bf16.mxu0 0
    %1954 = vmatpush1.bf16.msra.mxu0 0
    %1955 = vmatprep.subr.bf16.mxu0 0
    %1956 = vmatpush1.bf16.msra.mxu0 0
    %1957 = vmatprep.subr.bf16.mxu0 0
    %1958 = vmatpush1.bf16.msra.mxu0 0
    %1959 = vmatprep.subr.bf16.mxu0 0
    %1960 = vmatpush1.bf16.msra.mxu0 0
    %1961 = vmatprep.subr.bf16.mxu0 0
    %1962 = vmatpush1.bf16.msra.mxu0 0
    %1963 = vmatprep.subr.bf16.mxu0 0
    %1964 = vmatpush1.bf16.msra.mxu0 0
    %1965 = vmatprep.subr.bf16.mxu0 0
    %1966 = vmatpush1.bf16.msra.mxu0 0
    %1967 = vmatprep.subr.bf16.mxu0 0
    %1968 = vmatpush1.bf16.msra.mxu0 0
    %1969 = vmatprep.subr.bf16.mxu0 0
    %1970 = vmatpush1.bf16.msra.mxu0 0
    %1971 = vmatprep.subr.bf16.mxu0 0
    %1972 = vmatpush1.bf16.msra.mxu0 0
    %1973 = vmatprep.subr.bf16.mxu0 0
    %1974 = vmatpush1.bf16.msra.mxu0 0
    %1975 = vmatprep.subr.bf16.mxu0 0
    %1976 = vmatpush1.bf16.msra.mxu0 0
    %1977 = vmatprep.subr.bf16.mxu0 0
    %1978 = vmatpush1.bf16.msra.mxu0 0
    %1979 = vmatprep.mubr.bf16.mxu0 0
    %1980 = vmatmul.mubr.bf16.gmra.mrb[0].mxu0 %v1945
    %v1981 = vpop.f32.mrb[0].mxu0
    %v1982 = vadd.f32 0.0, %v1981
    %v1983 = vpop.f32.mrb[0].mxu0
    %v1984 = vpop.f32.mrb[0].mxu0
    %v1985 = vpop.f32.mrb[0].mxu0
    %1986 = vdwg.mxu0
    %v1988 = vsel %vm1919, %v1943, 0
    %1990 = vmatprep.subr.bf16.mxu0 0
    %1991 = vmatpush1.bf16.msra.mxu0 %v1839
    %1992 = vmatprep.subr.bf16.mxu0 0
    %1993 = vmatpush1.bf16.msra.mxu0 0
    %1994 = vmatprep.subr.bf16.mxu0 0
    %1995 = vmatpush1.bf16.msra.mxu0 0
    %1996 = vmatprep.subr.bf16.mxu0 0
    %1997 = vmatpush1.bf16.msra.mxu0 0
    %1998 = vmatprep.subr.bf16.mxu0 0
    %1999 = vmatpush1.bf16.msra.mxu0 0
    %2000 = vmatprep.subr.bf16.mxu0 0
    %2001 = vmatpush1.bf16.msra.mxu0 0
    %2002 = vmatprep.subr.bf16.mxu0 0
    %2003 = vmatpush1.bf16.msra.mxu0 0
    %2004 = vmatprep.subr.bf16.mxu0 0
    %2005 = vmatpush1.bf16.msra.mxu0 0
    %2006 = vmatprep.subr.bf16.mxu0 0
    %2007 = vmatpush1.bf16.msra.mxu0 0
    %2008 = vmatprep.subr.bf16.mxu0 0
    %2009 = vmatpush1.bf16.msra.mxu0 0
    %2010 = vmatprep.subr.bf16.mxu0 0
    %2011 = vmatpush1.bf16.msra.mxu0 0
    %2012 = vmatprep.subr.bf16.mxu0 0
    %2013 = vmatpush1.bf16.msra.mxu0 0
    %2014 = vmatprep.subr.bf16.mxu0 0
    %2015 = vmatpush1.bf16.msra.mxu0 0
    %2016 = vmatprep.subr.bf16.mxu0 0
    %2017 = vmatpush1.bf16.msra.mxu0 0
    %2018 = vmatprep.subr.bf16.mxu0 0
    %2019 = vmatpush1.bf16.msra.mxu0 0
    %2020 = vmatprep.subr.bf16.mxu0 0
    %2021 = vmatpush1.bf16.msra.mxu0 0
    %2022 = vmatprep.mubr.bf16.mxu0 0
    %2023 = vmatmul.mubr.bf16.gmra.mrb[0].mxu0 %v1988
    %v2024 = vpop.f32.mrb[0].mxu0
    %v2025 = vadd.f32 0.0, %v2024
    %v2026 = vpop.f32.mrb[0].mxu0
    %v2027 = vpop.f32.mrb[0].mxu0
    %v2028 = vpop.f32.mrb[0].mxu0
    %2029 = vdwg.mxu0
    %v2030 = vpack.c.bf16 %v1982, %v1982
    %v2031 = vpack.c.bf16 %v2025, %v2025
    %2032 = vst [vmem:[%s10] sm:$0xf] %v2030
    %2033 = vst [vmem:[%s10 + $0x4] sm:$0xf] %v2031
    // Predicated region
    $region50: #{decoder_forward.2} parent=1 // pred_check
      _
    $region51: #{decoder_forward.2} parent=1 // pred_check_branch
      %2035 = sbr.rel (0) target = $region53
    $region52: #{decoder_forward.2} parent=1 // pred_region
      _
    $region53: #{decoder_forward.2} parent=1 // pred_fallthru
      _
    // Predicated region
    $region54: #{decoder_forward.2} parent=1 // pred_check
      _
    $region55: #{decoder_forward.2} parent=1 // pred_check_branch
      %2037 = sbr.rel (0) target = $region57
    $region56: #{decoder_forward.2} parent=1 // pred_region
      _
    $region57: #{decoder_forward.2} parent=1 // pred_fallthru
      _
    // Predicated region
    $region58: #{decoder_forward.2} parent=1 // pred_check
      _
    $region59: #{decoder_forward.2} parent=1 // pred_check_branch
      %2039 = sbr.rel (0) target = $region61
    $region60: #{decoder_forward.2} parent=1 // pred_region
      _
    $region61: #{decoder_forward.2} parent=1 // pred_fallthru
      _
    // Predicated region
    $region62: #{decoder_forward.2} parent=1 // pred_check
      _
    $region63: #{decoder_forward.2} parent=1 // pred_check_branch
      %2041 = sbr.rel (0) target = $region65
    $region64: #{decoder_forward.2} parent=1 // pred_region
      _
    $region65: #{decoder_forward.2} parent=1 // pred_fallthru
      _
    %2042 = vsyncpa [#allocation5], 1
    %2043 = vsyncpa [#allocation9], 1
    %2044 = vsyncpa [#allocation6], 1

</llo_original>
